<compile_context>
chip_gen: v6e
topology: v6e:2x2x1
jax: 0.10.0
libtpu: 0.0.40
codegen_flags: <defaults>
</compile_context>

<pallas_src>
import functools
import math

import jax
import jax.numpy as jnp
from jax.experimental import pallas as pl
from jax.experimental.pallas import tpu as pltpu

EPS = 1e-6
_SMEM_SPEC = pl.BlockSpec(memory_space=pltpu.MemorySpace.SMEM)

_VMEM_LIMIT = None     # resolved lazily, per TPU generation
_SINGLE_BUF = None     # whether pipeline_mode=pl.Buffered(1) is supported


def _vmem_limit():
    """~75% of physical VMEM: ~96 MiB on v5e/v6e (128 MiB), ~48 MiB on v7x (64 MiB)."""
    global _VMEM_LIMIT
    if _VMEM_LIMIT is None:
        limit = 48 * 1024 * 1024
        try:
            cap = getattr(pltpu.get_tpu_info(), "vmem_capacity_bytes", None)
            if cap:
                limit = int(cap * 3 // 4)
        except Exception:
            pass
        _VMEM_LIMIT = limit
    return _VMEM_LIMIT


def _single_buffer_ok():
    """Probe whether this jax/Mosaic accepts pl.Buffered(1) for constant blocks."""
    global _SINGLE_BUF
    if _SINGLE_BUF is None:
        try:
            def k(x_ref, w_ref, o_ref):
                o_ref[...] = x_ref[...] + w_ref[...]
            f = pl.pallas_call(
                k,
                out_shape=jax.ShapeDtypeStruct((16, 128), jnp.float32),
                grid=(2,),
                in_specs=[
                    pl.BlockSpec((8, 128), lambda i: (i, 0)),
                    pl.BlockSpec((8, 128), lambda i: (0, 0),
                                 pipeline_mode=pl.Buffered(1)),
                ],
                out_specs=pl.BlockSpec((8, 128), lambda i: (i, 0)),
            )
            jax.block_until_ready(
                f(jnp.zeros((16, 128), jnp.float32), jnp.ones((8, 128), jnp.float32)))
            _SINGLE_BUF = True
        except Exception:
            _SINGLE_BUF = False
    return _SINGLE_BUF


def _const_spec(block_shape, index_map):
    """BlockSpec for blocks whose index never changes: single-buffer when supported."""
    if _single_buffer_ok():
        return pl.BlockSpec(block_shape, index_map, pipeline_mode=pl.Buffered(1))
    return pl.BlockSpec(block_shape, index_map)


def _cparams(semantics):
    return pltpu.CompilerParams(dimension_semantics=tuple(semantics),
                                vmem_limit_bytes=_vmem_limit())


def _div_tile(n, cap=256):
    """Largest tile <= cap that evenly divides n (whole extent if already small)."""
    if n <= cap:
        return n
    for t in (512, 256, 128, 64, 32, 16, 8):
        if t <= cap and n % t == 0:
            return t
    return n  # TODO(synk): pad-and-mask the sequence axis for awkward lengths


def _ff_tile(dff, cap=1024):
    if dff <= cap:
        return dff
    for t in (2048, 1024, 512, 256, 128):
        if t <= cap and dff % t == 0:
            return t
    return dff


# ----------------------------- Pallas kernels ------------------------------

def _layernorm(x, alpha, bias, eps):
    # torch LayerNormalization: scalar alpha/bias, biased variance, eps inside sqrt
    mean = jnp.mean(x, axis=-1, keepdims=True)
    var = jnp.mean((x - mean) ** 2, axis=-1, keepdims=True)
    return alpha * (x - mean) * jax.lax.rsqrt(var + eps) + bias


def ln_qkv_kernel(ln_ref, x_ref, wq_ref, bq_ref, wk_ref, bk_ref, wv_ref, bv_ref,
                  q_ref, k_ref, v_ref, *, eps, num_heads):
    # fused LayerNorm + head-major Q/K/V projections (self-attention path)
    n = _layernorm(x_ref[0], ln_ref[0], ln_ref[1], eps)
    nb = n.astype(jnp.bfloat16)
    for h in range(num_heads):
        q_ref[0, h] = (jnp.dot(nb, wq_ref[h], preferred_element_type=jnp.float32)
                       + bq_ref[h]).astype(q_ref.dtype)
        k_ref[0, h] = (jnp.dot(nb, wk_ref[h], preferred_element_type=jnp.float32)
                       + bk_ref[h]).astype(k_ref.dtype)
        v_ref[0, h] = (jnp.dot(nb, wv_ref[h], preferred_element_type=jnp.float32)
                       + bv_ref[h]).astype(v_ref.dtype)


def ln_q_kernel(ln_ref, x_ref, wq_ref, bq_ref, q_ref, *, eps, num_heads):
    # fused LayerNorm + head-major Q projection (cross-attention query)
    n = _layernorm(x_ref[0], ln_ref[0], ln_ref[1], eps)
    nb = n.astype(jnp.bfloat16)
    for h in range(num_heads):
        q_ref[0, h] = (jnp.dot(nb, wq_ref[h], preferred_element_type=jnp.float32)
                       + bq_ref[h]).astype(q_ref.dtype)


def kv_proj_kernel(x_ref, wk_ref, bk_ref, wv_ref, bv_ref, k_ref, v_ref, *, num_heads):
    # head-major K/V projections of the (un-normalized) encoder output
    xb = x_ref[0].astype(jnp.bfloat16)
    for h in range(num_heads):
        k_ref[0, h] = (jnp.dot(xb, wk_ref[h], preferred_element_type=jnp.float32)
                       + bk_ref[h]).astype(k_ref.dtype)
        v_ref[0, h] = (jnp.dot(xb, wv_ref[h], preferred_element_type=jnp.float32)
                       + bv_ref[h]).astype(v_ref.dtype)


def mha_core_kernel(q_ref, k_ref, v_ref, m_ref, wo_ref, bo_ref, res_ref, o_ref,
                    *, num_heads):
    # One (batch, q-tile) per grid step; heads are leading-axis indices (no lane
    # slicing / concat). Per head: scores -> softmax -> PV -> accumulate against the
    # (dk, D) row-panel of Wo. Bias + residual added once (lane-dense output).
    # 1/sqrt(dk) is pre-folded into Wq/bq. Fully-masked rows are degenerate (uniform
    # attention) -- the given causal / all-ones masks never produce one.
    m = m_ref[...].astype(jnp.float32)               # (tq, Sk) additive mask
    acc = res_ref[0] + bo_ref[...]                   # (tq, D) f32
    for h in range(num_heads):
        s = jax.lax.dot_general(q_ref[0, h], k_ref[0, h], (((1,), (1,)), ((), ())),
                                preferred_element_type=jnp.float32) + m
        s = s - jnp.max(s, axis=-1, keepdims=True)
        e = jnp.exp(s)
        p = e * pl.reciprocal(jnp.sum(e, axis=-1, keepdims=True), approx=True)
        head = jnp.dot(p.astype(jnp.bfloat16), v_ref[0, h],
                       preferred_element_type=jnp.float32)            # (tq, dk)
        acc = acc + jnp.dot(head.astype(jnp.bfloat16), wo_ref[h],
                            preferred_element_type=jnp.float32)       # (tq, D)
    o_ref[0] = acc


def ln_ffn_residual_kernel(ln_ref, x_ref, w1_ref, b1_ref, w2_ref, b2_ref, o_ref,
                           acc_ref, *, eps):
    # grid = (row tiles, Dff tiles); Dff is a contraction axis ("arbitrary"):
    #   acc += relu(LN(x) @ W1[:, j] + b1[j]) @ W2[j, :]
    j = pl.program_id(1)

    @pl.when(j == 0)
    def _():
        acc_ref[...] = jnp.zeros_like(acc_ref)

    n = _layernorm(x_ref[...], ln_ref[0], ln_ref[1], eps)   # cheap; recomputed per j
    hid = jnp.dot(n.astype(jnp.bfloat16), w1_ref[...],
                  preferred_element_type=jnp.float32) + b1_ref[...]
    hid = jnp.maximum(hid, 0.0)
    acc_ref[...] += jnp.dot(hid.astype(jnp.bfloat16), w2_ref[...],
                            preferred_element_type=jnp.float32)

    @pl.when(j == pl.num_programs(1) - 1)
    def _():
        o_ref[...] = x_ref[...] + acc_ref[...] + b2_ref[...]


# ----------------------------- Pallas wrappers ------------------------------

def pallas_ln_qkv(ln_ab, x, p):
    B, S, D = x.shape
    H, _, dk = p["wq_h"].shape
    tp = _div_tile(S)
    row = pl.BlockSpec((1, tp, D), lambda b, i: (b, i, 0))
    hm = pl.BlockSpec((1, H, tp, dk), lambda b, i: (b, 0, i, 0))
    out = jax.ShapeDtypeStruct((B, H, S, dk), jnp.bfloat16)

    def wspec():
        return _const_spec((H, D, dk), lambda b, i: (0, 0, 0))

    def bspec():
        return _const_spec((H, 1, dk), lambda b, i: (0, 0, 0))

    return pl.pallas_call(
        functools.partial(ln_qkv_kernel, eps=EPS, num_heads=H),
        out_shape=(out, out, out),
        grid=(B, S // tp),
        in_specs=[_SMEM_SPEC, row, wspec(), bspec(), wspec(), bspec(), wspec(), bspec()],
        out_specs=(hm, hm, hm),
        compiler_params=_cparams(("parallel", "parallel")),
    )(ln_ab, x, p["wq_h"], p["bq_h"], p["wk_h"], p["bk_h"], p["wv_h"], p["bv_h"])


def pallas_ln_q(ln_ab, x, p):
    B, S, D = x.shape
    H, _, dk = p["wq_h"].shape
    tp = _div_tile(S)
    return pl.pallas_call(
        functools.partial(ln_q_kernel, eps=EPS, num_heads=H),
        out_shape=jax.ShapeDtypeStruct((B, H, S, dk), jnp.bfloat16),
        grid=(B, S // tp),
        in_specs=[
            _SMEM_SPEC,
            pl.BlockSpec((1, tp, D), lambda b, i: (b, i, 0)),
            _const_spec((H, D, dk), lambda b, i: (0, 0, 0)),
            _const_spec((H, 1, dk), lambda b, i: (0, 0, 0)),
        ],
        out_specs=pl.BlockSpec((1, H, tp, dk), lambda b, i: (b, 0, i, 0)),
        compiler_params=_cparams(("parallel", "parallel")),
    )(ln_ab, x, p["wq_h"], p["bq_h"])


def pallas_kv_proj(x, p):
    B, S, D = x.shape
    H, _, dk = p["wk_h"].shape
    tp = _div_tile(S)
    hm = pl.BlockSpec((1, H, tp, dk), lambda b, i: (b, 0, i, 0))
    out = jax.ShapeDtypeStruct((B, H, S, dk), jnp.bfloat16)
    return pl.pallas_call(
        functools.partial(kv_proj_kernel, num_heads=H),
        out_shape=(out, out),
        grid=(B, S // tp),
        in_specs=[
            pl.BlockSpec((1, tp, D), lambda b, i: (b, i, 0)),
            _const_spec((H, D, dk), lambda b, i: (0, 0, 0)),
            _const_spec((H, 1, dk), lambda b, i: (0, 0, 0)),
            _const_spec((H, D, dk), lambda b, i: (0, 0, 0)),
            _const_spec((H, 1, dk), lambda b, i: (0, 0, 0)),
        ],
        out_specs=(hm, hm),
        compiler_params=_cparams(("parallel", "parallel")),
    )(x, p["wk_h"], p["bk_h"], p["wv_h"], p["bv_h"])


def pallas_mha_core(q, k, v, add_mask, wo_h, bo, res, num_heads):
    B, H, Sq, dk = q.shape
    Sk = k.shape[2]
    D = res.shape[-1]
    tq = _div_tile(Sq)
    kv_spec = pl.BlockSpec((1, H, Sk, dk), lambda b, i: (b, 0, 0, 0))
    return pl.pallas_call(
        functools.partial(mha_core_kernel, num_heads=H),
        out_shape=jax.ShapeDtypeStruct((B, Sq, D), res.dtype),
        grid=(B, Sq // tq),
        in_specs=[
            pl.BlockSpec((1, H, tq, dk), lambda b, i: (b, 0, i, 0)),
            kv_spec,
            kv_spec,
            pl.BlockSpec((tq, Sk), lambda b, i: (i, 0)),
            _const_spec((H, dk, D), lambda b, i: (0, 0, 0)),
            _const_spec((1, D), lambda b, i: (0, 0)),
            pl.BlockSpec((1, tq, D), lambda b, i: (b, i, 0)),
        ],
        out_specs=pl.BlockSpec((1, tq, D), lambda b, i: (b, i, 0)),
        input_output_aliases={6: 0},   # residual buffer reused for the output
        compiler_params=_cparams(("parallel", "parallel")),
    )(q, k, v, add_mask, wo_h, bo, res)


def pallas_ln_ffn_residual(ln_ab, x, ff):
    B, S, D = x.shape
    N = B * S
    Dff = ff["w1"].shape[1]
    tff = _ff_tile(Dff)
    tm = N if N <= 256 else 256
    Np = pl.cdiv(N, tm) * tm
    x2 = x.reshape(N, D)
    if Np != N:
        # zero rows LayerNorm/FFN to finite values; padded rows are sliced off below
        x2 = jnp.pad(x2, ((0, Np - N), (0, 0)))
    out = pl.pallas_call(
        functools.partial(ln_ffn_residual_kernel, eps=EPS),
        out_shape=jax.ShapeDtypeStruct((Np, D), x.dtype),
        grid=(Np // tm, Dff // tff),
        in_specs=[
            _SMEM_SPEC,
            pl.BlockSpec((tm, D), lambda i, j: (i, 0)),
            pl.BlockSpec((D, tff), lambda i, j: (0, j)),
            pl.BlockSpec((1, tff), lambda i, j: (0, j)),
            pl.BlockSpec((tff, D), lambda i, j: (j, 0)),
            _const_spec((1, D), lambda i, j: (0, 0)),
        ],
        out_specs=pl.BlockSpec((tm, D), lambda i, j: (i, 0)),
        scratch_shapes=[pltpu.VMEM((tm, D), jnp.float32)],
        input_output_aliases={1: 0},   # x is both LN input and residual; reuse buffer
        compiler_params=_cparams(("parallel", "arbitrary")),
    )(ln_ab, x2, ff["w1"], ff["b1"], ff["w2"], ff["b2"])
    return out[:N].reshape(B, S, D)


# ----------------------------- model glue ------------------------------

def decoder_block_forward(kp, x, enc_out, src_mask, tgt_mask, h):
    """Dropout layers run as identity (module.eval() semantics)."""
    B, S, D = x.shape
    Se = enc_out.shape[1]
    # additive masks (bf16 for compact DMA): keep -> 0, masked -> -1e9
    tgt_add = ((tgt_mask.reshape(S, S) - 1.0) * 1e9).astype(jnp.bfloat16)
    src_add = ((src_mask.reshape(S, Se) - 1.0) * 1e9).astype(jnp.bfloat16)

    # --- residual 0: x + SelfAttention(LN(x), LN(x), LN(x), tgt_mask) ---
    sa = kp["sa"]
    q, k, v = pallas_ln_qkv(kp["ln0"], x, sa)
    x = pallas_mha_core(q, k, v, tgt_add, sa["wo_h"], sa["bo"], x, h)

    # --- residual 1: x + CrossAttention(LN(x), enc_out, enc_out, src_mask) ---
    ca = kp["ca"]
    q = pallas_ln_q(kp["ln1"], x, ca)
    k, v = pallas_kv_proj(enc_out, ca)
    x = pallas_mha_core(q, k, v, src_add, ca["wo_h"], ca["bo"], x, h)

    # --- residual 2: x + FeedForward(LN(x)) ---
    x = pallas_ln_ffn_residual(kp["ln2"], x, kp["ff"])
    return x


# ----------------------------- references ------------------------------

def ref_layernorm(x, ln, eps=EPS):
    mean = x.mean(-1, keepdims=True)
    var = ((x - mean) ** 2).mean(-1, keepdims=True)
    return ln[0] * (x - mean) / jnp.sqrt(var + eps) + ln[1]


def ref_mha_f32(p, q_in, k_in, v_in, mask, h):
    B, Sq, D = q_in.shape
    Sk = k_in.shape[1]
    dk = D // h
    q = q_in @ p["wq_t"] + p["bq"]
    k = k_in @ p["wk_t"] + p["bk"]
    v = v_in @ p["wv_t"] + p["bv"]
    q = q.reshape(B, Sq, h, dk).transpose(0, 2, 1, 3)
    k = k.reshape(B, Sk, h, dk).transpose(0, 2, 1, 3)
    v = v.reshape(B, Sk, h, dk).transpose(0, 2, 1, 3)
    s = jnp.einsum("bhqd,bhkd->bhqk", q, k) / math.sqrt(dk)
    s = jnp.where(mask == 0.0, -1e9, s)
    p_attn = jax.nn.softmax(s, axis=-1)
    o = jnp.einsum("bhqk,bhkd->bhqd", p_attn, v)
    o = o.transpose(0, 2, 1, 3).reshape(B, Sq, D)
    return o @ p["wo_t"] + p["bo"]


def ref_decoder_block_f32(params, x, enc_out, src_mask, tgt_mask, h):
    n = ref_layernorm(x, params["ln0"])
    x = x + ref_mha_f32(params["sa"], n, n, n, tgt_mask, h)
    n = ref_layernorm(x, params["ln1"])
    x = x + ref_mha_f32(params["ca"], n, enc_out, enc_out, src_mask, h)
    n = ref_layernorm(x, params["ln2"])
    ff = jnp.maximum(n @ params["ff"]["w1_t"] + params["ff"]["b1"], 0.0)
    x = x + (ff @ params["ff"]["w2_t"] + params["ff"]["b2"])
    return x


def ref_decoder_block_bf16(kp, x, enc_out, src_mask, tgt_mask, h):
    """Mirrors the kernels' bf16-input / f32-accumulation arithmetic (exact softmax)."""
    bf16 = jnp.bfloat16
    B, S, D = x.shape
    Se = enc_out.shape[1]
    tgt_add = ((tgt_mask.reshape(S, S) - 1.0) * 1e9).astype(bf16).astype(jnp.float32)
    src_add = ((src_mask.reshape(S, Se) - 1.0) * 1e9).astype(bf16).astype(jnp.float32)

    def proj(xin, w_h, b_h):
        y = jnp.einsum("btd,hdk->bhtk", xin.astype(bf16), w_h,
                       preferred_element_type=jnp.float32) + b_h[None]
        return y.astype(bf16)

    def mha(mp, qn, kv_in, add_m):
        q = proj(qn, mp["wq_h"], mp["bq_h"])
        k = proj(kv_in, mp["wk_h"], mp["bk_h"])
        v = proj(kv_in, mp["wv_h"], mp["bv_h"])
        s = jnp.einsum("bhqd,bhkd->bhqk", q, k,
                       preferred_element_type=jnp.float32) + add_m
        s = s - s.max(-1, keepdims=True)
        e = jnp.exp(s)
        p = e / e.sum(-1, keepdims=True)
        head = jnp.einsum("bhqk,bhkd->bhqd", p.astype(bf16), v,
                          preferred_element_type=jnp.float32)
        return jnp.einsum("bhqd,hdm->bqm", head.astype(bf16), mp["wo_h"],
                          preferred_element_type=jnp.float32) + mp["bo"]

    n = ref_layernorm(x, kp["ln0"])
    x = x + mha(kp["sa"], n, n, tgt_add)
    n = ref_layernorm(x, kp["ln1"])
    x = x + mha(kp["ca"], n, enc_out, src_add)
    n = ref_layernorm(x, kp["ln2"])
    hid = jnp.maximum(jnp.einsum("btd,df->btf", n.astype(bf16), kp["ff"]["w1"],
                                 preferred_element_type=jnp.float32) + kp["ff"]["b1"], 0.0)
    x = x + jnp.einsum("btf,fd->btd", hid.astype(bf16), kp["ff"]["w2"],
                       preferred_element_type=jnp.float32) + kp["ff"]["b2"]
    return x


# ----------------------------- params ------------------------------

def init_linear(key, in_f, out_f):
    k1, k2 = jax.random.split(key)
    bound = 1.0 / math.sqrt(in_f)
    w = jax.random.uniform(k1, (out_f, in_f), jnp.float32, -bound, bound)
    b = jax.random.uniform(k2, (out_f,), jnp.float32, -bound, bound)
    return w.T, b  # store pre-transposed (in, out)


def init_params(key, d_model, d_ff):
    keys = jax.random.split(key, 10)

    def mha_params(ks):
        wq_t, bq = init_linear(ks[0], d_model, d_model)
        wk_t, bk = init_linear(ks[1], d_model, d_model)
        wv_t, bv = init_linear(ks[2], d_model, d_model)
        wo_t, bo = init_linear(ks[3], d_model, d_model)
        return dict(wq_t=wq_t, bq=bq, wk_t=wk_t, bk=bk,
                    wv_t=wv_t, bv=bv, wo_t=wo_t, bo=bo)

    w1_t, b1 = init_linear(keys[8], d_model, d_ff)
    w2_t, b2 = init_linear(keys[9], d_ff, d_model)
    ln = jnp.array([1.0, 0.0], jnp.float32)  # [alpha, bias]
    return dict(
        sa=mha_params(keys[0:4]),
        ca=mha_params(keys[4:8]),
        ff=dict(w1_t=w1_t, b1=b1, w2_t=w2_t, b2=b2),
        ln0=ln, ln1=ln, ln2=ln,
    )


def prep_params(params, h):
    """Kernel-ready params: bf16 head-major weight panels; 1/sqrt(dk) folded into Wq/bq."""
    D = params["sa"]["wq_t"].shape[0]
    dk = D // h
    scale = 1.0 / math.sqrt(dk)

    def split_cols(w):  # (D, H*dk) -> (H, D, dk)
        return jnp.transpose(w.reshape(D, h, dk), (1, 0, 2))

    def prep_mha(p):
        return dict(
            wq_h=split_cols(p["wq_t"] * scale).astype(jnp.bfloat16),
            bq_h=(p["bq"] * scale).reshape(h, 1, dk),
            wk_h=split_cols(p["wk_t"]).astype(jnp.bfloat16),
            bk_h=p["bk"].reshape(h, 1, dk),
            wv_h=split_cols(p["wv_t"]).astype(jnp.bfloat16),
            bv_h=p["bv"].reshape(h, 1, dk),
            wo_h=p["wo_t"].reshape(h, dk, D).astype(jnp.bfloat16),
            bo=p["bo"].reshape(1, D),
        )

    ff = params["ff"]
    dff = ff["w1_t"].shape[1]
    return dict(
        sa=prep_mha(params["sa"]),
        ca=prep_mha(params["ca"]),
        ff=dict(w1=ff["w1_t"].astype(jnp.bfloat16), b1=ff["b1"].reshape(1, dff),
                w2=ff["w2_t"].astype(jnp.bfloat16), b2=ff["b2"].reshape(1, D)),
        ln0=params["ln0"], ln1=params["ln1"], ln2=params["ln2"],
    )


# ----------------------------- main ------------------------------

if __name__ == "__main__":
    B, S, S_enc, D, H, D_FF = 2, 8, 8, 32, 4, 64

    key = jax.random.PRNGKey(0)
    kx, ke, kparam = jax.random.split(key, 3)
    x = jax.random.normal(kx, (B, S, D), jnp.float32)
    enc_out = jax.random.normal(ke, (B, S_enc, D), jnp.float32)
    tgt_mask = jnp.tril(jnp.ones((S, S), jnp.float32)).reshape(1, 1, S, S)   # causal
    src_mask = jnp.ones((1, 1, S, S_enc), jnp.float32)                       # no padding

    params = init_params(kparam, D, D_FF)
    kparams = prep_params(params, H)

    _single_buffer_ok()   # probe Buffered(1) support before tracing the forward pass

    fwd = jax.jit(decoder_block_forward, static_argnums=(5,))
    out = jax.block_until_ready(fwd(kparams, x, enc_out, src_mask, tgt_mask, H))
    assert out.shape == (B, S, D)

    # (1) mirror of the kernels' bf16/f32 arithmetic (only the approx softmax
    #     reciprocal and accumulation order differ)
    mirror = ref_decoder_block_bf16(kparams, x, enc_out, src_mask, tgt_mask, H)
    assert jnp.allclose(out, mirror, atol=1e-2, rtol=1e-2), \
        float(jnp.max(jnp.abs(out - mirror)))

    # (2) full-f32 module reference; tolerance sized for bf16 matmul inputs
    ref = ref_decoder_block_f32(params, x, enc_out, src_mask, tgt_mask, H)
    assert jnp.allclose(out, ref, atol=5e-2, rtol=5e-2), \
        float(jnp.max(jnp.abs(out - ref)))

    print("KERNEL_OK")
</pallas_src>

<mosaic_0001>
module attributes {stable_mosaic.version = 11 : i64} {
  func.func @k(%arg0: i32, %arg1: memref<8x128xf32, #tpu.memory_space<vmem>>, %arg2: memref<8x128xf32, #tpu.memory_space<vmem>>, %arg3: memref<8x128xf32, #tpu.memory_space<vmem>>) attributes {dimension_semantics = [#tpu.dimension_semantics<arbitrary>], iteration_bounds = array<i64: 2>, scalar_prefetch = 0 : i64, scratch_operands = 0 : i64, tpu.core_type = #tpu.core_type<tc>, window_params = [{transform_indices = @transform_0, window_bounds = array<i64: 8, 128>}, {pipeline_mode = #tpu.pipeline_mode<synchronous>, transform_indices = @transform_1, window_bounds = array<i64: 8, 128>}, {transform_indices = @transform_2, window_bounds = array<i64: 8, 128>}]} {
    %c0 = arith.constant 0 : index
    %c0_0 = arith.constant 0 : index
    %0 = vector.load %arg1[%c0, %c0_0] : memref<8x128xf32, #tpu.memory_space<vmem>>, vector<8x128xf32>
    %c0_1 = arith.constant 0 : index
    %c0_2 = arith.constant 0 : index
    %1 = vector.load %arg2[%c0_1, %c0_2] : memref<8x128xf32, #tpu.memory_space<vmem>>, vector<8x128xf32>
    %2 = arith.addf %0, %1 : vector<8x128xf32>
    %c0_3 = arith.constant 0 : index
    %c0_4 = arith.constant 0 : index
    %3 = vector.load %arg3[%c0_3, %c0_4] : memref<8x128xf32, #tpu.memory_space<vmem>>, vector<8x128xf32>
    tpu.vector_store %arg3[%c0_3, %c0_4], %2 {strides = array<i32>} : memref<8x128xf32, #tpu.memory_space<vmem>>, vector<8x128xf32>,
    return
  }
  func.func @transform_0(%arg0: i32) -> (i32, i32) {
    %c0_i32 = arith.constant 0 : i32
    %c0_i32_0 = arith.constant 0 : i32
    return %arg0, %c0_i32 : i32, i32
  }
  func.func @transform_1(%arg0: i32) -> (i32, i32) {
    %c0_i32 = arith.constant 0 : i32
    %c0_i32_0 = arith.constant 0 : i32
    %c0_i32_1 = arith.constant 0 : i32
    return %c0_i32, %c0_i32_0 : i32, i32
  }
  func.func @transform_2(%arg0: i32) -> (i32, i32) {
    %c0_i32 = arith.constant 0 : i32
    %c0_i32_0 = arith.constant 0 : i32
    return %arg0, %c0_i32 : i32, i32
  }
}

module attributes {stable_mosaic.version = 11 : i64} {
  func.func @ln_q_kernel(%arg0: i32, %arg1: i32, %arg2: memref<2xf32, #tpu.memory_space<smem>>, %arg3: memref<1x8x32xf32, #tpu.memory_space<vmem>>, %arg4: memref<4x32x8xbf16, #tpu.memory_space<vmem>>, %arg5: memref<4x1x8xf32, #tpu.memory_space<vmem>>, %arg6: memref<1x4x8x8xbf16, #tpu.memory_space<vmem>>) attributes {dimension_semantics = [#tpu.dimension_semantics<parallel>, #tpu.dimension_semantics<parallel>], iteration_bounds = array<i64: 2, 1>, scalar_prefetch = 0 : i64, scratch_operands = 0 : i64, tpu.core_type = #tpu.core_type<tc>, window_params = [{transform_indices = @transform_0, window_bounds = array<i64: 2>}, {transform_indices = @transform_1, window_bounds = array<i64: 1, 8, 32>}, {pipeline_mode = #tpu.pipeline_mode<synchronous>, transform_indices = @transform_2, window_bounds = array<i64: 4, 32, 8>}, {pipeline_mode = #tpu.pipeline_mode<synchronous>, transform_indices = @transform_3, window_bounds = array<i64: 4, 1, 8>}, {transform_indices = @transform_4, window_bounds = array<i64: 1, 4, 8, 8>}]} {
    %c0 = arith.constant 0 : index
    %c0_0 = arith.constant 0 : index
    %c0_1 = arith.constant 0 : index
    %0 = vector.load %arg3[%c0, %c0_0, %c0_1] : memref<1x8x32xf32, #tpu.memory_space<vmem>>, vector<1x8x32xf32>
    %1 = vector.shape_cast %0 : vector<1x8x32xf32> to vector<8x32xf32>
    %c0_2 = arith.constant 0 : index
    %2 = memref.load %arg2[%c0_2] : memref<2xf32, #tpu.memory_space<smem>>
    %c1 = arith.constant 1 : index
    %3 = memref.load %arg2[%c1] : memref<2xf32, #tpu.memory_space<smem>>
    %cst = arith.constant dense<0.000000e+00> : vector<8xf32>
    %4 = vector.multi_reduction <add>, %1, %cst [1] : vector<8x32xf32> to vector<8xf32>
    %5 = vector.shape_cast %4 : vector<8xf32> to vector<8x1xf32>
    %cst_3 = arith.constant 3.200000e+01 : f32
    %6 = vector.broadcast %cst_3 : f32 to vector<8x1xf32>
    %7 = arith.divf %5, %6 : vector<8x1xf32>
    %8 = vector.broadcast %7 : vector<8x1xf32> to vector<8x32xf32>
    %9 = arith.subf %1, %8 : vector<8x32xf32>
    %10 = arith.mulf %9, %9 : vector<8x32xf32>
    %cst_4 = arith.constant dense<0.000000e+00> : vector<8xf32>
    %11 = vector.multi_reduction <add>, %10, %cst_4 [1] : vector<8x32xf32> to vector<8xf32>
    %12 = vector.shape_cast %11 : vector<8xf32> to vector<8x1xf32>
    %cst_5 = arith.constant 3.200000e+01 : f32
    %13 = vector.broadcast %cst_5 : f32 to vector<8x1xf32>
    %14 = arith.divf %12, %13 : vector<8x1xf32>
    %15 = vector.broadcast %7 : vector<8x1xf32> to vector<8x32xf32>
    %16 = arith.subf %1, %15 : vector<8x32xf32>
    %17 = vector.broadcast %2 : f32 to vector<8x32xf32>
    %18 = arith.mulf %17, %16 : vector<8x32xf32>
    %cst_6 = arith.constant 9.99999997E-7 : f32
    %19 = vector.broadcast %cst_6 : f32 to vector<8x1xf32>
    %20 = arith.addf %14, %19 : vector<8x1xf32>
    %21 = math.rsqrt %20 : vector<8x1xf32>
    %22 = vector.broadcast %21 : vector<8x1xf32> to vector<8x32xf32>
    %23 = arith.mulf %18, %22 : vector<8x32xf32>
    %24 = vector.broadcast %3 : f32 to vector<8x32xf32>
    %25 = arith.addf %23, %24 : vector<8x32xf32>
    %26 = arith.truncf %25 : vector<8x32xf32> to vector<8x32xbf16>
    %c0_7 = arith.constant 0 : index
    %c0_8 = arith.constant 0 : index
    %c0_9 = arith.constant 0 : index
    %27 = vector.load %arg4[%c0_7, %c0_8, %c0_9] : memref<4x32x8xbf16, #tpu.memory_space<vmem>>, vector<1x32x8xbf16>
    %28 = vector.shape_cast %27 : vector<1x32x8xbf16> to vector<32x8xbf16>
    %cst_10 = arith.constant dense<0.000000e+00> : vector<8x8xf32>
    %29 = tpu.matmul %26, %28, %cst_10 {dimension_numbers = #tpu.dot_dimension_numbers<[1], [0], [0], [1], [0, 0, 1, 1], [], []>} : vector<8x32xbf16>, vector<32x8xbf16>, vector<8x8xf32> -> vector<8x8xf32>
    %c0_11 = arith.constant 0 : index
    %c0_12 = arith.constant 0 : index
    %c0_13 = arith.constant 0 : index
    %30 = vector.load %arg5[%c0_11, %c0_12, %c0_13] : memref<4x1x8xf32, #tpu.memory_space<vmem>>, vector<1x1x8xf32>
    %31 = vector.shape_cast %30 : vector<1x1x8xf32> to vector<1x8xf32>
    %32 = vector.broadcast %31 : vector<1x8xf32> to vector<8x8xf32>
    %33 = arith.addf %29, %32 : vector<8x8xf32>
    %34 = arith.truncf %33 : vector<8x8xf32> to vector<8x8xbf16>
    %c0_14 = arith.constant 0 : index
    %c0_15 = arith.constant 0 : index
    %c0_16 = arith.constant 0 : index
    %c0_17 = arith.constant 0 : index
    %35 = vector.load %arg6[%c0_14, %c0_15, %c0_16, %c0_17] : memref<1x4x8x8xbf16, #tpu.memory_space<vmem>>, vector<1x1x8x8xbf16>
    %36 = vector.shape_cast %35 : vector<1x1x8x8xbf16> to vector<8x8xbf16>
    %37 = vector.shape_cast %34 : vector<8x8xbf16> to vector<1x1x8x8xbf16>
    tpu.vector_store %arg6[%c0_14, %c0_15, %c0_16, %c0_17], %37 {strides = array<i32>} : memref<1x4x8x8xbf16, #tpu.memory_space<vmem>>, vector<1x1x8x8xbf16>,
    %c1_18 = arith.constant 1 : index
    %c0_19 = arith.constant 0 : index
    %c0_20 = arith.constant 0 : index
    %38 = vector.load %arg4[%c1_18, %c0_19, %c0_20] : memref<4x32x8xbf16, #tpu.memory_space<vmem>>, vector<1x32x8xbf16>
    %39 = vector.shape_cast %38 : vector<1x32x8xbf16> to vector<32x8xbf16>
    %cst_21 = arith.constant dense<0.000000e+00> : vector<8x8xf32>
    %40 = tpu.matmul %26, %39, %cst_21 {dimension_numbers = #tpu.dot_dimension_numbers<[1], [0], [0], [1], [0, 0, 1, 1], [], []>} : vector<8x32xbf16>, vector<32x8xbf16>, vector<8x8xf32> -> vector<8x8xf32>
    %c1_22 = arith.constant 1 : index
    %c0_23 = arith.constant 0 : index
    %c0_24 = arith.constant 0 : index
    %41 = vector.load %arg5[%c1_22, %c0_23, %c0_24] : memref<4x1x8xf32, #tpu.memory_space<vmem>>, vector<1x1x8xf32>
    %42 = vector.shape_cast %41 : vector<1x1x8xf32> to vector<1x8xf32>
    %43 = vector.broadcast %42 : vector<1x8xf32> to vector<8x8xf32>
    %44 = arith.addf %40, %43 : vector<8x8xf32>
    %45 = arith.truncf %44 : vector<8x8xf32> to vector<8x8xbf16>
    %c0_25 = arith.constant 0 : index
    %c1_26 = arith.constant 1 : index
    %c0_27 = arith.constant 0 : index
    %c0_28 = arith.constant 0 : index
    %46 = vector.load %arg6[%c0_25, %c1_26, %c0_27, %c0_28] : memref<1x4x8x8xbf16, #tpu.memory_space<vmem>>, vector<1x1x8x8xbf16>
    %47 = vector.shape_cast %46 : vector<1x1x8x8xbf16> to vector<8x8xbf16>
    %48 = vector.shape_cast %45 : vector<8x8xbf16> to vector<1x1x8x8xbf16>
    tpu.vector_store %arg6[%c0_25, %c1_26, %c0_27, %c0_28], %48 {strides = array<i32>} : memref<1x4x8x8xbf16, #tpu.memory_space<vmem>>, vector<1x1x8x8xbf16>,
    %c2 = arith.constant 2 : index
    %c0_29 = arith.constant 0 : index
    %c0_30 = arith.constant 0 : index
    %49 = vector.load %arg4[%c2, %c0_29, %c0_30] : memref<4x32x8xbf16, #tpu.memory_space<vmem>>, vector<1x32x8xbf16>
    %50 = vector.shape_cast %49 : vector<1x32x8xbf16> to vector<32x8xbf16>
    %cst_31 = arith.constant dense<0.000000e+00> : vector<8x8xf32>
    %51 = tpu.matmul %26, %50, %cst_31 {dimension_numbers = #tpu.dot_dimension_numbers<[1], [0], [0], [1], [0, 0, 1, 1], [], []>} : vector<8x32xbf16>, vector<32x8xbf16>, vector<8x8xf32> -> vector<8x8xf32>
    %c2_32 = arith.constant 2 : index
    %c0_33 = arith.constant 0 : index
    %c0_34 = arith.constant 0 : index
    %52 = vector.load %arg5[%c2_32, %c0_33, %c0_34] : memref<4x1x8xf32, #tpu.memory_space<vmem>>, vector<1x1x8xf32>
    %53 = vector.shape_cast %52 : vector<1x1x8xf32> to vector<1x8xf32>
    %54 = vector.broadcast %53 : vector<1x8xf32> to vector<8x8xf32>
    %55 = arith.addf %51, %54 : vector<8x8xf32>
    %56 = arith.truncf %55 : vector<8x8xf32> to vector<8x8xbf16>
    %c0_35 = arith.constant 0 : index
    %c2_36 = arith.constant 2 : index
    %c0_37 = arith.constant 0 : index
    %c0_38 = arith.constant 0 : index
    %57 = vector.load %arg6[%c0_35, %c2_36, %c0_37, %c0_38] : memref<1x4x8x8xbf16, #tpu.memory_space<vmem>>, vector<1x1x8x8xbf16>
    %58 = vector.shape_cast %57 : vector<1x1x8x8xbf16> to vector<8x8xbf16>
    %59 = vector.shape_cast %56 : vector<8x8xbf16> to vector<1x1x8x8xbf16>
    tpu.vector_store %arg6[%c0_35, %c2_36, %c0_37, %c0_38], %59 {strides = array<i32>} : memref<1x4x8x8xbf16, #tpu.memory_space<vmem>>, vector<1x1x8x8xbf16>,
    %c3 = arith.constant 3 : index
    %c0_39 = arith.constant 0 : index
    %c0_40 = arith.constant 0 : index
    %60 = vector.load %arg4[%c3, %c0_39, %c0_40] : memref<4x32x8xbf16, #tpu.memory_space<vmem>>, vector<1x32x8xbf16>
    %61 = vector.shape_cast %60 : vector<1x32x8xbf16> to vector<32x8xbf16>
    %cst_41 = arith.constant dense<0.000000e+00> : vector<8x8xf32>
    %62 = tpu.matmul %26, %61, %cst_41 {dimension_numbers = #tpu.dot_dimension_numbers<[1], [0], [0], [1], [0, 0, 1, 1], [], []>} : vector<8x32xbf16>, vector<32x8xbf16>, vector<8x8xf32> -> vector<8x8xf32>
    %c3_42 = arith.constant 3 : index
    %c0_43 = arith.constant 0 : index
    %c0_44 = arith.constant 0 : index
    %63 = vector.load %arg5[%c3_42, %c0_43, %c0_44] : memref<4x1x8xf32, #tpu.memory_space<vmem>>, vector<1x1x8xf32>
    %64 = vector.shape_cast %63 : vector<1x1x8xf32> to vector<1x8xf32>
    %65 = vector.broadcast %64 : vector<1x8xf32> to vector<8x8xf32>
    %66 = arith.addf %62, %65 : vector<8x8xf32>
    %67 = arith.truncf %66 : vector<8x8xf32> to vector<8x8xbf16>
    %c0_45 = arith.constant 0 : index
    %c3_46 = arith.constant 3 : index
    %c0_47 = arith.constant 0 : index
    %c0_48 = arith.constant 0 : index
    %68 = vector.load %arg6[%c0_45, %c3_46, %c0_47, %c0_48] : memref<1x4x8x8xbf16, #tpu.memory_space<vmem>>, vector<1x1x8x8xbf16>
    %69 = vector.shape_cast %68 : vector<1x1x8x8xbf16> to vector<8x8xbf16>
    %70 = vector.shape_cast %67 : vector<8x8xbf16> to vector<1x1x8x8xbf16>
    tpu.vector_store %arg6[%c0_45, %c3_46, %c0_47, %c0_48], %70 {strides = array<i32>} : memref<1x4x8x8xbf16, #tpu.memory_space<vmem>>, vector<1x1x8x8xbf16>,
    return
  }
  func.func @transform_0(%arg0: i32, %arg1: i32) -> i32 {
    %c0_i32 = arith.constant 0 : i32
    %c0_i32_0 = arith.constant 0 : i32
    return %c0_i32 : i32
  }
  func.func @transform_1(%arg0: i32, %arg1: i32) -> (i32, i32, i32) {
    %c0_i32 = arith.constant 0 : i32
    %c0_i32_0 = arith.constant 0 : i32
    return %arg0, %arg1, %c0_i32 : i32, i32, i32
  }
  func.func @transform_2(%arg0: i32, %arg1: i32) -> (i32, i32, i32) {
    %c0_i32 = arith.constant 0 : i32
    %c0_i32_0 = arith.constant 0 : i32
    %c0_i32_1 = arith.constant 0 : i32
    %c0_i32_2 = arith.constant 0 : i32
    return %c0_i32, %c0_i32_0, %c0_i32_1 : i32, i32, i32
  }
  func.func @transform_3(%arg0: i32, %arg1: i32) -> (i32, i32, i32) {
    %c0_i32 = arith.constant 0 : i32
    %c0_i32_0 = arith.constant 0 : i32
    %c0_i32_1 = arith.constant 0 : i32
    %c0_i32_2 = arith.constant 0 : i32
    return %c0_i32, %c0_i32_0, %c0_i32_1 : i32, i32, i32
  }
  func.func @transform_4(%arg0: i32, %arg1: i32) -> (i32, i32, i32, i32) {
    %c0_i32 = arith.constant 0 : i32
    %c0_i32_0 = arith.constant 0 : i32
    %c0_i32_1 = arith.constant 0 : i32
    return %arg0, %c0_i32, %arg1, %c0_i32_0 : i32, i32, i32, i32
  }
}

module attributes {stable_mosaic.version = 11 : i64} {
  func.func @ln_qkv_kernel(%arg0: i32, %arg1: i32, %arg2: memref<2xf32, #tpu.memory_space<smem>>, %arg3: memref<1x8x32xf32, #tpu.memory_space<vmem>>, %arg4: memref<4x32x8xbf16, #tpu.memory_space<vmem>>, %arg5: memref<4x1x8xf32, #tpu.memory_space<vmem>>, %arg6: memref<4x32x8xbf16, #tpu.memory_space<vmem>>, %arg7: memref<4x1x8xf32, #tpu.memory_space<vmem>>, %arg8: memref<4x32x8xbf16, #tpu.memory_space<vmem>>, %arg9: memref<4x1x8xf32, #tpu.memory_space<vmem>>, %arg10: memref<1x4x8x8xbf16, #tpu.memory_space<vmem>>, %arg11: memref<1x4x8x8xbf16, #tpu.memory_space<vmem>>, %arg12: memref<1x4x8x8xbf16, #tpu.memory_space<vmem>>) attributes {dimension_semantics = [#tpu.dimension_semantics<parallel>, #tpu.dimension_semantics<parallel>], iteration_bounds = array<i64: 2, 1>, scalar_prefetch = 0 : i64, scratch_operands = 0 : i64, tpu.core_type = #tpu.core_type<tc>, window_params = [{transform_indices = @transform_0, window_bounds = array<i64: 2>}, {transform_indices = @transform_1, window_bounds = array<i64: 1, 8, 32>}, {pipeline_mode = #tpu.pipeline_mode<synchronous>, transform_indices = @transform_2, window_bounds = array<i64: 4, 32, 8>}, {pipeline_mode = #tpu.pipeline_mode<synchronous>, transform_indices = @transform_3, window_bounds = array<i64: 4, 1, 8>}, {pipeline_mode = #tpu.pipeline_mode<synchronous>, transform_indices = @transform_4, window_bounds = array<i64: 4, 32, 8>}, {pipeline_mode = #tpu.pipeline_mode<synchronous>, transform_indices = @transform_5, window_bounds = array<i64: 4, 1, 8>}, {pipeline_mode = #tpu.pipeline_mode<synchronous>, transform_indices = @transform_6, window_bounds = array<i64: 4, 32, 8>}, {pipeline_mode = #tpu.pipeline_mode<synchronous>, transform_indices = @transform_7, window_bounds = array<i64: 4, 1, 8>}, {transform_indices = @transform_8, window_bounds = array<i64: 1, 4, 8, 8>}, {transform_indices = @transform_9, window_bounds = array<i64: 1, 4, 8, 8>}, {transform_indices = @transform_10, window_bounds = array<i64: 1, 4, 8, 8>}]} {
    %c0 = arith.constant 0 : index
    %c0_0 = arith.constant 0 : index
    %c0_1 = arith.constant 0 : index
    %0 = vector.load %arg3[%c0, %c0_0, %c0_1] : memref<1x8x32xf32, #tpu.memory_space<vmem>>, vector<1x8x32xf32>
    %1 = vector.shape_cast %0 : vector<1x8x32xf32> to vector<8x32xf32>
    %c0_2 = arith.constant 0 : index
    %2 = memref.load %arg2[%c0_2] : memref<2xf32, #tpu.memory_space<smem>>
    %c1 = arith.constant 1 : index
    %3 = memref.load %arg2[%c1] : memref<2xf32, #tpu.memory_space<smem>>
    %cst = arith.constant dense<0.000000e+00> : vector<8xf32>
    %4 = vector.multi_reduction <add>, %1, %cst [1] : vector<8x32xf32> to vector<8xf32>
    %5 = vector.shape_cast %4 : vector<8xf32> to vector<8x1xf32>
    %cst_3 = arith.constant 3.200000e+01 : f32
    %6 = vector.broadcast %cst_3 : f32 to vector<8x1xf32>
    %7 = arith.divf %5, %6 : vector<8x1xf32>
    %8 = vector.broadcast %7 : vector<8x1xf32> to vector<8x32xf32>
    %9 = arith.subf %1, %8 : vector<8x32xf32>
    %10 = arith.mulf %9, %9 : vector<8x32xf32>
    %cst_4 = arith.constant dense<0.000000e+00> : vector<8xf32>
    %11 = vector.multi_reduction <add>, %10, %cst_4 [1] : vector<8x32xf32> to vector<8xf32>
    %12 = vector.shape_cast %11 : vector<8xf32> to vector<8x1xf32>
    %cst_5 = arith.constant 3.200000e+01 : f32
    %13 = vector.broadcast %cst_5 : f32 to vector<8x1xf32>
    %14 = arith.divf %12, %13 : vector<8x1xf32>
    %15 = vector.broadcast %7 : vector<8x1xf32> to vector<8x32xf32>
    %16 = arith.subf %1, %15 : vector<8x32xf32>
    %17 = vector.broadcast %2 : f32 to vector<8x32xf32>
    %18 = arith.mulf %17, %16 : vector<8x32xf32>
    %cst_6 = arith.constant 9.99999997E-7 : f32
    %19 = vector.broadcast %cst_6 : f32 to vector<8x1xf32>
    %20 = arith.addf %14, %19 : vector<8x1xf32>
    %21 = math.rsqrt %20 : vector<8x1xf32>
    %22 = vector.broadcast %21 : vector<8x1xf32> to vector<8x32xf32>
    %23 = arith.mulf %18, %22 : vector<8x32xf32>
    %24 = vector.broadcast %3 : f32 to vector<8x32xf32>
    %25 = arith.addf %23, %24 : vector<8x32xf32>
    %26 = arith.truncf %25 : vector<8x32xf32> to vector<8x32xbf16>
    %c0_7 = arith.constant 0 : index
    %c0_8 = arith.constant 0 : index
    %c0_9 = arith.constant 0 : index
    %27 = vector.load %arg4[%c0_7, %c0_8, %c0_9] : memref<4x32x8xbf16, #tpu.memory_space<vmem>>, vector<1x32x8xbf16>
    %28 = vector.shape_cast %27 : vector<1x32x8xbf16> to vector<32x8xbf16>
    %cst_10 = arith.constant dense<0.000000e+00> : vector<8x8xf32>
    %29 = tpu.matmul %26, %28, %cst_10 {dimension_numbers = #tpu.dot_dimension_numbers<[1], [0], [0], [1], [0, 0, 1, 1], [], []>} : vector<8x32xbf16>, vector<32x8xbf16>, vector<8x8xf32> -> vector<8x8xf32>
    %c0_11 = arith.constant 0 : index
    %c0_12 = arith.constant 0 : index
    %c0_13 = arith.constant 0 : index
    %30 = vector.load %arg5[%c0_11, %c0_12, %c0_13] : memref<4x1x8xf32, #tpu.memory_space<vmem>>, vector<1x1x8xf32>
    %31 = vector.shape_cast %30 : vector<1x1x8xf32> to vector<1x8xf32>
    %32 = vector.broadcast %31 : vector<1x8xf32> to vector<8x8xf32>
    %33 = arith.addf %29, %32 : vector<8x8xf32>
    %34 = arith.truncf %33 : vector<8x8xf32> to vector<8x8xbf16>
    %c0_14 = arith.constant 0 : index
    %c0_15 = arith.constant 0 : index
    %c0_16 = arith.constant 0 : index
    %c0_17 = arith.constant 0 : index
    %35 = vector.load %arg10[%c0_14, %c0_15, %c0_16, %c0_17] : memref<1x4x8x8xbf16, #tpu.memory_space<vmem>>, vector<1x1x8x8xbf16>
    %36 = vector.shape_cast %35 : vector<1x1x8x8xbf16> to vector<8x8xbf16>
    %37 = vector.shape_cast %34 : vector<8x8xbf16> to vector<1x1x8x8xbf16>
    tpu.vector_store %arg10[%c0_14, %c0_15, %c0_16, %c0_17], %37 {strides = array<i32>} : memref<1x4x8x8xbf16, #tpu.memory_space<vmem>>, vector<1x1x8x8xbf16>,
    %c0_18 = arith.constant 0 : index
    %c0_19 = arith.constant 0 : index
    %c0_20 = arith.constant 0 : index
    %38 = vector.load %arg6[%c0_18, %c0_19, %c0_20] : memref<4x32x8xbf16, #tpu.memory_space<vmem>>, vector<1x32x8xbf16>
    %39 = vector.shape_cast %38 : vector<1x32x8xbf16> to vector<32x8xbf16>
    %cst_21 = arith.constant dense<0.000000e+00> : vector<8x8xf32>
    %40 = tpu.matmul %26, %39, %cst_21 {dimension_numbers = #tpu.dot_dimension_numbers<[1], [0], [0], [1], [0, 0, 1, 1], [], []>} : vector<8x32xbf16>, vector<32x8xbf16>, vector<8x8xf32> -> vector<8x8xf32>
    %c0_22 = arith.constant 0 : index
    %c0_23 = arith.constant 0 : index
    %c0_24 = arith.constant 0 : index
    %41 = vector.load %arg7[%c0_22, %c0_23, %c0_24] : memref<4x1x8xf32, #tpu.memory_space<vmem>>, vector<1x1x8xf32>
    %42 = vector.shape_cast %41 : vector<1x1x8xf32> to vector<1x8xf32>
    %43 = vector.broadcast %42 : vector<1x8xf32> to vector<8x8xf32>
    %44 = arith.addf %40, %43 : vector<8x8xf32>
    %45 = arith.truncf %44 : vector<8x8xf32> to vector<8x8xbf16>
    %c0_25 = arith.constant 0 : index
    %c0_26 = arith.constant 0 : index
    %c0_27 = arith.constant 0 : index
    %c0_28 = arith.constant 0 : index
    %46 = vector.load %arg11[%c0_25, %c0_26, %c0_27, %c0_28] : memref<1x4x8x8xbf16, #tpu.memory_space<vmem>>, vector<1x1x8x8xbf16>
    %47 = vector.shape_cast %46 : vector<1x1x8x8xbf16> to vector<8x8xbf16>
    %48 = vector.shape_cast %45 : vector<8x8xbf16> to vector<1x1x8x8xbf16>
    tpu.vector_store %arg11[%c0_25, %c0_26, %c0_27, %c0_28], %48 {strides = array<i32>} : memref<1x4x8x8xbf16, #tpu.memory_space<vmem>>, vector<1x1x8x8xbf16>,
    %c0_29 = arith.constant 0 : index
    %c0_30 = arith.constant 0 : index
    %c0_31 = arith.constant 0 : index
    %49 = vector.load %arg8[%c0_29, %c0_30, %c0_31] : memref<4x32x8xbf16, #tpu.memory_space<vmem>>, vector<1x32x8xbf16>
    %50 = vector.shape_cast %49 : vector<1x32x8xbf16> to vector<32x8xbf16>
    %cst_32 = arith.constant dense<0.000000e+00> : vector<8x8xf32>
    %51 = tpu.matmul %26, %50, %cst_32 {dimension_numbers = #tpu.dot_dimension_numbers<[1], [0], [0], [1], [0, 0, 1, 1], [], []>} : vector<8x32xbf16>, vector<32x8xbf16>, vector<8x8xf32> -> vector<8x8xf32>
    %c0_33 = arith.constant 0 : index
    %c0_34 = arith.constant 0 : index
    %c0_35 = arith.constant 0 : index
    %52 = vector.load %arg9[%c0_33, %c0_34, %c0_35] : memref<4x1x8xf32, #tpu.memory_space<vmem>>, vector<1x1x8xf32>
    %53 = vector.shape_cast %52 : vector<1x1x8xf32> to vector<1x8xf32>
    %54 = vector.broadcast %53 : vector<1x8xf32> to vector<8x8xf32>
    %55 = arith.addf %51, %54 : vector<8x8xf32>
    %56 = arith.truncf %55 : vector<8x8xf32> to vector<8x8xbf16>
    %c0_36 = arith.constant 0 : index
    %c0_37 = arith.constant 0 : index
    %c0_38 = arith.constant 0 : index
    %c0_39 = arith.constant 0 : index
    %57 = vector.load %arg12[%c0_36, %c0_37, %c0_38, %c0_39] : memref<1x4x8x8xbf16, #tpu.memory_space<vmem>>, vector<1x1x8x8xbf16>
    %58 = vector.shape_cast %57 : vector<1x1x8x8xbf16> to vector<8x8xbf16>
    %59 = vector.shape_cast %56 : vector<8x8xbf16> to vector<1x1x8x8xbf16>
    tpu.vector_store %arg12[%c0_36, %c0_37, %c0_38, %c0_39], %59 {strides = array<i32>} : memref<1x4x8x8xbf16, #tpu.memory_space<vmem>>, vector<1x1x8x8xbf16>,
    %c1_40 = arith.constant 1 : index
    %c0_41 = arith.constant 0 : index
    %c0_42 = arith.constant 0 : index
    %60 = vector.load %arg4[%c1_40, %c0_41, %c0_42] : memref<4x32x8xbf16, #tpu.memory_space<vmem>>, vector<1x32x8xbf16>
    %61 = vector.shape_cast %60 : vector<1x32x8xbf16> to vector<32x8xbf16>
    %cst_43 = arith.constant dense<0.000000e+00> : vector<8x8xf32>
    %62 = tpu.matmul %26, %61, %cst_43 {dimension_numbers = #tpu.dot_dimension_numbers<[1], [0], [0], [1], [0, 0, 1, 1], [], []>} : vector<8x32xbf16>, vector<32x8xbf16>, vector<8x8xf32> -> vector<8x8xf32>
    %c1_44 = arith.constant 1 : index
    %c0_45 = arith.constant 0 : index
    %c0_46 = arith.constant 0 : index
    %63 = vector.load %arg5[%c1_44, %c0_45, %c0_46] : memref<4x1x8xf32, #tpu.memory_space<vmem>>, vector<1x1x8xf32>
    %64 = vector.shape_cast %63 : vector<1x1x8xf32> to vector<1x8xf32>
    %65 = vector.broadcast %64 : vector<1x8xf32> to vector<8x8xf32>
    %66 = arith.addf %62, %65 : vector<8x8xf32>
    %67 = arith.truncf %66 : vector<8x8xf32> to vector<8x8xbf16>
    %c0_47 = arith.constant 0 : index
    %c1_48 = arith.constant 1 : index
    %c0_49 = arith.constant 0 : index
    %c0_50 = arith.constant 0 : index
    %68 = vector.load %arg10[%c0_47, %c1_48, %c0_49, %c0_50] : memref<1x4x8x8xbf16, #tpu.memory_space<vmem>>, vector<1x1x8x8xbf16>
    %69 = vector.shape_cast %68 : vector<1x1x8x8xbf16> to vector<8x8xbf16>
    %70 = vector.shape_cast %67 : vector<8x8xbf16> to vector<1x1x8x8xbf16>
    tpu.vector_store %arg10[%c0_47, %c1_48, %c0_49, %c0_50], %70 {strides = array<i32>} : memref<1x4x8x8xbf16, #tpu.memory_space<vmem>>, vector<1x1x8x8xbf16>,
    %c1_51 = arith.constant 1 : index
    %c0_52 = arith.constant 0 : index
    %c0_53 = arith.constant 0 : index
    %71 = vector.load %arg6[%c1_51, %c0_52, %c0_53] : memref<4x32x8xbf16, #tpu.memory_space<vmem>>, vector<1x32x8xbf16>
    %72 = vector.shape_cast %71 : vector<1x32x8xbf16> to vector<32x8xbf16>
    %cst_54 = arith.constant dense<0.000000e+00> : vector<8x8xf32>
    %73 = tpu.matmul %26, %72, %cst_54 {dimension_numbers = #tpu.dot_dimension_numbers<[1], [0], [0], [1], [0, 0, 1, 1], [], []>} : vector<8x32xbf16>, vector<32x8xbf16>, vector<8x8xf32> -> vector<8x8xf32>
    %c1_55 = arith.constant 1 : index
    %c0_56 = arith.constant 0 : index
    %c0_57 = arith.constant 0 : index
    %74 = vector.load %arg7[%c1_55, %c0_56, %c0_57] : memref<4x1x8xf32, #tpu.memory_space<vmem>>, vector<1x1x8xf32>
    %75 = vector.shape_cast %74 : vector<1x1x8xf32> to vector<1x8xf32>
    %76 = vector.broadcast %75 : vector<1x8xf32> to vector<8x8xf32>
    %77 = arith.addf %73, %76 : vector<8x8xf32>
    %78 = arith.truncf %77 : vector<8x8xf32> to vector<8x8xbf16>
    %c0_58 = arith.constant 0 : index
    %c1_59 = arith.constant 1 : index
    %c0_60 = arith.constant 0 : index
    %c0_61 = arith.constant 0 : index
    %79 = vector.load %arg11[%c0_58, %c1_59, %c0_60, %c0_61] : memref<1x4x8x8xbf16, #tpu.memory_space<vmem>>, vector<1x1x8x8xbf16>
    %80 = vector.shape_cast %79 : vector<1x1x8x8xbf16> to vector<8x8xbf16>
    %81 = vector.shape_cast %78 : vector<8x8xbf16> to vector<1x1x8x8xbf16>
    tpu.vector_store %arg11[%c0_58, %c1_59, %c0_60, %c0_61], %81 {strides = array<i32>} : memref<1x4x8x8xbf16, #tpu.memory_space<vmem>>, vector<1x1x8x8xbf16>,
    %c1_62 = arith.constant 1 : index
    %c0_63 = arith.constant 0 : index
    %c0_64 = arith.constant 0 : index
    %82 = vector.load %arg8[%c1_62, %c0_63, %c0_64] : memref<4x32x8xbf16, #tpu.memory_space<vmem>>, vector<1x32x8xbf16>
    %83 = vector.shape_cast %82 : vector<1x32x8xbf16> to vector<32x8xbf16>
    %cst_65 = arith.constant dense<0.000000e+00> : vector<8x8xf32>
    %84 = tpu.matmul %26, %83, %cst_65 {dimension_numbers = #tpu.dot_dimension_numbers<[1], [0], [0], [1], [0, 0, 1, 1], [], []>} : vector<8x32xbf16>, vector<32x8xbf16>, vector<8x8xf32> -> vector<8x8xf32>
    %c1_66 = arith.constant 1 : index
    %c0_67 = arith.constant 0 : index
    %c0_68 = arith.constant 0 : index
    %85 = vector.load %arg9[%c1_66, %c0_67, %c0_68] : memref<4x1x8xf32, #tpu.memory_space<vmem>>, vector<1x1x8xf32>
    %86 = vector.shape_cast %85 : vector<1x1x8xf32> to vector<1x8xf32>
    %87 = vector.broadcast %86 : vector<1x8xf32> to vector<8x8xf32>
    %88 = arith.addf %84, %87 : vector<8x8xf32>
    %89 = arith.truncf %88 : vector<8x8xf32> to vector<8x8xbf16>
    %c0_69 = arith.constant 0 : index
    %c1_70 = arith.constant 1 : index
    %c0_71 = arith.constant 0 : index
    %c0_72 = arith.constant 0 : index
    %90 = vector.load %arg12[%c0_69, %c1_70, %c0_71, %c0_72] : memref<1x4x8x8xbf16, #tpu.memory_space<vmem>>, vector<1x1x8x8xbf16>
    %91 = vector.shape_cast %90 : vector<1x1x8x8xbf16> to vector<8x8xbf16>
    %92 = vector.shape_cast %89 : vector<8x8xbf16> to vector<1x1x8x8xbf16>
    tpu.vector_store %arg12[%c0_69, %c1_70, %c0_71, %c0_72], %92 {strides = array<i32>} : memref<1x4x8x8xbf16, #tpu.memory_space<vmem>>, vector<1x1x8x8xbf16>,
    %c2 = arith.constant 2 : index
    %c0_73 = arith.constant 0 : index
    %c0_74 = arith.constant 0 : index
    %93 = vector.load %arg4[%c2, %c0_73, %c0_74] : memref<4x32x8xbf16, #tpu.memory_space<vmem>>, vector<1x32x8xbf16>
    %94 = vector.shape_cast %93 : vector<1x32x8xbf16> to vector<32x8xbf16>
    %cst_75 = arith.constant dense<0.000000e+00> : vector<8x8xf32>
    %95 = tpu.matmul %26, %94, %cst_75 {dimension_numbers = #tpu.dot_dimension_numbers<[1], [0], [0], [1], [0, 0, 1, 1], [], []>} : vector<8x32xbf16>, vector<32x8xbf16>, vector<8x8xf32> -> vector<8x8xf32>
    %c2_76 = arith.constant 2 : index
    %c0_77 = arith.constant 0 : index
    %c0_78 = arith.constant 0 : index
    %96 = vector.load %arg5[%c2_76, %c0_77, %c0_78] : memref<4x1x8xf32, #tpu.memory_space<vmem>>, vector<1x1x8xf32>
    %97 = vector.shape_cast %96 : vector<1x1x8xf32> to vector<1x8xf32>
    %98 = vector.broadcast %97 : vector<1x8xf32> to vector<8x8xf32>
    %99 = arith.addf %95, %98 : vector<8x8xf32>
    %100 = arith.truncf %99 : vector<8x8xf32> to vector<8x8xbf16>
    %c0_79 = arith.constant 0 : index
    %c2_80 = arith.constant 2 : index
    %c0_81 = arith.constant 0 : index
    %c0_82 = arith.constant 0 : index
    %101 = vector.load %arg10[%c0_79, %c2_80, %c0_81, %c0_82] : memref<1x4x8x8xbf16, #tpu.memory_space<vmem>>, vector<1x1x8x8xbf16>
    %102 = vector.shape_cast %101 : vector<1x1x8x8xbf16> to vector<8x8xbf16>
    %103 = vector.shape_cast %100 : vector<8x8xbf16> to vector<1x1x8x8xbf16>
    tpu.vector_store %arg10[%c0_79, %c2_80, %c0_81, %c0_82], %103 {strides = array<i32>} : memref<1x4x8x8xbf16, #tpu.memory_space<vmem>>, vector<1x1x8x8xbf16>,
    %c2_83 = arith.constant 2 : index
    %c0_84 = arith.constant 0 : index
    %c0_85 = arith.constant 0 : index
    %104 = vector.load %arg6[%c2_83, %c0_84, %c0_85] : memref<4x32x8xbf16, #tpu.memory_space<vmem>>, vector<1x32x8xbf16>
    %105 = vector.shape_cast %104 : vector<1x32x8xbf16> to vector<32x8xbf16>
    %cst_86 = arith.constant dense<0.000000e+00> : vector<8x8xf32>
    %106 = tpu.matmul %26, %105, %cst_86 {dimension_numbers = #tpu.dot_dimension_numbers<[1], [0], [0], [1], [0, 0, 1, 1], [], []>} : vector<8x32xbf16>, vector<32x8xbf16>, vector<8x8xf32> -> vector<8x8xf32>
    %c2_87 = arith.constant 2 : index
    %c0_88 = arith.constant 0 : index
    %c0_89 = arith.constant 0 : index
    %107 = vector.load %arg7[%c2_87, %c0_88, %c0_89] : memref<4x1x8xf32, #tpu.memory_space<vmem>>, vector<1x1x8xf32>
    %108 = vector.shape_cast %107 : vector<1x1x8xf32> to vector<1x8xf32>
    %109 = vector.broadcast %108 : vector<1x8xf32> to vector<8x8xf32>
    %110 = arith.addf %106, %109 : vector<8x8xf32>
    %111 = arith.truncf %110 : vector<8x8xf32> to vector<8x8xbf16>
    %c0_90 = arith.constant 0 : index
    %c2_91 = arith.constant 2 : index
    %c0_92 = arith.constant 0 : index
    %c0_93 = arith.constant 0 : index
    %112 = vector.load %arg11[%c0_90, %c2_91, %c0_92, %c0_93] : memref<1x4x8x8xbf16, #tpu.memory_space<vmem>>, vector<1x1x8x8xbf16>
    %113 = vector.shape_cast %112 : vector<1x1x8x8xbf16> to vector<8x8xbf16>
    %114 = vector.shape_cast %111 : vector<8x8xbf16> to vector<1x1x8x8xbf16>
    tpu.vector_store %arg11[%c0_90, %c2_91, %c0_92, %c0_93], %114 {strides = array<i32>} : memref<1x4x8x8xbf16, #tpu.memory_space<vmem>>, vector<1x1x8x8xbf16>,
    %c2_94 = arith.constant 2 : index
    %c0_95 = arith.constant 0 : index
    %c0_96 = arith.constant 0 : index
    %115 = vector.load %arg8[%c2_94, %c0_95, %c0_96] : memref<4x32x8xbf16, #tpu.memory_space<vmem>>, vector<1x32x8xbf16>
    %116 = vector.shape_cast %115 : vector<1x32x8xbf16> to vector<32x8xbf16>
    %cst_97 = arith.constant dense<0.000000e+00> : vector<8x8xf32>
    %117 = tpu.matmul %26, %116, %cst_97 {dimension_numbers = #tpu.dot_dimension_numbers<[1], [0], [0], [1], [0, 0, 1, 1], [], []>} : vector<8x32xbf16>, vector<32x8xbf16>, vector<8x8xf32> -> vector<8x8xf32>
    %c2_98 = arith.constant 2 : index
    %c0_99 = arith.constant 0 : index
    %c0_100 = arith.constant 0 : index
    %118 = vector.load %arg9[%c2_98, %c0_99, %c0_100] : memref<4x1x8xf32, #tpu.memory_space<vmem>>, vector<1x1x8xf32>
    %119 = vector.shape_cast %118 : vector<1x1x8xf32> to vector<1x8xf32>
    %120 = vector.broadcast %119 : vector<1x8xf32> to vector<8x8xf32>
    %121 = arith.addf %117, %120 : vector<8x8xf32>
    %122 = arith.truncf %121 : vector<8x8xf32> to vector<8x8xbf16>
    %c0_101 = arith.constant 0 : index
    %c2_102 = arith.constant 2 : index
    %c0_103 = arith.constant 0 : index
    %c0_104 = arith.constant 0 : index
    %123 = vector.load %arg12[%c0_101, %c2_102, %c0_103, %c0_104] : memref<1x4x8x8xbf16, #tpu.memory_space<vmem>>, vector<1x1x8x8xbf16>
    %124 = vector.shape_cast %123 : vector<1x1x8x8xbf16> to vector<8x8xbf16>
    %125 = vector.shape_cast %122 : vector<8x8xbf16> to vector<1x1x8x8xbf16>
    tpu.vector_store %arg12[%c0_101, %c2_102, %c0_103, %c0_104], %125 {strides = array<i32>} : memref<1x4x8x8xbf16, #tpu.memory_space<vmem>>, vector<1x1x8x8xbf16>,
    %c3 = arith.constant 3 : index
    %c0_105 = arith.constant 0 : index
    %c0_106 = arith.constant 0 : index
    %126 = vector.load %arg4[%c3, %c0_105, %c0_106] : memref<4x32x8xbf16, #tpu.memory_space<vmem>>, vector<1x32x8xbf16>
    %127 = vector.shape_cast %126 : vector<1x32x8xbf16> to vector<32x8xbf16>
    %cst_107 = arith.constant dense<0.000000e+00> : vector<8x8xf32>
    %128 = tpu.matmul %26, %127, %cst_107 {dimension_numbers = #tpu.dot_dimension_numbers<[1], [0], [0], [1], [0, 0, 1, 1], [], []>} : vector<8x32xbf16>, vector<32x8xbf16>, vector<8x8xf32> -> vector<8x8xf32>
    %c3_108 = arith.constant 3 : index
    %c0_109 = arith.constant 0 : index
    %c0_110 = arith.constant 0 : index
    %129 = vector.load %arg5[%c3_108, %c0_109, %c0_110] : memref<4x1x8xf32, #tpu.memory_space<vmem>>, vector<1x1x8xf32>
    %130 = vector.shape_cast %129 : vector<1x1x8xf32> to vector<1x8xf32>
    %131 = vector.broadcast %130 : vector<1x8xf32> to vector<8x8xf32>
    %132 = arith.addf %128, %131 : vector<8x8xf32>
    %133 = arith.truncf %132 : vector<8x8xf32> to vector<8x8xbf16>
    %c0_111 = arith.constant 0 : index
    %c3_112 = arith.constant 3 : index
    %c0_113 = arith.constant 0 : index
    %c0_114 = arith.constant 0 : index
    %134 = vector.load %arg10[%c0_111, %c3_112, %c0_113, %c0_114] : memref<1x4x8x8xbf16, #tpu.memory_space<vmem>>, vector<1x1x8x8xbf16>
    %135 = vector.shape_cast %134 : vector<1x1x8x8xbf16> to vector<8x8xbf16>
    %136 = vector.shape_cast %133 : vector<8x8xbf16> to vector<1x1x8x8xbf16>
    tpu.vector_store %arg10[%c0_111, %c3_112, %c0_113, %c0_114], %136 {strides = array<i32>} : memref<1x4x8x8xbf16, #tpu.memory_space<vmem>>, vector<1x1x8x8xbf16>,
    %c3_115 = arith.constant 3 : index
    %c0_116 = arith.constant 0 : index
    %c0_117 = arith.constant 0 : index
    %137 = vector.load %arg6[%c3_115, %c0_116, %c0_117] : memref<4x32x8xbf16, #tpu.memory_space<vmem>>, vector<1x32x8xbf16>
    %138 = vector.shape_cast %137 : vector<1x32x8xbf16> to vector<32x8xbf16>
    %cst_118 = arith.constant dense<0.000000e+00> : vector<8x8xf32>
    %139 = tpu.matmul %26, %138, %cst_118 {dimension_numbers = #tpu.dot_dimension_numbers<[1], [0], [0], [1], [0, 0, 1, 1], [], []>} : vector<8x32xbf16>, vector<32x8xbf16>, vector<8x8xf32> -> vector<8x8xf32>
    %c3_119 = arith.constant 3 : index
    %c0_120 = arith.constant 0 : index
    %c0_121 = arith.constant 0 : index
    %140 = vector.load %arg7[%c3_119, %c0_120, %c0_121] : memref<4x1x8xf32, #tpu.memory_space<vmem>>, vector<1x1x8xf32>
    %141 = vector.shape_cast %140 : vector<1x1x8xf32> to vector<1x8xf32>
    %142 = vector.broadcast %141 : vector<1x8xf32> to vector<8x8xf32>
    %143 = arith.addf %139, %142 : vector<8x8xf32>
    %144 = arith.truncf %143 : vector<8x8xf32> to vector<8x8xbf16>
    %c0_122 = arith.constant 0 : index
    %c3_123 = arith.constant 3 : index
    %c0_124 = arith.constant 0 : index
    %c0_125 = arith.constant 0 : index
    %145 = vector.load %arg11[%c0_122, %c3_123, %c0_124, %c0_125] : memref<1x4x8x8xbf16, #tpu.memory_space<vmem>>, vector<1x1x8x8xbf16>
    %146 = vector.shape_cast %145 : vector<1x1x8x8xbf16> to vector<8x8xbf16>
    %147 = vector.shape_cast %144 : vector<8x8xbf16> to vector<1x1x8x8xbf16>
    tpu.vector_store %arg11[%c0_122, %c3_123, %c0_124, %c0_125], %147 {strides = array<i32>} : memref<1x4x8x8xbf16, #tpu.memory_space<vmem>>, vector<1x1x8x8xbf16>,
    %c3_126 = arith.constant 3 : index
    %c0_127 = arith.constant 0 : index
    %c0_128 = arith.constant 0 : index
    %148 = vector.load %arg8[%c3_126, %c0_127, %c0_128] : memref<4x32x8xbf16, #tpu.memory_space<vmem>>, vector<1x32x8xbf16>
    %149 = vector.shape_cast %148 : vector<1x32x8xbf16> to vector<32x8xbf16>
    %cst_129 = arith.constant dense<0.000000e+00> : vector<8x8xf32>
    %150 = tpu.matmul %26, %149, %cst_129 {dimension_numbers = #tpu.dot_dimension_numbers<[1], [0], [0], [1], [0, 0, 1, 1], [], []>} : vector<8x32xbf16>, vector<32x8xbf16>, vector<8x8xf32> -> vector<8x8xf32>
    %c3_130 = arith.constant 3 : index
    %c0_131 = arith.constant 0 : index
    %c0_132 = arith.constant 0 : index
    %151 = vector.load %arg9[%c3_130, %c0_131, %c0_132] : memref<4x1x8xf32, #tpu.memory_space<vmem>>, vector<1x1x8xf32>
    %152 = vector.shape_cast %151 : vector<1x1x8xf32> to vector<1x8xf32>
    %153 = vector.broadcast %152 : vector<1x8xf32> to vector<8x8xf32>
    %154 = arith.addf %150, %153 : vector<8x8xf32>
    %155 = arith.truncf %154 : vector<8x8xf32> to vector<8x8xbf16>
    %c0_133 = arith.constant 0 : index
    %c3_134 = arith.constant 3 : index
    %c0_135 = arith.constant 0 : index
    %c0_136 = arith.constant 0 : index
    %156 = vector.load %arg12[%c0_133, %c3_134, %c0_135, %c0_136] : memref<1x4x8x8xbf16, #tpu.memory_space<vmem>>, vector<1x1x8x8xbf16>
    %157 = vector.shape_cast %156 : vector<1x1x8x8xbf16> to vector<8x8xbf16>
    %158 = vector.shape_cast %155 : vector<8x8xbf16> to vector<1x1x8x8xbf16>
    tpu.vector_store %arg12[%c0_133, %c3_134, %c0_135, %c0_136], %158 {strides = array<i32>} : memref<1x4x8x8xbf16, #tpu.memory_space<vmem>>, vector<1x1x8x8xbf16>,
    return
  }
  func.func @transform_0(%arg0: i32, %arg1: i32) -> i32 {
    %c0_i32 = arith.constant 0 : i32
    %c0_i32_0 = arith.constant 0 : i32
    return %c0_i32 : i32
  }
  func.func @transform_1(%arg0: i32, %arg1: i32) -> (i32, i32, i32) {
    %c0_i32 = arith.constant 0 : i32
    %c0_i32_0 = arith.constant 0 : i32
    return %arg0, %arg1, %c0_i32 : i32, i32, i32
  }
  func.func @transform_2(%arg0: i32, %arg1: i32) -> (i32, i32, i32) {
    %c0_i32 = arith.constant 0 : i32
    %c0_i32_0 = arith.constant 0 : i32
    %c0_i32_1 = arith.constant 0 : i32
    %c0_i32_2 = arith.constant 0 : i32
    return %c0_i32, %c0_i32_0, %c0_i32_1 : i32, i32, i32
  }
  func.func @transform_3(%arg0: i32, %arg1: i32) -> (i32, i32, i32) {
    %c0_i32 = arith.constant 0 : i32
    %c0_i32_0 = arith.constant 0 : i32
    %c0_i32_1 = arith.constant 0 : i32
    %c0_i32_2 = arith.constant 0 : i32
    return %c0_i32, %c0_i32_0, %c0_i32_1 : i32, i32, i32
  }
  func.func @transform_4(%arg0: i32, %arg1: i32) -> (i32, i32, i32) {
    %c0_i32 = arith.constant 0 : i32
    %c0_i32_0 = arith.constant 0 : i32
    %c0_i32_1 = arith.constant 0 : i32
    %c0_i32_2 = arith.constant 0 : i32
    return %c0_i32, %c0_i32_0, %c0_i32_1 : i32, i32, i32
  }
  func.func @transform_5(%arg0: i32, %arg1: i32) -> (i32, i32, i32) {
    %c0_i32 = arith.constant 0 : i32
    %c0_i32_0 = arith.constant 0 : i32
    %c0_i32_1 = arith.constant 0 : i32
    %c0_i32_2 = arith.constant 0 : i32
    return %c0_i32, %c0_i32_0, %c0_i32_1 : i32, i32, i32
  }
  func.func @transform_6(%arg0: i32, %arg1: i32) -> (i32, i32, i32) {
    %c0_i32 = arith.constant 0 : i32
    %c0_i32_0 = arith.constant 0 : i32
    %c0_i32_1 = arith.constant 0 : i32
    %c0_i32_2 = arith.constant 0 : i32
    return %c0_i32, %c0_i32_0, %c0_i32_1 : i32, i32, i32
  }
  func.func @transform_7(%arg0: i32, %arg1: i32) -> (i32, i32, i32) {
    %c0_i32 = arith.constant 0 : i32
    %c0_i32_0 = arith.constant 0 : i32
    %c0_i32_1 = arith.constant 0 : i32
    %c0_i32_2 = arith.constant 0 : i32
    return %c0_i32, %c0_i32_0, %c0_i32_1 : i32, i32, i32
  }
  func.func @transform_8(%arg0: i32, %arg1: i32) -> (i32, i32, i32, i32) {
    %c0_i32 = arith.constant 0 : i32
    %c0_i32_0 = arith.constant 0 : i32
    %c0_i32_1 = arith.constant 0 : i32
    return %arg0, %c0_i32, %arg1, %c0_i32_0 : i32, i32, i32, i32
  }
  func.func @transform_9(%arg0: i32, %arg1: i32) -> (i32, i32, i32, i32) {
    %c0_i32 = arith.constant 0 : i32
    %c0_i32_0 = arith.constant 0 : i32
    %c0_i32_1 = arith.constant 0 : i32
    return %arg0, %c0_i32, %arg1, %c0_i32_0 : i32, i32, i32, i32
  }
  func.func @transform_10(%arg0: i32, %arg1: i32) -> (i32, i32, i32, i32) {
    %c0_i32 = arith.constant 0 : i32
    %c0_i32_0 = arith.constant 0 : i32
    %c0_i32_1 = arith.constant 0 : i32
    return %arg0, %c0_i32, %arg1, %c0_i32_0 : i32, i32, i32, i32
  }
}

module attributes {stable_mosaic.version = 11 : i64} {
  func.func @mha_core_kernel(%arg0: i32, %arg1: i32, %arg2: memref<1x4x8x8xbf16, #tpu.memory_space<vmem>>, %arg3: memref<1x4x8x8xbf16, #tpu.memory_space<vmem>>, %arg4: memref<1x4x8x8xbf16, #tpu.memory_space<vmem>>, %arg5: memref<8x8xbf16, #tpu.memory_space<vmem>>, %arg6: memref<4x8x32xbf16, #tpu.memory_space<vmem>>, %arg7: memref<1x32xf32, #tpu.memory_space<vmem>>, %arg8: memref<1x8x32xf32, #tpu.memory_space<vmem>>, %arg9: memref<1x8x32xf32, #tpu.memory_space<vmem>>) attributes {dimension_semantics = [#tpu.dimension_semantics<parallel>, #tpu.dimension_semantics<parallel>], iteration_bounds = array<i64: 2, 1>, scalar_prefetch = 0 : i64, scratch_operands = 0 : i64, tpu.core_type = #tpu.core_type<tc>, window_params = [{transform_indices = @transform_0, window_bounds = array<i64: 1, 4, 8, 8>}, {transform_indices = @transform_1, window_bounds = array<i64: 1, 4, 8, 8>}, {transform_indices = @transform_2, window_bounds = array<i64: 1, 4, 8, 8>}, {transform_indices = @transform_3, window_bounds = array<i64: 8, 8>}, {pipeline_mode = #tpu.pipeline_mode<synchronous>, transform_indices = @transform_4, window_bounds = array<i64: 4, 8, 32>}, {pipeline_mode = #tpu.pipeline_mode<synchronous>, transform_indices = @transform_5, window_bounds = array<i64: 1, 32>}, {transform_indices = @transform_6, window_bounds = array<i64: 1, 8, 32>}, {transform_indices = @transform_7, window_bounds = array<i64: 1, 8, 32>}]} {
    %c0 = arith.constant 0 : index
    %c0_0 = arith.constant 0 : index
    %0 = vector.load %arg5[%c0, %c0_0] : memref<8x8xbf16, #tpu.memory_space<vmem>>, vector<8x8xbf16>
    %1 = arith.extf %0 : vector<8x8xbf16> to vector<8x8xf32>
    %c0_1 = arith.constant 0 : index
    %c0_2 = arith.constant 0 : index
    %c0_3 = arith.constant 0 : index
    %2 = vector.load %arg8[%c0_1, %c0_2, %c0_3] : memref<1x8x32xf32, #tpu.memory_space<vmem>>, vector<1x8x32xf32>
    %3 = vector.shape_cast %2 : vector<1x8x32xf32> to vector<8x32xf32>
    %c0_4 = arith.constant 0 : index
    %c0_5 = arith.constant 0 : index
    %4 = vector.load %arg7[%c0_4, %c0_5] : memref<1x32xf32, #tpu.memory_space<vmem>>, vector<1x32xf32>
    %5 = vector.broadcast %4 : vector<1x32xf32> to vector<8x32xf32>
    %6 = arith.addf %3, %5 : vector<8x32xf32>
    %c0_6 = arith.constant 0 : index
    %c0_7 = arith.constant 0 : index
    %c0_8 = arith.constant 0 : index
    %c0_9 = arith.constant 0 : index
    %7 = vector.load %arg2[%c0_6, %c0_7, %c0_8, %c0_9] : memref<1x4x8x8xbf16, #tpu.memory_space<vmem>>, vector<1x1x8x8xbf16>
    %8 = vector.shape_cast %7 : vector<1x1x8x8xbf16> to vector<8x8xbf16>
    %c0_10 = arith.constant 0 : index
    %c0_11 = arith.constant 0 : index
    %c0_12 = arith.constant 0 : index
    %c0_13 = arith.constant 0 : index
    %9 = vector.load %arg3[%c0_10, %c0_11, %c0_12, %c0_13] : memref<1x4x8x8xbf16, #tpu.memory_space<vmem>>, vector<1x1x8x8xbf16>
    %10 = vector.shape_cast %9 : vector<1x1x8x8xbf16> to vector<8x8xbf16>
    %cst = arith.constant dense<0.000000e+00> : vector<8x8xf32>
    %11 = tpu.matmul %8, %10, %cst {dimension_numbers = #tpu.dot_dimension_numbers<[1], [1], [0], [0], [0, 0, 1, 0], [], []>} : vector<8x8xbf16>, vector<8x8xbf16>, vector<8x8xf32> -> vector<8x8xf32>
    %12 = arith.addf %11, %1 : vector<8x8xf32>
    %cst_14 = arith.constant dense<0xFF800000> : vector<8xf32>
    %13 = vector.multi_reduction <maximumf>, %12, %cst_14 [1] : vector<8x8xf32> to vector<8xf32>
    %14 = vector.shape_cast %13 : vector<8xf32> to vector<8x1xf32>
    %15 = vector.broadcast %14 : vector<8x1xf32> to vector<8x8xf32>
    %16 = arith.subf %12, %15 : vector<8x8xf32>
    %17 = math.exp %16 : vector<8x8xf32>
    %cst_15 = arith.constant dense<0.000000e+00> : vector<8xf32>
    %18 = vector.multi_reduction <add>, %17, %cst_15 [1] : vector<8x8xf32> to vector<8xf32>
    %19 = vector.shape_cast %18 : vector<8xf32> to vector<8x1xf32>
    %20 = tpu.reciprocal %19 {approx = true} : vector<8x1xf32> -> vector<8x1xf32>
    %21 = vector.broadcast %20 : vector<8x1xf32> to vector<8x8xf32>
    %22 = arith.mulf %17, %21 : vector<8x8xf32>
    %23 = arith.truncf %22 : vector<8x8xf32> to vector<8x8xbf16>
    %c0_16 = arith.constant 0 : index
    %c0_17 = arith.constant 0 : index
    %c0_18 = arith.constant 0 : index
    %c0_19 = arith.constant 0 : index
    %24 = vector.load %arg4[%c0_16, %c0_17, %c0_18, %c0_19] : memref<1x4x8x8xbf16, #tpu.memory_space<vmem>>, vector<1x1x8x8xbf16>
    %25 = vector.shape_cast %24 : vector<1x1x8x8xbf16> to vector<8x8xbf16>
    %cst_20 = arith.constant dense<0.000000e+00> : vector<8x8xf32>
    %26 = tpu.matmul %23, %25, %cst_20 {dimension_numbers = #tpu.dot_dimension_numbers<[1], [0], [0], [1], [0, 0, 1, 1], [], []>} : vector<8x8xbf16>, vector<8x8xbf16>, vector<8x8xf32> -> vector<8x8xf32>
    %27 = arith.truncf %26 : vector<8x8xf32> to vector<8x8xbf16>
    %c0_21 = arith.constant 0 : index
    %c0_22 = arith.constant 0 : index
    %c0_23 = arith.constant 0 : index
    %28 = vector.load %arg6[%c0_21, %c0_22, %c0_23] : memref<4x8x32xbf16, #tpu.memory_space<vmem>>, vector<1x8x32xbf16>
    %29 = vector.shape_cast %28 : vector<1x8x32xbf16> to vector<8x32xbf16>
    %cst_24 = arith.constant dense<0.000000e+00> : vector<8x32xf32>
    %30 = tpu.matmul %27, %29, %cst_24 {dimension_numbers = #tpu.dot_dimension_numbers<[1], [0], [0], [1], [0, 0, 1, 1], [], []>} : vector<8x8xbf16>, vector<8x32xbf16>, vector<8x32xf32> -> vector<8x32xf32>
    %31 = arith.addf %6, %30 : vector<8x32xf32>
    %c0_25 = arith.constant 0 : index
    %c1 = arith.constant 1 : index
    %c0_26 = arith.constant 0 : index
    %c0_27 = arith.constant 0 : index
    %32 = vector.load %arg2[%c0_25, %c1, %c0_26, %c0_27] : memref<1x4x8x8xbf16, #tpu.memory_space<vmem>>, vector<1x1x8x8xbf16>
    %33 = vector.shape_cast %32 : vector<1x1x8x8xbf16> to vector<8x8xbf16>
    %c0_28 = arith.constant 0 : index
    %c1_29 = arith.constant 1 : index
    %c0_30 = arith.constant 0 : index
    %c0_31 = arith.constant 0 : index
    %34 = vector.load %arg3[%c0_28, %c1_29, %c0_30, %c0_31] : memref<1x4x8x8xbf16, #tpu.memory_space<vmem>>, vector<1x1x8x8xbf16>
    %35 = vector.shape_cast %34 : vector<1x1x8x8xbf16> to vector<8x8xbf16>
    %cst_32 = arith.constant dense<0.000000e+00> : vector<8x8xf32>
    %36 = tpu.matmul %33, %35, %cst_32 {dimension_numbers = #tpu.dot_dimension_numbers<[1], [1], [0], [0], [0, 0, 1, 0], [], []>} : vector<8x8xbf16>, vector<8x8xbf16>, vector<8x8xf32> -> vector<8x8xf32>
    %37 = arith.addf %36, %1 : vector<8x8xf32>
    %cst_33 = arith.constant dense<0xFF800000> : vector<8xf32>
    %38 = vector.multi_reduction <maximumf>, %37, %cst_33 [1] : vector<8x8xf32> to vector<8xf32>
    %39 = vector.shape_cast %38 : vector<8xf32> to vector<8x1xf32>
    %40 = vector.broadcast %39 : vector<8x1xf32> to vector<8x8xf32>
    %41 = arith.subf %37, %40 : vector<8x8xf32>
    %42 = math.exp %41 : vector<8x8xf32>
    %cst_34 = arith.constant dense<0.000000e+00> : vector<8xf32>
    %43 = vector.multi_reduction <add>, %42, %cst_34 [1] : vector<8x8xf32> to vector<8xf32>
    %44 = vector.shape_cast %43 : vector<8xf32> to vector<8x1xf32>
    %45 = tpu.reciprocal %44 {approx = true} : vector<8x1xf32> -> vector<8x1xf32>
    %46 = vector.broadcast %45 : vector<8x1xf32> to vector<8x8xf32>
    %47 = arith.mulf %42, %46 : vector<8x8xf32>
    %48 = arith.truncf %47 : vector<8x8xf32> to vector<8x8xbf16>
    %c0_35 = arith.constant 0 : index
    %c1_36 = arith.constant 1 : index
    %c0_37 = arith.constant 0 : index
    %c0_38 = arith.constant 0 : index
    %49 = vector.load %arg4[%c0_35, %c1_36, %c0_37, %c0_38] : memref<1x4x8x8xbf16, #tpu.memory_space<vmem>>, vector<1x1x8x8xbf16>
    %50 = vector.shape_cast %49 : vector<1x1x8x8xbf16> to vector<8x8xbf16>
    %cst_39 = arith.constant dense<0.000000e+00> : vector<8x8xf32>
    %51 = tpu.matmul %48, %50, %cst_39 {dimension_numbers = #tpu.dot_dimension_numbers<[1], [0], [0], [1], [0, 0, 1, 1], [], []>} : vector<8x8xbf16>, vector<8x8xbf16>, vector<8x8xf32> -> vector<8x8xf32>
    %52 = arith.truncf %51 : vector<8x8xf32> to vector<8x8xbf16>
    %c1_40 = arith.constant 1 : index
    %c0_41 = arith.constant 0 : index
    %c0_42 = arith.constant 0 : index
    %53 = vector.load %arg6[%c1_40, %c0_41, %c0_42] : memref<4x8x32xbf16, #tpu.memory_space<vmem>>, vector<1x8x32xbf16>
    %54 = vector.shape_cast %53 : vector<1x8x32xbf16> to vector<8x32xbf16>
    %cst_43 = arith.constant dense<0.000000e+00> : vector<8x32xf32>
    %55 = tpu.matmul %52, %54, %cst_43 {dimension_numbers = #tpu.dot_dimension_numbers<[1], [0], [0], [1], [0, 0, 1, 1], [], []>} : vector<8x8xbf16>, vector<8x32xbf16>, vector<8x32xf32> -> vector<8x32xf32>
    %56 = arith.addf %31, %55 : vector<8x32xf32>
    %c0_44 = arith.constant 0 : index
    %c2 = arith.constant 2 : index
    %c0_45 = arith.constant 0 : index
    %c0_46 = arith.constant 0 : index
    %57 = vector.load %arg2[%c0_44, %c2, %c0_45, %c0_46] : memref<1x4x8x8xbf16, #tpu.memory_space<vmem>>, vector<1x1x8x8xbf16>
    %58 = vector.shape_cast %57 : vector<1x1x8x8xbf16> to vector<8x8xbf16>
    %c0_47 = arith.constant 0 : index
    %c2_48 = arith.constant 2 : index
    %c0_49 = arith.constant 0 : index
    %c0_50 = arith.constant 0 : index
    %59 = vector.load %arg3[%c0_47, %c2_48, %c0_49, %c0_50] : memref<1x4x8x8xbf16, #tpu.memory_space<vmem>>, vector<1x1x8x8xbf16>
    %60 = vector.shape_cast %59 : vector<1x1x8x8xbf16> to vector<8x8xbf16>
    %cst_51 = arith.constant dense<0.000000e+00> : vector<8x8xf32>
    %61 = tpu.matmul %58, %60, %cst_51 {dimension_numbers = #tpu.dot_dimension_numbers<[1], [1], [0], [0], [0, 0, 1, 0], [], []>} : vector<8x8xbf16>, vector<8x8xbf16>, vector<8x8xf32> -> vector<8x8xf32>
    %62 = arith.addf %61, %1 : vector<8x8xf32>
    %cst_52 = arith.constant dense<0xFF800000> : vector<8xf32>
    %63 = vector.multi_reduction <maximumf>, %62, %cst_52 [1] : vector<8x8xf32> to vector<8xf32>
    %64 = vector.shape_cast %63 : vector<8xf32> to vector<8x1xf32>
    %65 = vector.broadcast %64 : vector<8x1xf32> to vector<8x8xf32>
    %66 = arith.subf %62, %65 : vector<8x8xf32>
    %67 = math.exp %66 : vector<8x8xf32>
    %cst_53 = arith.constant dense<0.000000e+00> : vector<8xf32>
    %68 = vector.multi_reduction <add>, %67, %cst_53 [1] : vector<8x8xf32> to vector<8xf32>
    %69 = vector.shape_cast %68 : vector<8xf32> to vector<8x1xf32>
    %70 = tpu.reciprocal %69 {approx = true} : vector<8x1xf32> -> vector<8x1xf32>
    %71 = vector.broadcast %70 : vector<8x1xf32> to vector<8x8xf32>
    %72 = arith.mulf %67, %71 : vector<8x8xf32>
    %73 = arith.truncf %72 : vector<8x8xf32> to vector<8x8xbf16>
    %c0_54 = arith.constant 0 : index
    %c2_55 = arith.constant 2 : index
    %c0_56 = arith.constant 0 : index
    %c0_57 = arith.constant 0 : index
    %74 = vector.load %arg4[%c0_54, %c2_55, %c0_56, %c0_57] : memref<1x4x8x8xbf16, #tpu.memory_space<vmem>>, vector<1x1x8x8xbf16>
    %75 = vector.shape_cast %74 : vector<1x1x8x8xbf16> to vector<8x8xbf16>
    %cst_58 = arith.constant dense<0.000000e+00> : vector<8x8xf32>
    %76 = tpu.matmul %73, %75, %cst_58 {dimension_numbers = #tpu.dot_dimension_numbers<[1], [0], [0], [1], [0, 0, 1, 1], [], []>} : vector<8x8xbf16>, vector<8x8xbf16>, vector<8x8xf32> -> vector<8x8xf32>
    %77 = arith.truncf %76 : vector<8x8xf32> to vector<8x8xbf16>
    %c2_59 = arith.constant 2 : index
    %c0_60 = arith.constant 0 : index
    %c0_61 = arith.constant 0 : index
    %78 = vector.load %arg6[%c2_59, %c0_60, %c0_61] : memref<4x8x32xbf16, #tpu.memory_space<vmem>>, vector<1x8x32xbf16>
    %79 = vector.shape_cast %78 : vector<1x8x32xbf16> to vector<8x32xbf16>
    %cst_62 = arith.constant dense<0.000000e+00> : vector<8x32xf32>
    %80 = tpu.matmul %77, %79, %cst_62 {dimension_numbers = #tpu.dot_dimension_numbers<[1], [0], [0], [1], [0, 0, 1, 1], [], []>} : vector<8x8xbf16>, vector<8x32xbf16>, vector<8x32xf32> -> vector<8x32xf32>
    %81 = arith.addf %56, %80 : vector<8x32xf32>
    %c0_63 = arith.constant 0 : index
    %c3 = arith.constant 3 : index
    %c0_64 = arith.constant 0 : index
    %c0_65 = arith.constant 0 : index
    %82 = vector.load %arg2[%c0_63, %c3, %c0_64, %c0_65] : memref<1x4x8x8xbf16, #tpu.memory_space<vmem>>, vector<1x1x8x8xbf16>
    %83 = vector.shape_cast %82 : vector<1x1x8x8xbf16> to vector<8x8xbf16>
    %c0_66 = arith.constant 0 : index
    %c3_67 = arith.constant 3 : index
    %c0_68 = arith.constant 0 : index
    %c0_69 = arith.constant 0 : index
    %84 = vector.load %arg3[%c0_66, %c3_67, %c0_68, %c0_69] : memref<1x4x8x8xbf16, #tpu.memory_space<vmem>>, vector<1x1x8x8xbf16>
    %85 = vector.shape_cast %84 : vector<1x1x8x8xbf16> to vector<8x8xbf16>
    %cst_70 = arith.constant dense<0.000000e+00> : vector<8x8xf32>
    %86 = tpu.matmul %83, %85, %cst_70 {dimension_numbers = #tpu.dot_dimension_numbers<[1], [1], [0], [0], [0, 0, 1, 0], [], []>} : vector<8x8xbf16>, vector<8x8xbf16>, vector<8x8xf32> -> vector<8x8xf32>
    %87 = arith.addf %86, %1 : vector<8x8xf32>
    %cst_71 = arith.constant dense<0xFF800000> : vector<8xf32>
    %88 = vector.multi_reduction <maximumf>, %87, %cst_71 [1] : vector<8x8xf32> to vector<8xf32>
    %89 = vector.shape_cast %88 : vector<8xf32> to vector<8x1xf32>
    %90 = vector.broadcast %89 : vector<8x1xf32> to vector<8x8xf32>
    %91 = arith.subf %87, %90 : vector<8x8xf32>
    %92 = math.exp %91 : vector<8x8xf32>
    %cst_72 = arith.constant dense<0.000000e+00> : vector<8xf32>
    %93 = vector.multi_reduction <add>, %92, %cst_72 [1] : vector<8x8xf32> to vector<8xf32>
    %94 = vector.shape_cast %93 : vector<8xf32> to vector<8x1xf32>
    %95 = tpu.reciprocal %94 {approx = true} : vector<8x1xf32> -> vector<8x1xf32>
    %96 = vector.broadcast %95 : vector<8x1xf32> to vector<8x8xf32>
    %97 = arith.mulf %92, %96 : vector<8x8xf32>
    %98 = arith.truncf %97 : vector<8x8xf32> to vector<8x8xbf16>
    %c0_73 = arith.constant 0 : index
    %c3_74 = arith.constant 3 : index
    %c0_75 = arith.constant 0 : index
    %c0_76 = arith.constant 0 : index
    %99 = vector.load %arg4[%c0_73, %c3_74, %c0_75, %c0_76] : memref<1x4x8x8xbf16, #tpu.memory_space<vmem>>, vector<1x1x8x8xbf16>
    %100 = vector.shape_cast %99 : vector<1x1x8x8xbf16> to vector<8x8xbf16>
    %cst_77 = arith.constant dense<0.000000e+00> : vector<8x8xf32>
    %101 = tpu.matmul %98, %100, %cst_77 {dimension_numbers = #tpu.dot_dimension_numbers<[1], [0], [0], [1], [0, 0, 1, 1], [], []>} : vector<8x8xbf16>, vector<8x8xbf16>, vector<8x8xf32> -> vector<8x8xf32>
    %102 = arith.truncf %101 : vector<8x8xf32> to vector<8x8xbf16>
    %c3_78 = arith.constant 3 : index
    %c0_79 = arith.constant 0 : index
    %c0_80 = arith.constant 0 : index
    %103 = vector.load %arg6[%c3_78, %c0_79, %c0_80] : memref<4x8x32xbf16, #tpu.memory_space<vmem>>, vector<1x8x32xbf16>
    %104 = vector.shape_cast %103 : vector<1x8x32xbf16> to vector<8x32xbf16>
    %cst_81 = arith.constant dense<0.000000e+00> : vector<8x32xf32>
    %105 = tpu.matmul %102, %104, %cst_81 {dimension_numbers = #tpu.dot_dimension_numbers<[1], [0], [0], [1], [0, 0, 1, 1], [], []>} : vector<8x8xbf16>, vector<8x32xbf16>, vector<8x32xf32> -> vector<8x32xf32>
    %106 = arith.addf %81, %105 : vector<8x32xf32>
    %c0_82 = arith.constant 0 : index
    %c0_83 = arith.constant 0 : index
    %c0_84 = arith.constant 0 : index
    %107 = vector.load %arg9[%c0_82, %c0_83, %c0_84] : memref<1x8x32xf32, #tpu.memory_space<vmem>>, vector<1x8x32xf32>
    %108 = vector.shape_cast %107 : vector<1x8x32xf32> to vector<8x32xf32>
    %109 = vector.shape_cast %106 : vector<8x32xf32> to vector<1x8x32xf32>
    tpu.vector_store %arg9[%c0_82, %c0_83, %c0_84], %109 {strides = array<i32>} : memref<1x8x32xf32, #tpu.memory_space<vmem>>, vector<1x8x32xf32>,
    return
  }
  func.func @transform_0(%arg0: i32, %arg1: i32) -> (i32, i32, i32, i32) {
    %c0_i32 = arith.constant 0 : i32
    %c0_i32_0 = arith.constant 0 : i32
    %c0_i32_1 = arith.constant 0 : i32
    return %arg0, %c0_i32, %arg1, %c0_i32_0 : i32, i32, i32, i32
  }
  func.func @transform_1(%arg0: i32, %arg1: i32) -> (i32, i32, i32, i32) {
    %c0_i32 = arith.constant 0 : i32
    %c0_i32_0 = arith.constant 0 : i32
    %c0_i32_1 = arith.constant 0 : i32
    %c0_i32_2 = arith.constant 0 : i32
    return %arg0, %c0_i32, %c0_i32_0, %c0_i32_1 : i32, i32, i32, i32
  }
  func.func @transform_2(%arg0: i32, %arg1: i32) -> (i32, i32, i32, i32) {
    %c0_i32 = arith.constant 0 : i32
    %c0_i32_0 = arith.constant 0 : i32
    %c0_i32_1 = arith.constant 0 : i32
    %c0_i32_2 = arith.constant 0 : i32
    return %arg0, %c0_i32, %c0_i32_0, %c0_i32_1 : i32, i32, i32, i32
  }
  func.func @transform_3(%arg0: i32, %arg1: i32) -> (i32, i32) {
    %c0_i32 = arith.constant 0 : i32
    %c0_i32_0 = arith.constant 0 : i32
    return %arg1, %c0_i32 : i32, i32
  }
  func.func @transform_4(%arg0: i32, %arg1: i32) -> (i32, i32, i32) {
    %c0_i32 = arith.constant 0 : i32
    %c0_i32_0 = arith.constant 0 : i32
    %c0_i32_1 = arith.constant 0 : i32
    %c0_i32_2 = arith.constant 0 : i32
    return %c0_i32, %c0_i32_0, %c0_i32_1 : i32, i32, i32
  }
  func.func @transform_5(%arg0: i32, %arg1: i32) -> (i32, i32) {
    %c0_i32 = arith.constant 0 : i32
    %c0_i32_0 = arith.constant 0 : i32
    %c0_i32_1 = arith.constant 0 : i32
    return %c0_i32, %c0_i32_0 : i32, i32
  }
  func.func @transform_6(%arg0: i32, %arg1: i32) -> (i32, i32, i32) {
    %c0_i32 = arith.constant 0 : i32
    %c0_i32_0 = arith.constant 0 : i32
    return %arg0, %arg1, %c0_i32 : i32, i32, i32
  }
  func.func @transform_7(%arg0: i32, %arg1: i32) -> (i32, i32, i32) {
    %c0_i32 = arith.constant 0 : i32
    %c0_i32_0 = arith.constant 0 : i32
    return %arg0, %arg1, %c0_i32 : i32, i32, i32
  }
}

module attributes {stable_mosaic.version = 11 : i64} {
  func.func @kv_proj_kernel(%arg0: i32, %arg1: i32, %arg2: memref<1x8x32xf32, #tpu.memory_space<vmem>>, %arg3: memref<4x32x8xbf16, #tpu.memory_space<vmem>>, %arg4: memref<4x1x8xf32, #tpu.memory_space<vmem>>, %arg5: memref<4x32x8xbf16, #tpu.memory_space<vmem>>, %arg6: memref<4x1x8xf32, #tpu.memory_space<vmem>>, %arg7: memref<1x4x8x8xbf16, #tpu.memory_space<vmem>>, %arg8: memref<1x4x8x8xbf16, #tpu.memory_space<vmem>>) attributes {dimension_semantics = [#tpu.dimension_semantics<parallel>, #tpu.dimension_semantics<parallel>], iteration_bounds = array<i64: 2, 1>, scalar_prefetch = 0 : i64, scratch_operands = 0 : i64, tpu.core_type = #tpu.core_type<tc>, window_params = [{transform_indices = @transform_0, window_bounds = array<i64: 1, 8, 32>}, {pipeline_mode = #tpu.pipeline_mode<synchronous>, transform_indices = @transform_1, window_bounds = array<i64: 4, 32, 8>}, {pipeline_mode = #tpu.pipeline_mode<synchronous>, transform_indices = @transform_2, window_bounds = array<i64: 4, 1, 8>}, {pipeline_mode = #tpu.pipeline_mode<synchronous>, transform_indices = @transform_3, window_bounds = array<i64: 4, 32, 8>}, {pipeline_mode = #tpu.pipeline_mode<synchronous>, transform_indices = @transform_4, window_bounds = array<i64: 4, 1, 8>}, {transform_indices = @transform_5, window_bounds = array<i64: 1, 4, 8, 8>}, {transform_indices = @transform_6, window_bounds = array<i64: 1, 4, 8, 8>}]} {
    %c0 = arith.constant 0 : index
    %c0_0 = arith.constant 0 : index
    %c0_1 = arith.constant 0 : index
    %0 = vector.load %arg2[%c0, %c0_0, %c0_1] : memref<1x8x32xf32, #tpu.memory_space<vmem>>, vector<1x8x32xf32>
    %1 = vector.shape_cast %0 : vector<1x8x32xf32> to vector<8x32xf32>
    %2 = arith.truncf %1 : vector<8x32xf32> to vector<8x32xbf16>
    %c0_2 = arith.constant 0 : index
    %c0_3 = arith.constant 0 : index
    %c0_4 = arith.constant 0 : index
    %3 = vector.load %arg3[%c0_2, %c0_3, %c0_4] : memref<4x32x8xbf16, #tpu.memory_space<vmem>>, vector<1x32x8xbf16>
    %4 = vector.shape_cast %3 : vector<1x32x8xbf16> to vector<32x8xbf16>
    %cst = arith.constant dense<0.000000e+00> : vector<8x8xf32>
    %5 = tpu.matmul %2, %4, %cst {dimension_numbers = #tpu.dot_dimension_numbers<[1], [0], [0], [1], [0, 0, 1, 1], [], []>} : vector<8x32xbf16>, vector<32x8xbf16>, vector<8x8xf32> -> vector<8x8xf32>
    %c0_5 = arith.constant 0 : index
    %c0_6 = arith.constant 0 : index
    %c0_7 = arith.constant 0 : index
    %6 = vector.load %arg4[%c0_5, %c0_6, %c0_7] : memref<4x1x8xf32, #tpu.memory_space<vmem>>, vector<1x1x8xf32>
    %7 = vector.shape_cast %6 : vector<1x1x8xf32> to vector<1x8xf32>
    %8 = vector.broadcast %7 : vector<1x8xf32> to vector<8x8xf32>
    %9 = arith.addf %5, %8 : vector<8x8xf32>
    %10 = arith.truncf %9 : vector<8x8xf32> to vector<8x8xbf16>
    %c0_8 = arith.constant 0 : index
    %c0_9 = arith.constant 0 : index
    %c0_10 = arith.constant 0 : index
    %c0_11 = arith.constant 0 : index
    %11 = vector.load %arg7[%c0_8, %c0_9, %c0_10, %c0_11] : memref<1x4x8x8xbf16, #tpu.memory_space<vmem>>, vector<1x1x8x8xbf16>
    %12 = vector.shape_cast %11 : vector<1x1x8x8xbf16> to vector<8x8xbf16>
    %13 = vector.shape_cast %10 : vector<8x8xbf16> to vector<1x1x8x8xbf16>
    tpu.vector_store %arg7[%c0_8, %c0_9, %c0_10, %c0_11], %13 {strides = array<i32>} : memref<1x4x8x8xbf16, #tpu.memory_space<vmem>>, vector<1x1x8x8xbf16>,
    %c0_12 = arith.constant 0 : index
    %c0_13 = arith.constant 0 : index
    %c0_14 = arith.constant 0 : index
    %14 = vector.load %arg5[%c0_12, %c0_13, %c0_14] : memref<4x32x8xbf16, #tpu.memory_space<vmem>>, vector<1x32x8xbf16>
    %15 = vector.shape_cast %14 : vector<1x32x8xbf16> to vector<32x8xbf16>
    %cst_15 = arith.constant dense<0.000000e+00> : vector<8x8xf32>
    %16 = tpu.matmul %2, %15, %cst_15 {dimension_numbers = #tpu.dot_dimension_numbers<[1], [0], [0], [1], [0, 0, 1, 1], [], []>} : vector<8x32xbf16>, vector<32x8xbf16>, vector<8x8xf32> -> vector<8x8xf32>
    %c0_16 = arith.constant 0 : index
    %c0_17 = arith.constant 0 : index
    %c0_18 = arith.constant 0 : index
    %17 = vector.load %arg6[%c0_16, %c0_17, %c0_18] : memref<4x1x8xf32, #tpu.memory_space<vmem>>, vector<1x1x8xf32>
    %18 = vector.shape_cast %17 : vector<1x1x8xf32> to vector<1x8xf32>
    %19 = vector.broadcast %18 : vector<1x8xf32> to vector<8x8xf32>
    %20 = arith.addf %16, %19 : vector<8x8xf32>
    %21 = arith.truncf %20 : vector<8x8xf32> to vector<8x8xbf16>
    %c0_19 = arith.constant 0 : index
    %c0_20 = arith.constant 0 : index
    %c0_21 = arith.constant 0 : index
    %c0_22 = arith.constant 0 : index
    %22 = vector.load %arg8[%c0_19, %c0_20, %c0_21, %c0_22] : memref<1x4x8x8xbf16, #tpu.memory_space<vmem>>, vector<1x1x8x8xbf16>
    %23 = vector.shape_cast %22 : vector<1x1x8x8xbf16> to vector<8x8xbf16>
    %24 = vector.shape_cast %21 : vector<8x8xbf16> to vector<1x1x8x8xbf16>
    tpu.vector_store %arg8[%c0_19, %c0_20, %c0_21, %c0_22], %24 {strides = array<i32>} : memref<1x4x8x8xbf16, #tpu.memory_space<vmem>>, vector<1x1x8x8xbf16>,
    %c1 = arith.constant 1 : index
    %c0_23 = arith.constant 0 : index
    %c0_24 = arith.constant 0 : index
    %25 = vector.load %arg3[%c1, %c0_23, %c0_24] : memref<4x32x8xbf16, #tpu.memory_space<vmem>>, vector<1x32x8xbf16>
    %26 = vector.shape_cast %25 : vector<1x32x8xbf16> to vector<32x8xbf16>
    %cst_25 = arith.constant dense<0.000000e+00> : vector<8x8xf32>
    %27 = tpu.matmul %2, %26, %cst_25 {dimension_numbers = #tpu.dot_dimension_numbers<[1], [0], [0], [1], [0, 0, 1, 1], [], []>} : vector<8x32xbf16>, vector<32x8xbf16>, vector<8x8xf32> -> vector<8x8xf32>
    %c1_26 = arith.constant 1 : index
    %c0_27 = arith.constant 0 : index
    %c0_28 = arith.constant 0 : index
    %28 = vector.load %arg4[%c1_26, %c0_27, %c0_28] : memref<4x1x8xf32, #tpu.memory_space<vmem>>, vector<1x1x8xf32>
    %29 = vector.shape_cast %28 : vector<1x1x8xf32> to vector<1x8xf32>
    %30 = vector.broadcast %29 : vector<1x8xf32> to vector<8x8xf32>
    %31 = arith.addf %27, %30 : vector<8x8xf32>
    %32 = arith.truncf %31 : vector<8x8xf32> to vector<8x8xbf16>
    %c0_29 = arith.constant 0 : index
    %c1_30 = arith.constant 1 : index
    %c0_31 = arith.constant 0 : index
    %c0_32 = arith.constant 0 : index
    %33 = vector.load %arg7[%c0_29, %c1_30, %c0_31, %c0_32] : memref<1x4x8x8xbf16, #tpu.memory_space<vmem>>, vector<1x1x8x8xbf16>
    %34 = vector.shape_cast %33 : vector<1x1x8x8xbf16> to vector<8x8xbf16>
    %35 = vector.shape_cast %32 : vector<8x8xbf16> to vector<1x1x8x8xbf16>
    tpu.vector_store %arg7[%c0_29, %c1_30, %c0_31, %c0_32], %35 {strides = array<i32>} : memref<1x4x8x8xbf16, #tpu.memory_space<vmem>>, vector<1x1x8x8xbf16>,
    %c1_33 = arith.constant 1 : index
    %c0_34 = arith.constant 0 : index
    %c0_35 = arith.constant 0 : index
    %36 = vector.load %arg5[%c1_33, %c0_34, %c0_35] : memref<4x32x8xbf16, #tpu.memory_space<vmem>>, vector<1x32x8xbf16>
    %37 = vector.shape_cast %36 : vector<1x32x8xbf16> to vector<32x8xbf16>
    %cst_36 = arith.constant dense<0.000000e+00> : vector<8x8xf32>
    %38 = tpu.matmul %2, %37, %cst_36 {dimension_numbers = #tpu.dot_dimension_numbers<[1], [0], [0], [1], [0, 0, 1, 1], [], []>} : vector<8x32xbf16>, vector<32x8xbf16>, vector<8x8xf32> -> vector<8x8xf32>
    %c1_37 = arith.constant 1 : index
    %c0_38 = arith.constant 0 : index
    %c0_39 = arith.constant 0 : index
    %39 = vector.load %arg6[%c1_37, %c0_38, %c0_39] : memref<4x1x8xf32, #tpu.memory_space<vmem>>, vector<1x1x8xf32>
    %40 = vector.shape_cast %39 : vector<1x1x8xf32> to vector<1x8xf32>
    %41 = vector.broadcast %40 : vector<1x8xf32> to vector<8x8xf32>
    %42 = arith.addf %38, %41 : vector<8x8xf32>
    %43 = arith.truncf %42 : vector<8x8xf32> to vector<8x8xbf16>
    %c0_40 = arith.constant 0 : index
    %c1_41 = arith.constant 1 : index
    %c0_42 = arith.constant 0 : index
    %c0_43 = arith.constant 0 : index
    %44 = vector.load %arg8[%c0_40, %c1_41, %c0_42, %c0_43] : memref<1x4x8x8xbf16, #tpu.memory_space<vmem>>, vector<1x1x8x8xbf16>
    %45 = vector.shape_cast %44 : vector<1x1x8x8xbf16> to vector<8x8xbf16>
    %46 = vector.shape_cast %43 : vector<8x8xbf16> to vector<1x1x8x8xbf16>
    tpu.vector_store %arg8[%c0_40, %c1_41, %c0_42, %c0_43], %46 {strides = array<i32>} : memref<1x4x8x8xbf16, #tpu.memory_space<vmem>>, vector<1x1x8x8xbf16>,
    %c2 = arith.constant 2 : index
    %c0_44 = arith.constant 0 : index
    %c0_45 = arith.constant 0 : index
    %47 = vector.load %arg3[%c2, %c0_44, %c0_45] : memref<4x32x8xbf16, #tpu.memory_space<vmem>>, vector<1x32x8xbf16>
    %48 = vector.shape_cast %47 : vector<1x32x8xbf16> to vector<32x8xbf16>
    %cst_46 = arith.constant dense<0.000000e+00> : vector<8x8xf32>
    %49 = tpu.matmul %2, %48, %cst_46 {dimension_numbers = #tpu.dot_dimension_numbers<[1], [0], [0], [1], [0, 0, 1, 1], [], []>} : vector<8x32xbf16>, vector<32x8xbf16>, vector<8x8xf32> -> vector<8x8xf32>
    %c2_47 = arith.constant 2 : index
    %c0_48 = arith.constant 0 : index
    %c0_49 = arith.constant 0 : index
    %50 = vector.load %arg4[%c2_47, %c0_48, %c0_49] : memref<4x1x8xf32, #tpu.memory_space<vmem>>, vector<1x1x8xf32>
    %51 = vector.shape_cast %50 : vector<1x1x8xf32> to vector<1x8xf32>
    %52 = vector.broadcast %51 : vector<1x8xf32> to vector<8x8xf32>
    %53 = arith.addf %49, %52 : vector<8x8xf32>
    %54 = arith.truncf %53 : vector<8x8xf32> to vector<8x8xbf16>
    %c0_50 = arith.constant 0 : index
    %c2_51 = arith.constant 2 : index
    %c0_52 = arith.constant 0 : index
    %c0_53 = arith.constant 0 : index
    %55 = vector.load %arg7[%c0_50, %c2_51, %c0_52, %c0_53] : memref<1x4x8x8xbf16, #tpu.memory_space<vmem>>, vector<1x1x8x8xbf16>
    %56 = vector.shape_cast %55 : vector<1x1x8x8xbf16> to vector<8x8xbf16>
    %57 = vector.shape_cast %54 : vector<8x8xbf16> to vector<1x1x8x8xbf16>
    tpu.vector_store %arg7[%c0_50, %c2_51, %c0_52, %c0_53], %57 {strides = array<i32>} : memref<1x4x8x8xbf16, #tpu.memory_space<vmem>>, vector<1x1x8x8xbf16>,
    %c2_54 = arith.constant 2 : index
    %c0_55 = arith.constant 0 : index
    %c0_56 = arith.constant 0 : index
    %58 = vector.load %arg5[%c2_54, %c0_55, %c0_56] : memref<4x32x8xbf16, #tpu.memory_space<vmem>>, vector<1x32x8xbf16>
    %59 = vector.shape_cast %58 : vector<1x32x8xbf16> to vector<32x8xbf16>
    %cst_57 = arith.constant dense<0.000000e+00> : vector<8x8xf32>
    %60 = tpu.matmul %2, %59, %cst_57 {dimension_numbers = #tpu.dot_dimension_numbers<[1], [0], [0], [1], [0, 0, 1, 1], [], []>} : vector<8x32xbf16>, vector<32x8xbf16>, vector<8x8xf32> -> vector<8x8xf32>
    %c2_58 = arith.constant 2 : index
    %c0_59 = arith.constant 0 : index
    %c0_60 = arith.constant 0 : index
    %61 = vector.load %arg6[%c2_58, %c0_59, %c0_60] : memref<4x1x8xf32, #tpu.memory_space<vmem>>, vector<1x1x8xf32>
    %62 = vector.shape_cast %61 : vector<1x1x8xf32> to vector<1x8xf32>
    %63 = vector.broadcast %62 : vector<1x8xf32> to vector<8x8xf32>
    %64 = arith.addf %60, %63 : vector<8x8xf32>
    %65 = arith.truncf %64 : vector<8x8xf32> to vector<8x8xbf16>
    %c0_61 = arith.constant 0 : index
    %c2_62 = arith.constant 2 : index
    %c0_63 = arith.constant 0 : index
    %c0_64 = arith.constant 0 : index
    %66 = vector.load %arg8[%c0_61, %c2_62, %c0_63, %c0_64] : memref<1x4x8x8xbf16, #tpu.memory_space<vmem>>, vector<1x1x8x8xbf16>
    %67 = vector.shape_cast %66 : vector<1x1x8x8xbf16> to vector<8x8xbf16>
    %68 = vector.shape_cast %65 : vector<8x8xbf16> to vector<1x1x8x8xbf16>
    tpu.vector_store %arg8[%c0_61, %c2_62, %c0_63, %c0_64], %68 {strides = array<i32>} : memref<1x4x8x8xbf16, #tpu.memory_space<vmem>>, vector<1x1x8x8xbf16>,
    %c3 = arith.constant 3 : index
    %c0_65 = arith.constant 0 : index
    %c0_66 = arith.constant 0 : index
    %69 = vector.load %arg3[%c3, %c0_65, %c0_66] : memref<4x32x8xbf16, #tpu.memory_space<vmem>>, vector<1x32x8xbf16>
    %70 = vector.shape_cast %69 : vector<1x32x8xbf16> to vector<32x8xbf16>
    %cst_67 = arith.constant dense<0.000000e+00> : vector<8x8xf32>
    %71 = tpu.matmul %2, %70, %cst_67 {dimension_numbers = #tpu.dot_dimension_numbers<[1], [0], [0], [1], [0, 0, 1, 1], [], []>} : vector<8x32xbf16>, vector<32x8xbf16>, vector<8x8xf32> -> vector<8x8xf32>
    %c3_68 = arith.constant 3 : index
    %c0_69 = arith.constant 0 : index
    %c0_70 = arith.constant 0 : index
    %72 = vector.load %arg4[%c3_68, %c0_69, %c0_70] : memref<4x1x8xf32, #tpu.memory_space<vmem>>, vector<1x1x8xf32>
    %73 = vector.shape_cast %72 : vector<1x1x8xf32> to vector<1x8xf32>
    %74 = vector.broadcast %73 : vector<1x8xf32> to vector<8x8xf32>
    %75 = arith.addf %71, %74 : vector<8x8xf32>
    %76 = arith.truncf %75 : vector<8x8xf32> to vector<8x8xbf16>
    %c0_71 = arith.constant 0 : index
    %c3_72 = arith.constant 3 : index
    %c0_73 = arith.constant 0 : index
    %c0_74 = arith.constant 0 : index
    %77 = vector.load %arg7[%c0_71, %c3_72, %c0_73, %c0_74] : memref<1x4x8x8xbf16, #tpu.memory_space<vmem>>, vector<1x1x8x8xbf16>
    %78 = vector.shape_cast %77 : vector<1x1x8x8xbf16> to vector<8x8xbf16>
    %79 = vector.shape_cast %76 : vector<8x8xbf16> to vector<1x1x8x8xbf16>
    tpu.vector_store %arg7[%c0_71, %c3_72, %c0_73, %c0_74], %79 {strides = array<i32>} : memref<1x4x8x8xbf16, #tpu.memory_space<vmem>>, vector<1x1x8x8xbf16>,
    %c3_75 = arith.constant 3 : index
    %c0_76 = arith.constant 0 : index
    %c0_77 = arith.constant 0 : index
    %80 = vector.load %arg5[%c3_75, %c0_76, %c0_77] : memref<4x32x8xbf16, #tpu.memory_space<vmem>>, vector<1x32x8xbf16>
    %81 = vector.shape_cast %80 : vector<1x32x8xbf16> to vector<32x8xbf16>
    %cst_78 = arith.constant dense<0.000000e+00> : vector<8x8xf32>
    %82 = tpu.matmul %2, %81, %cst_78 {dimension_numbers = #tpu.dot_dimension_numbers<[1], [0], [0], [1], [0, 0, 1, 1], [], []>} : vector<8x32xbf16>, vector<32x8xbf16>, vector<8x8xf32> -> vector<8x8xf32>
    %c3_79 = arith.constant 3 : index
    %c0_80 = arith.constant 0 : index
    %c0_81 = arith.constant 0 : index
    %83 = vector.load %arg6[%c3_79, %c0_80, %c0_81] : memref<4x1x8xf32, #tpu.memory_space<vmem>>, vector<1x1x8xf32>
    %84 = vector.shape_cast %83 : vector<1x1x8xf32> to vector<1x8xf32>
    %85 = vector.broadcast %84 : vector<1x8xf32> to vector<8x8xf32>
    %86 = arith.addf %82, %85 : vector<8x8xf32>
    %87 = arith.truncf %86 : vector<8x8xf32> to vector<8x8xbf16>
    %c0_82 = arith.constant 0 : index
    %c3_83 = arith.constant 3 : index
    %c0_84 = arith.constant 0 : index
    %c0_85 = arith.constant 0 : index
    %88 = vector.load %arg8[%c0_82, %c3_83, %c0_84, %c0_85] : memref<1x4x8x8xbf16, #tpu.memory_space<vmem>>, vector<1x1x8x8xbf16>
    %89 = vector.shape_cast %88 : vector<1x1x8x8xbf16> to vector<8x8xbf16>
    %90 = vector.shape_cast %87 : vector<8x8xbf16> to vector<1x1x8x8xbf16>
    tpu.vector_store %arg8[%c0_82, %c3_83, %c0_84, %c0_85], %90 {strides = array<i32>} : memref<1x4x8x8xbf16, #tpu.memory_space<vmem>>, vector<1x1x8x8xbf16>,
    return
  }
  func.func @transform_0(%arg0: i32, %arg1: i32) -> (i32, i32, i32) {
    %c0_i32 = arith.constant 0 : i32
    %c0_i32_0 = arith.constant 0 : i32
    return %arg0, %arg1, %c0_i32 : i32, i32, i32
  }
  func.func @transform_1(%arg0: i32, %arg1: i32) -> (i32, i32, i32) {
    %c0_i32 = arith.constant 0 : i32
    %c0_i32_0 = arith.constant 0 : i32
    %c0_i32_1 = arith.constant 0 : i32
    %c0_i32_2 = arith.constant 0 : i32
    return %c0_i32, %c0_i32_0, %c0_i32_1 : i32, i32, i32
  }
  func.func @transform_2(%arg0: i32, %arg1: i32) -> (i32, i32, i32) {
    %c0_i32 = arith.constant 0 : i32
    %c0_i32_0 = arith.constant 0 : i32
    %c0_i32_1 = arith.constant 0 : i32
    %c0_i32_2 = arith.constant 0 : i32
    return %c0_i32, %c0_i32_0, %c0_i32_1 : i32, i32, i32
  }
  func.func @transform_3(%arg0: i32, %arg1: i32) -> (i32, i32, i32) {
    %c0_i32 = arith.constant 0 : i32
    %c0_i32_0 = arith.constant 0 : i32
    %c0_i32_1 = arith.constant 0 : i32
    %c0_i32_2 = arith.constant 0 : i32
    return %c0_i32, %c0_i32_0, %c0_i32_1 : i32, i32, i32
  }
  func.func @transform_4(%arg0: i32, %arg1: i32) -> (i32, i32, i32) {
    %c0_i32 = arith.constant 0 : i32
    %c0_i32_0 = arith.constant 0 : i32
    %c0_i32_1 = arith.constant 0 : i32
    %c0_i32_2 = arith.constant 0 : i32
    return %c0_i32, %c0_i32_0, %c0_i32_1 : i32, i32, i32
  }
  func.func @transform_5(%arg0: i32, %arg1: i32) -> (i32, i32, i32, i32) {
    %c0_i32 = arith.constant 0 : i32
    %c0_i32_0 = arith.constant 0 : i32
    %c0_i32_1 = arith.constant 0 : i32
    return %arg0, %c0_i32, %arg1, %c0_i32_0 : i32, i32, i32, i32
  }
  func.func @transform_6(%arg0: i32, %arg1: i32) -> (i32, i32, i32, i32) {
    %c0_i32 = arith.constant 0 : i32
    %c0_i32_0 = arith.constant 0 : i32
    %c0_i32_1 = arith.constant 0 : i32
    return %arg0, %c0_i32, %arg1, %c0_i32_0 : i32, i32, i32, i32
  }
}

module attributes {stable_mosaic.version = 11 : i64} {
  func.func @ln_ffn_residual_kernel(%arg0: i32, %arg1: i32, %arg2: memref<2xf32, #tpu.memory_space<smem>>, %arg3: memref<16x32xf32, #tpu.memory_space<vmem>>, %arg4: memref<32x64xbf16, #tpu.memory_space<vmem>>, %arg5: memref<1x64xf32, #tpu.memory_space<vmem>>, %arg6: memref<64x32xbf16, #tpu.memory_space<vmem>>, %arg7: memref<1x32xf32, #tpu.memory_space<vmem>>, %arg8: memref<16x32xf32, #tpu.memory_space<vmem>>, %arg9: memref<16x32xf32, #tpu.memory_space<vmem>>) attributes {dimension_semantics = [#tpu.dimension_semantics<parallel>, #tpu.dimension_semantics<arbitrary>], iteration_bounds = array<i64: 1, 1>, scalar_prefetch = 0 : i64, scratch_operands = 1 : i64, tpu.core_type = #tpu.core_type<tc>, window_params = [{transform_indices = @transform_0, window_bounds = array<i64: 2>}, {transform_indices = @transform_1, window_bounds = array<i64: 16, 32>}, {transform_indices = @transform_2, window_bounds = array<i64: 32, 64>}, {transform_indices = @transform_3, window_bounds = array<i64: 1, 64>}, {transform_indices = @transform_4, window_bounds = array<i64: 64, 32>}, {pipeline_mode = #tpu.pipeline_mode<synchronous>, transform_indices = @transform_5, window_bounds = array<i64: 1, 32>}, {transform_indices = @transform_6, window_bounds = array<i64: 16, 32>}]} {
    %c0_i32 = arith.constant 0 : i32
    %0 = arith.cmpi eq, %arg1, %c0_i32 : i32
    %1 = arith.extui %0 : i1 to i32
    %c0_i32_0 = arith.constant 0 : i32
    %2 = arith.cmpi ne, %1, %c0_i32_0 : i32
    scf.if %2 {
      %cst_22 = arith.constant 0.000000e+00 : f32
      %45 = vector.broadcast %cst_22 : f32 to vector<16x32xf32>
      %c0_23 = arith.constant 0 : index
      %c0_24 = arith.constant 0 : index
      %46 = vector.load %arg9[%c0_23, %c0_24] : memref<16x32xf32, #tpu.memory_space<vmem>>, vector<16x32xf32>
      tpu.vector_store %arg9[%c0_23, %c0_24], %45 {strides = array<i32>} : memref<16x32xf32, #tpu.memory_space<vmem>>, vector<16x32xf32>,
    } else {
    }
    %c0 = arith.constant 0 : index
    %c0_1 = arith.constant 0 : index
    %3 = vector.load %arg3[%c0, %c0_1] : memref<16x32xf32, #tpu.memory_space<vmem>>, vector<16x32xf32>
    %c0_2 = arith.constant 0 : index
    %4 = memref.load %arg2[%c0_2] : memref<2xf32, #tpu.memory_space<smem>>
    %c1 = arith.constant 1 : index
    %5 = memref.load %arg2[%c1] : memref<2xf32, #tpu.memory_space<smem>>
    %cst = arith.constant dense<0.000000e+00> : vector<16xf32>
    %6 = vector.multi_reduction <add>, %3, %cst [1] : vector<16x32xf32> to vector<16xf32>
    %7 = vector.shape_cast %6 : vector<16xf32> to vector<16x1xf32>
    %cst_3 = arith.constant 3.200000e+01 : f32
    %8 = vector.broadcast %cst_3 : f32 to vector<16x1xf32>
    %9 = arith.divf %7, %8 : vector<16x1xf32>
    %10 = vector.broadcast %9 : vector<16x1xf32> to vector<16x32xf32>
    %11 = arith.subf %3, %10 : vector<16x32xf32>
    %12 = arith.mulf %11, %11 : vector<16x32xf32>
    %cst_4 = arith.constant dense<0.000000e+00> : vector<16xf32>
    %13 = vector.multi_reduction <add>, %12, %cst_4 [1] : vector<16x32xf32> to vector<16xf32>
    %14 = vector.shape_cast %13 : vector<16xf32> to vector<16x1xf32>
    %cst_5 = arith.constant 3.200000e+01 : f32
    %15 = vector.broadcast %cst_5 : f32 to vector<16x1xf32>
    %16 = arith.divf %14, %15 : vector<16x1xf32>
    %17 = vector.broadcast %9 : vector<16x1xf32> to vector<16x32xf32>
    %18 = arith.subf %3, %17 : vector<16x32xf32>
    %19 = vector.broadcast %4 : f32 to vector<16x32xf32>
    %20 = arith.mulf %19, %18 : vector<16x32xf32>
    %cst_6 = arith.constant 9.99999997E-7 : f32
    %21 = vector.broadcast %cst_6 : f32 to vector<16x1xf32>
    %22 = arith.addf %16, %21 : vector<16x1xf32>
    %23 = math.rsqrt %22 : vector<16x1xf32>
    %24 = vector.broadcast %23 : vector<16x1xf32> to vector<16x32xf32>
    %25 = arith.mulf %20, %24 : vector<16x32xf32>
    %26 = vector.broadcast %5 : f32 to vector<16x32xf32>
    %27 = arith.addf %25, %26 : vector<16x32xf32>
    %28 = arith.truncf %27 : vector<16x32xf32> to vector<16x32xbf16>
    %c0_7 = arith.constant 0 : index
    %c0_8 = arith.constant 0 : index
    %29 = vector.load %arg4[%c0_7, %c0_8] : memref<32x64xbf16, #tpu.memory_space<vmem>>, vector<32x64xbf16>
    %cst_9 = arith.constant dense<0.000000e+00> : vector<16x64xf32>
    %30 = tpu.matmul %28, %29, %cst_9 {dimension_numbers = #tpu.dot_dimension_numbers<[1], [0], [0], [1], [0, 0, 1, 1], [], []>} : vector<16x32xbf16>, vector<32x64xbf16>, vector<16x64xf32> -> vector<16x64xf32>
    %c0_10 = arith.constant 0 : index
    %c0_11 = arith.constant 0 : index
    %31 = vector.load %arg5[%c0_10, %c0_11] : memref<1x64xf32, #tpu.memory_space<vmem>>, vector<1x64xf32>
    %32 = vector.broadcast %31 : vector<1x64xf32> to vector<16x64xf32>
    %33 = arith.addf %30, %32 : vector<16x64xf32>
    %cst_12 = arith.constant 0.000000e+00 : f32
    %34 = vector.broadcast %cst_12 : f32 to vector<16x64xf32>
    %35 = arith.maximumf %33, %34 : vector<16x64xf32>
    %c0_13 = arith.constant 0 : index
    %c0_14 = arith.constant 0 : index
    %36 = vector.load %arg9[%c0_13, %c0_14] : memref<16x32xf32, #tpu.memory_space<vmem>>, vector<16x32xf32>
    %37 = arith.truncf %35 : vector<16x64xf32> to vector<16x64xbf16>
    %c0_15 = arith.constant 0 : index
    %c0_16 = arith.constant 0 : index
    %38 = vector.load %arg6[%c0_15, %c0_16] : memref<64x32xbf16, #tpu.memory_space<vmem>>, vector<64x32xbf16>
    %cst_17 = arith.constant dense<0.000000e+00> : vector<16x32xf32>
    %39 = tpu.matmul %37, %38, %cst_17 {dimension_numbers = #tpu.dot_dimension_numbers<[1], [0], [0], [1], [0, 0, 1, 1], [], []>} : vector<16x64xbf16>, vector<64x32xbf16>, vector<16x32xf32> -> vector<16x32xf32>
    %40 = arith.addf %36, %39 : vector<16x32xf32>
    %c0_18 = arith.constant 0 : index
    %c0_19 = arith.constant 0 : index
    %41 = vector.load %arg9[%c0_18, %c0_19] : memref<16x32xf32, #tpu.memory_space<vmem>>, vector<16x32xf32>
    tpu.vector_store %arg9[%c0_18, %c0_19], %40 {strides = array<i32>} : memref<16x32xf32, #tpu.memory_space<vmem>>, vector<16x32xf32>,
    %c0_i32_20 = arith.constant 0 : i32
    %42 = arith.cmpi eq, %arg1, %c0_i32_20 : i32
    %43 = arith.extui %42 : i1 to i32
    %c0_i32_21 = arith.constant 0 : i32
    %44 = arith.cmpi ne, %43, %c0_i32_21 : i32
    scf.if %44 {
      %c0_22 = arith.constant 0 : index
      %c0_23 = arith.constant 0 : index
      %45 = vector.load %arg3[%c0_22, %c0_23] : memref<16x32xf32, #tpu.memory_space<vmem>>, vector<16x32xf32>
      %c0_24 = arith.constant 0 : index
      %c0_25 = arith.constant 0 : index
      %46 = vector.load %arg9[%c0_24, %c0_25] : memref<16x32xf32, #tpu.memory_space<vmem>>, vector<16x32xf32>
      %47 = arith.addf %45, %46 : vector<16x32xf32>
      %c0_26 = arith.constant 0 : index
      %c0_27 = arith.constant 0 : index
      %48 = vector.load %arg7[%c0_26, %c0_27] : memref<1x32xf32, #tpu.memory_space<vmem>>, vector<1x32xf32>
      %49 = vector.broadcast %48 : vector<1x32xf32> to vector<16x32xf32>
      %50 = arith.addf %47, %49 : vector<16x32xf32>
      %c0_28 = arith.constant 0 : index
      %c0_29 = arith.constant 0 : index
      %51 = vector.load %arg8[%c0_28, %c0_29] : memref<16x32xf32, #tpu.memory_space<vmem>>, vector<16x32xf32>
      tpu.vector_store %arg8[%c0_28, %c0_29], %50 {strides = array<i32>} : memref<16x32xf32, #tpu.memory_space<vmem>>, vector<16x32xf32>,
    } else {
    }
    return
  }
  func.func @transform_0(%arg0: i32, %arg1: i32) -> i32 {
    %c0_i32 = arith.constant 0 : i32
    %c0_i32_0 = arith.constant 0 : i32
    return %c0_i32 : i32
  }
  func.func @transform_1(%arg0: i32, %arg1: i32) -> (i32, i32) {
    %c0_i32 = arith.constant 0 : i32
    %c0_i32_0 = arith.constant 0 : i32
    return %arg0, %c0_i32 : i32, i32
  }
  func.func @transform_2(%arg0: i32, %arg1: i32) -> (i32, i32) {
    %c0_i32 = arith.constant 0 : i32
    %c0_i32_0 = arith.constant 0 : i32
    return %c0_i32, %arg1 : i32, i32
  }
  func.func @transform_3(%arg0: i32, %arg1: i32) -> (i32, i32) {
    %c0_i32 = arith.constant 0 : i32
    %c0_i32_0 = arith.constant 0 : i32
    return %c0_i32, %arg1 : i32, i32
  }
  func.func @transform_4(%arg0: i32, %arg1: i32) -> (i32, i32) {
    %c0_i32 = arith.constant 0 : i32
    %c0_i32_0 = arith.constant 0 : i32
    return %arg1, %c0_i32 : i32, i32
  }
  func.func @transform_5(%arg0: i32, %arg1: i32) -> (i32, i32) {
    %c0_i32 = arith.constant 0 : i32
    %c0_i32_0 = arith.constant 0 : i32
    %c0_i32_1 = arith.constant 0 : i32
    return %c0_i32, %c0_i32_0 : i32, i32
  }
  func.func @transform_6(%arg0: i32, %arg1: i32) -> (i32, i32) {
    %c0_i32 = arith.constant 0 : i32
    %c0_i32_0 = arith.constant 0 : i32
    return %arg0, %c0_i32 : i32, i32
  }
}

</mosaic_0001>

<llo_original>
// kernel: tpu_custom_call.1
$region0: #{tpu_custom_call.1}
  #allocation0 [shape = 'u32[]', space=smem, size = 0x4, offset = 0x4, fixed_abs, tag = 'smem constant byte address 0x4 - core index']
  #allocation1 [shape = 'u32[144,128]{1,0:T(1,128)}', space=vmem, size = 0x12000, scoped, tag = 'internal scratch']
  %s0 = inlined_call_operand.hbm [shape: f32[16,128], index: 0, kind: input, shape index: {}]
  %s1 = inlined_call_operand.hbm [shape: f32[8,128], index: 1, kind: input, shape index: {}]
  %s2 = inlined_call_operand.hbm [shape: f32[16,128], index: 2, kind: output, shape index: {}]
  %s3 = sld [smem:[#allocation0]]
  $region49: #{tpu_custom_call.1} parent=0
    _
  %s5 = ssub.s32 1, %s3
  %s6 = scalar_select 0, %s5, %s3
  $region1: #{tpu_custom_call.1} parent=0
    #allocation2 [shape = 'u8[8192]{0}', space=vmem, size = 0x2000, scoped, tag = 'input window, operand 0']
    #allocation3 [shape = 's32[2]{0}', space=sflag, size = 0x8, scoped, tag = 'scoped memory for tpu_custom_call.1']
    #allocation4 [shape = 's32[2]{0}', space=sflag, size = 0x8, scoped, tag = 'scoped memory for tpu_custom_call.1']
    #allocation5 [shape = 'u8[4096]{0}', space=vmem, size = 0x1000, scoped, tag = 'input window, operand 1, single buffered']
    #allocation6 [shape = 's32[1]{0}', space=sflag, size = 0x4, scoped, tag = 'scoped memory for tpu_custom_call.1']
    #allocation7 [shape = 'u8[8192]{0}', space=vmem, size = 0x2000, scoped, tag = 'output window, operand 0']
    %7 = vsyncpa [#allocation3], 0
    %s8 = scalar_lea.sflag [#allocation3], 1
    %9 = vsyncpa %s8, 0
    %10 = vsyncpa [#allocation6], 0
    %11 = vsyncpa [#allocation4], 0
    %s12 = scalar_lea.sflag [#allocation4], 1
    %13 = vsyncpa %s12, 0
    loop: start=0, step=1, limit=4
    $region2: #{tpu_custom_call.1} parent=1 // loop_pre_header
      _
    $region3: #{tpu_custom_call.1} parent=1 // loop_header
      %s15 = sphi 0, %s19
      %p16 = scmp.ge.s32.totalorder %s15, 4
      %s25 = sphi 0, %s27
      %s28 = sphi 0, %s25
      %s29 = sphi 0, %s28
      %s45 = sphi 0, %s29
      %s49 = sphi 0, %s49
      %s51 = sphi 0, %s49
      %s52 = sphi 0, %s51
      %s66 = sphi 0, %s52
      %s72 = sphi 0, %s74
      %s75 = sphi 0, %s72
      %s76 = sphi 0, %s75
      %s92 = sphi 0, %s76
    $region4: #{tpu_custom_call.1} parent=1 // loop_header_branch
      %18 = sbr.rel (%p16) target = $region8
    $region5: #{tpu_custom_call.1} parent=1 // loop_body
      %s20 = ssub.s32 %s15, 1
      %s21 = ssub.s32 %s15, 2
      %s22 = sadd.s32 %s15, 1
      %s23 = ssub.s32 %s15, %s22
      %p24 = scmp.eq.s32.totalorder %s23, 0
      %s26 = sadd.s32 %s25, 1
      %s27 = scalar_select %p24, %s25, %s26
      %p30 = pneg %p24
      %p31 = scmp.eq.s32.totalorder %s15, 1
      %p32 = por %p30, %p31
      %p33 = scmp.ne.s32.totalorder %s25, %s28
      %p34 = scmp.eq.s32.totalorder %s15, 0
      %p35 = por %p33, %p34
      %p36 = scmp.ne.s32.totalorder %s25, %s28
      %p37 = scmp.eq.s32.totalorder %s20, 1
      %p38 = por %p36, %p37
      %p39 = scmp.ne.s32.totalorder %s28, %s29
      %p40 = scmp.eq.s32.totalorder %s20, 0
      %p41 = por %p39, %p40
      %p42 = scmp.ne.s32.totalorder %s28, %s29
      %p43 = scmp.eq.s32.totalorder %s21, 1
      %p44 = por %p42, %p43
      %p46 = scmp.ne.s32.totalorder %s29, %s45
      %p47 = scmp.eq.s32.totalorder %s21, 0
      %p48 = por %p46, %p47
      %s50 = sadd.s32 %s49, 1
      %p53 = scmp.eq.s32.totalorder %s15, 1
      %p54 = scmp.ne.s32.totalorder %s49, %s51
      %p55 = scmp.eq.s32.totalorder %s15, 0
      %p56 = por %p54, %p55
      %p57 = scmp.ne.s32.totalorder %s49, %s51
      %p58 = scmp.eq.s32.totalorder %s20, 1
      %p59 = por %p57, %p58
      %p60 = scmp.ne.s32.totalorder %s51, %s52
      %p61 = scmp.eq.s32.totalorder %s20, 0
      %p62 = por %p60, %p61
      %p63 = scmp.ne.s32.totalorder %s51, %s52
      %p64 = scmp.eq.s32.totalorder %s21, 1
      %p65 = por %p63, %p64
      %p67 = scmp.ne.s32.totalorder %s52, %s66
      %p68 = scmp.eq.s32.totalorder %s21, 0
      %p69 = por %p67, %p68
      %s70 = ssub.s32 %s15, %s22
      %p71 = scmp.eq.s32.totalorder %s70, 0
      %s73 = sadd.s32 %s72, 1
      %s74 = scalar_select %p71, %s72, %s73
      %p77 = pneg %p71
      %p78 = scmp.eq.s32.totalorder %s15, 1
      %p79 = por %p77, %p78
      %p80 = scmp.ne.s32.totalorder %s72, %s75
      %p81 = scmp.eq.s32.totalorder %s15, 0
      %p82 = por %p80, %p81
      %p83 = scmp.ne.s32.totalorder %s72, %s75
      %p84 = scmp.eq.s32.totalorder %s20, 1
      %p85 = por %p83, %p84
      %p86 = scmp.ne.s32.totalorder %s75, %s76
      %p87 = scmp.eq.s32.totalorder %s20, 0
      %p88 = por %p86, %p87
      %p89 = scmp.ne.s32.totalorder %s75, %s76
      %p90 = scmp.eq.s32.totalorder %s21, 1
      %p91 = por %p89, %p90
      %p93 = scmp.ne.s32.totalorder %s76, %s92
      %p94 = scmp.eq.s32.totalorder %s21, 0
      %p95 = por %p93, %p94
      %p96 = scmp.le.s32.totalorder 1, %s15
      %p97 = scmp.lt.s32.totalorder %s15, 3
      %p98 = pnand %p96, %p97
      %p99 = pneg %p98
      // Predicated region
      $region9: #{tpu_custom_call.1} parent=5 // pred_check
        _
      $region10: #{tpu_custom_call.1} parent=5 // pred_check_branch
        %101 = sbr.rel (%p98) target = $region12
      $region11: #{tpu_custom_call.1} parent=5 // pred_region
        %s102 = ssub.s32 %s15, 1
        // Predicated region
        $region13: #{tpu_custom_call.1} parent=11 // pred_check
          %p103 = pneg %p62
        $region14: #{tpu_custom_call.1} parent=11 // pred_check_branch
          %105 = sbr.rel (%p103) target = $region16
        $region15: #{tpu_custom_call.1} parent=11 // pred_region
          %s107 = ssub.s32 128, 128
          %108 = vsyncadd [#allocation6], %s107
          %s110 = sshll.u32 [#allocation5], 4
          %s111 = int_to_ptr.vmem [resolvable:$true] %s110
          %113 = dma.hbm_to_vmem [thread:$0]  %s1, 128, %s111, [#allocation6]
        $region16: #{tpu_custom_call.1} parent=11 // pred_fallthru
          _
      $region12: #{tpu_custom_call.1} parent=5 // pred_fallthru
        _
      %p114 = scmp.lt.s32.totalorder %s15, 2
      // Predicated region
      $region17: #{tpu_custom_call.1} parent=5 // pred_check
        %p115 = pneg %p114
      $region18: #{tpu_custom_call.1} parent=5 // pred_check_branch
        %117 = sbr.rel (%p115) target = $region20
      $region19: #{tpu_custom_call.1} parent=5 // pred_region
        // Predicated region
        $region21: #{tpu_custom_call.1} parent=19 // pred_check
          %p118 = pneg %p35
        $region22: #{tpu_custom_call.1} parent=19 // pred_check_branch
          %120 = sbr.rel (%p118) target = $region24
        $region23: #{tpu_custom_call.1} parent=19 // pred_region
          %s121 = sand.u32 %s25, 1
          %s122 = scalar_lea.sflag [#allocation3], %s121
          %s123 = sand.u32 %s25, 1
          %s124 = smul.addr %s123, 8
          %s125 = scalar_lea.vmem [#allocation2], %s124
          %s127 = ssub.s32 128, 128
          %128 = vsyncadd %s122, %s127
          %s129 = smul.addr %s15, 128
          %s130 = scalar_lea.hbm %s0, %s129
          %s132 = sshll.u32 %s125, 4
          %s133 = int_to_ptr.vmem [resolvable:$true] %s132
          %135 = dma.hbm_to_vmem [thread:$0]  %s130, 128, %s133, %s122
        $region24: #{tpu_custom_call.1} parent=19 // pred_fallthru
          _
      $region20: #{tpu_custom_call.1} parent=5 // pred_fallthru
        _
      %p136 = scmp.le.s32.totalorder 1, %s15
      %p137 = scmp.lt.s32.totalorder %s15, 3
      %p138 = pnand %p136, %p137
      %p139 = pneg %p138
      // Predicated region
      $region25: #{tpu_custom_call.1} parent=5 // pred_check
        _
      $region26: #{tpu_custom_call.1} parent=5 // pred_check_branch
        %141 = sbr.rel (%p138) target = $region28
      $region27: #{tpu_custom_call.1} parent=5 // pred_region
        %s142 = ssub.s32 %s15, 1
        %s143 = sand.u32 %s28, 1
        %s144 = scalar_lea.sflag [#allocation3], %s143
        %s145 = sand.u32 %s28, 1
        %s146 = smul.addr %s145, 8
        %s147 = scalar_lea.vmem [#allocation2], %s146
        // Predicated region
        $region29: #{tpu_custom_call.1} parent=27 // pred_check
          %p148 = pneg %p41
        $region30: #{tpu_custom_call.1} parent=27 // pred_check_branch
          %150 = sbr.rel (%p148) target = $region32
        $region31: #{tpu_custom_call.1} parent=27 // pred_region
          %151 = dma.done %s144, 128
        $region32: #{tpu_custom_call.1} parent=27 // pred_fallthru
          _
        // Predicated region
        $region33: #{tpu_custom_call.1} parent=27 // pred_check
          %p152 = pneg %p62
        $region34: #{tpu_custom_call.1} parent=27 // pred_check_branch
          %154 = sbr.rel (%p152) target = $region36
        $region35: #{tpu_custom_call.1} parent=27 // pred_region
          %155 = dma.done [#allocation6], 128
        $region36: #{tpu_custom_call.1} parent=27 // pred_fallthru
          _
        %s156 = sand.u32 %s28, 1
        %s157 = scalar_lea.sflag [#allocation3], %s156
        %s158 = sand.u32 %s28, 1
        %s159 = smul.addr %s158, 8
        %s160 = scalar_lea.vmem [#allocation2], %s159
        %p161 = pneg %p41
        %p162 = pneg %p38
        %p163 = pneg %p62
        %p164 = pneg %p59
        %p165 = pneg %p88
        %p166 = pneg %p85
        %s167 = sand.u32 %s75, 1
        %s168 = scalar_lea.sflag [#allocation4], %s167
        %s169 = sand.u32 %s75, 1
        %s170 = smul.addr %s169, 8
        %s171 = scalar_lea.vmem [#allocation7], %s170
        %v172 = vld [vmem:[%s147] sm:$0xff]
        %v173 = vld [vmem:[#allocation5] sm:$0xff]
        %v174 = vadd.f32 %v172, %v173
        %175 = vst [vmem:[%s171] sm:$0xff] %v174
        %s176 = sand.u32 %s75, 1
        %s177 = scalar_lea.sflag [#allocation4], %s176
        %s178 = sand.u32 %s75, 1
        %s179 = smul.addr %s178, 8
        %s180 = scalar_lea.vmem [#allocation7], %s179
        // Predicated region
        $region37: #{tpu_custom_call.1} parent=27 // pred_check
          %p181 = pneg %p85
        $region38: #{tpu_custom_call.1} parent=27 // pred_check_branch
          %183 = sbr.rel (%p181) target = $region40
        $region39: #{tpu_custom_call.1} parent=27 // pred_region
          %s185 = ssub.s32 128, 128
          %186 = vsyncadd %s177, %s185
          %s187 = smul.addr %s20, 128
          %s188 = scalar_lea.hbm %s2, %s187
          %s190 = sshll.u32 %s180, 4
          %s191 = int_to_ptr.vmem [resolvable:$true] %s190
          %193 = dma.vmem_to_hbm [thread:$0]  %s191, 128, %s188, %s177
        $region40: #{tpu_custom_call.1} parent=27 // pred_fallthru
          _
      $region28: #{tpu_custom_call.1} parent=5 // pred_fallthru
        _
      %p194 = scmp.le.s32.totalorder 2, %s15
      // Predicated region
      $region41: #{tpu_custom_call.1} parent=5 // pred_check
        %p195 = pneg %p194
      $region42: #{tpu_custom_call.1} parent=5 // pred_check_branch
        %197 = sbr.rel (%p195) target = $region44
      $region43: #{tpu_custom_call.1} parent=5 // pred_region
        %s198 = ssub.s32 %s15, 2
        // Predicated region
        $region45: #{tpu_custom_call.1} parent=43 // pred_check
          %p199 = pneg %p91
        $region46: #{tpu_custom_call.1} parent=43 // pred_check_branch
          %201 = sbr.rel (%p199) target = $region48
        $region47: #{tpu_custom_call.1} parent=43 // pred_region
          %s202 = sand.u32 %s76, 1
          %s203 = scalar_lea.sflag [#allocation4], %s202
          %s204 = sand.u32 %s76, 1
          %s205 = smul.addr %s204, 8
          %s206 = scalar_lea.vmem [#allocation7], %s205
          %207 = dma.done %s203, 128
        $region48: #{tpu_custom_call.1} parent=43 // pred_fallthru
          _
      $region44: #{tpu_custom_call.1} parent=5 // pred_fallthru
        _
    $region6: #{tpu_custom_call.1} parent=1 // loop_footer
      %s19 = sadd.s32 1, %s15
    $region7: #{tpu_custom_call.1} parent=1 // loop_footer_branch
      %14 = sbr.rel target = $region3
    $region8: #{tpu_custom_call.1} parent=1 // loop_exit
      _
    %208 = vsyncpa [#allocation3], 1
    %s209 = scalar_lea.sflag [#allocation3], 1
    %210 = vsyncpa %s209, 1
    %211 = vsyncpa [#allocation6], 1
    %212 = vsyncpa [#allocation4], 1
    %s213 = scalar_lea.sflag [#allocation4], 1
    %214 = vsyncpa %s213, 1

// kernel: decoder_block_forward.8
$region0: #{decoder_block_forward.8}
  #allocation0 [shape = 'u32[]', space=smem, size = 0x4, offset = 0x4, fixed_abs, tag = 'smem constant byte address 0x4 - core index']
  #allocation1 [shape = 'u32[144,128]{1,0:T(1,128)}', space=vmem, size = 0x12000, scoped, tag = 'internal scratch']
  %s0 = inlined_call_operand.vmem [shape: f32[2], index: 0, kind: input, shape index: {}]
  %s1 = inlined_call_operand.vmem [shape: f32[2,8,32], index: 1, kind: input, shape index: {}]
  %s2 = inlined_call_operand.vmem [shape: bf16[4,32,8], index: 2, kind: input, shape index: {}]
  %s3 = inlined_call_operand.vmem [shape: f32[4,1,8], index: 3, kind: input, shape index: {}]
  %s4 = inlined_call_operand.vmem [shape: bf16[2,4,8,8], index: 4, kind: output, shape index: {}]
  %s5 = sld [smem:[#allocation0]]
  $region53: #{decoder_block_forward.8} parent=0
    _
  %s7 = ssub.s32 1, %s5
  %s8 = scalar_select 0, %s7, %s5
  $region1: #{decoder_block_forward.8} parent=0
    #allocation2 [shape = 'u8[512]{0}', space=smem, size = 0x200, scoped, tag = 'input window, operand 0, single buffered']
    #allocation3 [shape = 's32[2]{0}', space=sflag, size = 0x8, scoped, tag = 'scoped memory for decoder_block_forward.8']
    %9 = vsyncpa [#allocation3], 0
    loop: start=0, step=1, limit=4
    $region2: #{decoder_block_forward.8} parent=1 // loop_pre_header
      _
    $region3: #{decoder_block_forward.8} parent=1 // loop_header
      %s11 = sphi 0, %s15
      %p12 = scmp.ge.s32.totalorder %s11, 4
      %s18 = sphi 0, %s30
      %s19 = sphi 0, %s26
      %s20 = sphi 0, %s18
      %s21 = sphi 0, %s19
      %s22 = sphi 0, %s20
      %s23 = sphi 0, %s21
      %s31 = sphi 0, %s31
      %s33 = sphi 0, %s31
      %s34 = sphi 0, %s33
      %s48 = sphi 0, %s34
      %s56 = sphi 0, %s58
      %s59 = sphi 0, %s56
      %s60 = sphi 0, %s59
      %s76 = sphi 0, %s60
      %s80 = sphi 0, %s80
      %s82 = sphi 0, %s80
      %s83 = sphi 0, %s82
      %s97 = sphi 0, %s83
      %s101 = sphi 0, %s101
      %s103 = sphi 0, %s101
      %s104 = sphi 0, %s103
      %s118 = sphi 0, %s104
      %s126 = sphi 0, %s128
      %s129 = sphi 0, %s126
      %s130 = sphi 0, %s129
      %s146 = sphi 0, %s130
    $region4: #{decoder_block_forward.8} parent=1 // loop_header_branch
      %14 = sbr.rel (%p12) target = $region8
    $region5: #{decoder_block_forward.8} parent=1 // loop_body
      %s16 = ssub.s32 %s11, 1
      %s17 = ssub.s32 %s11, 2
      %s24 = sadd.s32 1, %s19
      %p25 = scmp.ge.s32.totalorder %s24, 1
      %s26 = scalar_select %p25, 0, %s24
      %s27 = sadd.s32 1, %s18
      %s28 = scalar_select %p25, %s27, %s18
      %p29 = scmp.ge.s32.totalorder %s28, 2
      %s30 = scalar_select %p29, 0, %s28
      %s32 = sadd.s32 %s31, 1
      %p35 = scmp.eq.s32.totalorder %s11, 1
      %p36 = scmp.ne.s32.totalorder %s31, %s33
      %p37 = scmp.eq.s32.totalorder %s11, 0
      %p38 = por %p36, %p37
      %p39 = scmp.ne.s32.totalorder %s31, %s33
      %p40 = scmp.eq.s32.totalorder %s16, 1
      %p41 = por %p39, %p40
      %p42 = scmp.ne.s32.totalorder %s33, %s34
      %p43 = scmp.eq.s32.totalorder %s16, 0
      %p44 = por %p42, %p43
      %p45 = scmp.ne.s32.totalorder %s33, %s34
      %p46 = scmp.eq.s32.totalorder %s17, 1
      %p47 = por %p45, %p46
      %p49 = scmp.ne.s32.totalorder %s34, %s48
      %p50 = scmp.eq.s32.totalorder %s17, 0
      %p51 = por %p49, %p50
      %s52 = ssub.s32 %s18, %s30
      %s53 = ssub.s32 %s19, %s26
      %s54 = sor.u32 %s52, %s53
      %p55 = scmp.eq.s32.totalorder %s54, 0
      %s57 = sadd.s32 %s56, 1
      %s58 = scalar_select %p55, %s56, %s57
      %p61 = pneg %p55
      %p62 = scmp.eq.s32.totalorder %s11, 1
      %p63 = por %p61, %p62
      %p64 = scmp.ne.s32.totalorder %s56, %s59
      %p65 = scmp.eq.s32.totalorder %s11, 0
      %p66 = por %p64, %p65
      %p67 = scmp.ne.s32.totalorder %s56, %s59
      %p68 = scmp.eq.s32.totalorder %s16, 1
      %p69 = por %p67, %p68
      %p70 = scmp.ne.s32.totalorder %s59, %s60
      %p71 = scmp.eq.s32.totalorder %s16, 0
      %p72 = por %p70, %p71
      %p73 = scmp.ne.s32.totalorder %s59, %s60
      %p74 = scmp.eq.s32.totalorder %s17, 1
      %p75 = por %p73, %p74
      %p77 = scmp.ne.s32.totalorder %s60, %s76
      %p78 = scmp.eq.s32.totalorder %s17, 0
      %p79 = por %p77, %p78
      %s81 = sadd.s32 %s80, 1
      %p84 = scmp.eq.s32.totalorder %s11, 1
      %p85 = scmp.ne.s32.totalorder %s80, %s82
      %p86 = scmp.eq.s32.totalorder %s11, 0
      %p87 = por %p85, %p86
      %p88 = scmp.ne.s32.totalorder %s80, %s82
      %p89 = scmp.eq.s32.totalorder %s16, 1
      %p90 = por %p88, %p89
      %p91 = scmp.ne.s32.totalorder %s82, %s83
      %p92 = scmp.eq.s32.totalorder %s16, 0
      %p93 = por %p91, %p92
      %p94 = scmp.ne.s32.totalorder %s82, %s83
      %p95 = scmp.eq.s32.totalorder %s17, 1
      %p96 = por %p94, %p95
      %p98 = scmp.ne.s32.totalorder %s83, %s97
      %p99 = scmp.eq.s32.totalorder %s17, 0
      %p100 = por %p98, %p99
      %s102 = sadd.s32 %s101, 1
      %p105 = scmp.eq.s32.totalorder %s11, 1
      %p106 = scmp.ne.s32.totalorder %s101, %s103
      %p107 = scmp.eq.s32.totalorder %s11, 0
      %p108 = por %p106, %p107
      %p109 = scmp.ne.s32.totalorder %s101, %s103
      %p110 = scmp.eq.s32.totalorder %s16, 1
      %p111 = por %p109, %p110
      %p112 = scmp.ne.s32.totalorder %s103, %s104
      %p113 = scmp.eq.s32.totalorder %s16, 0
      %p114 = por %p112, %p113
      %p115 = scmp.ne.s32.totalorder %s103, %s104
      %p116 = scmp.eq.s32.totalorder %s17, 1
      %p117 = por %p115, %p116
      %p119 = scmp.ne.s32.totalorder %s104, %s118
      %p120 = scmp.eq.s32.totalorder %s17, 0
      %p121 = por %p119, %p120
      %s122 = ssub.s32 %s18, %s30
      %s123 = ssub.s32 %s19, %s26
      %s124 = sor.u32 %s122, %s123
      %p125 = scmp.eq.s32.totalorder %s124, 0
      %s127 = sadd.s32 %s126, 1
      %s128 = scalar_select %p125, %s126, %s127
      %p131 = pneg %p125
      %p132 = scmp.eq.s32.totalorder %s11, 1
      %p133 = por %p131, %p132
      %p134 = scmp.ne.s32.totalorder %s126, %s129
      %p135 = scmp.eq.s32.totalorder %s11, 0
      %p136 = por %p134, %p135
      %p137 = scmp.ne.s32.totalorder %s126, %s129
      %p138 = scmp.eq.s32.totalorder %s16, 1
      %p139 = por %p137, %p138
      %p140 = scmp.ne.s32.totalorder %s129, %s130
      %p141 = scmp.eq.s32.totalorder %s16, 0
      %p142 = por %p140, %p141
      %p143 = scmp.ne.s32.totalorder %s129, %s130
      %p144 = scmp.eq.s32.totalorder %s17, 1
      %p145 = por %p143, %p144
      %p147 = scmp.ne.s32.totalorder %s130, %s146
      %p148 = scmp.eq.s32.totalorder %s17, 0
      %p149 = por %p147, %p148
      %p150 = scmp.le.s32.totalorder 1, %s11
      %p151 = scmp.lt.s32.totalorder %s11, 3
      %p152 = pnand %p150, %p151
      %p153 = pneg %p152
      // Predicated region
      $region9: #{decoder_block_forward.8} parent=5 // pred_check
        _
      $region10: #{decoder_block_forward.8} parent=5 // pred_check_branch
        %155 = sbr.rel (%p152) target = $region12
      $region11: #{decoder_block_forward.8} parent=5 // pred_region
        %s156 = ssub.s32 %s11, 1
        // Predicated region
        $region13: #{decoder_block_forward.8} parent=11 // pred_check
          %p157 = pneg %p44
        $region14: #{decoder_block_forward.8} parent=11 // pred_check_branch
          %159 = sbr.rel (%p157) target = $region16
        $region15: #{decoder_block_forward.8} parent=11 // pred_region
          %s161 = ssub.s32 16, 16
          %162 = vsyncadd [#allocation3], %s161
          %s164 = sshll.u32 %s0, 4
          %s165 = int_to_ptr.vmem [resolvable:$true] %s164
          %167 = dma.vmem_to_smem %s165, 16, [#allocation2], [#allocation3]
        $region16: #{decoder_block_forward.8} parent=11 // pred_fallthru
          _
        // Predicated region
        $region17: #{decoder_block_forward.8} parent=11 // pred_check
          %p168 = pneg %p93
        $region18: #{decoder_block_forward.8} parent=11 // pred_check_branch
          %170 = sbr.rel (%p168) target = $region20
        $region19: #{decoder_block_forward.8} parent=11 // pred_region
          _
        $region20: #{decoder_block_forward.8} parent=11 // pred_fallthru
          _
        // Predicated region
        $region21: #{decoder_block_forward.8} parent=11 // pred_check
          %p171 = pneg %p114
        $region22: #{decoder_block_forward.8} parent=11 // pred_check_branch
          %173 = sbr.rel (%p171) target = $region24
        $region23: #{decoder_block_forward.8} parent=11 // pred_region
          _
        $region24: #{decoder_block_forward.8} parent=11 // pred_fallthru
          _
      $region12: #{decoder_block_forward.8} parent=5 // pred_fallthru
        _
      %p174 = scmp.lt.s32.totalorder %s11, 2
      // Predicated region
      $region25: #{decoder_block_forward.8} parent=5 // pred_check
        %p175 = pneg %p174
      $region26: #{decoder_block_forward.8} parent=5 // pred_check_branch
        %177 = sbr.rel (%p175) target = $region28
      $region27: #{decoder_block_forward.8} parent=5 // pred_region
        // Predicated region
        $region29: #{decoder_block_forward.8} parent=27 // pred_check
          %p178 = pneg %p66
        $region30: #{decoder_block_forward.8} parent=27 // pred_check_branch
          %180 = sbr.rel (%p178) target = $region32
        $region31: #{decoder_block_forward.8} parent=27 // pred_region
          %p181 = scmp.lt.s32.totalorder %s18, 1
          %s182 = scalar_select %p181, %s18, 1
          %p183 = scmp.lt.s32.totalorder %s19, 0
          %s184 = scalar_select %p183, %s19, 0
          %s185 = sadd.s32 %s184, %s182
          %s186 = smul.addr %s185, 8
          %s187 = scalar_lea.vmem %s1, %s186
        $region32: #{decoder_block_forward.8} parent=27 // pred_fallthru
          _
      $region28: #{decoder_block_forward.8} parent=5 // pred_fallthru
        _
      %p188 = scmp.le.s32.totalorder 1, %s11
      %p189 = scmp.lt.s32.totalorder %s11, 3
      %p190 = pnand %p188, %p189
      %p191 = pneg %p190
      // Predicated region
      $region33: #{decoder_block_forward.8} parent=5 // pred_check
        _
      $region34: #{decoder_block_forward.8} parent=5 // pred_check_branch
        %193 = sbr.rel (%p190) target = $region36
      $region35: #{decoder_block_forward.8} parent=5 // pred_region
        %s194 = ssub.s32 %s11, 1
        // Predicated region
        $region37: #{decoder_block_forward.8} parent=35 // pred_check
          %p195 = pneg %p44
        $region38: #{decoder_block_forward.8} parent=35 // pred_check_branch
          %197 = sbr.rel (%p195) target = $region40
        $region39: #{decoder_block_forward.8} parent=35 // pred_region
          %198 = dma.done [#allocation3], 16
        $region40: #{decoder_block_forward.8} parent=35 // pred_fallthru
          _
        %199 = sfence
        %p200 = pneg %p44
        %p201 = pneg %p41
        %p202 = scmp.lt.s32.totalorder %s20, 1
        %s203 = scalar_select %p202, %s20, 1
        %p204 = scmp.lt.s32.totalorder %s21, 0
        %s205 = scalar_select %p204, %s21, 0
        %s206 = sadd.s32 %s205, %s203
        %s207 = smul.addr %s206, 8
        %s208 = scalar_lea.vmem %s1, %s207
        %p209 = pneg %p72
        %p210 = pneg %p69
        %p211 = pneg %p93
        %p212 = pneg %p90
        %p213 = pneg %p114
        %p214 = pneg %p111
        %p215 = pneg %p142
        %p216 = pneg %p139
        %p217 = scmp.lt.s32.totalorder %s20, 1
        %s218 = scalar_select %p217, %s20, 1
        %p219 = scmp.lt.s32.totalorder %s21, 0
        %s220 = scalar_select %p219, %s21, 0
        %s221 = smul.addr %s218, 4
        %s222 = sadd.s32 %s220, %s221
        %s223 = smul.addr %s222, 4
        %s224 = scalar_lea.vmem %s4, %s223
        %p225 = scmp.lt.s32.totalorder %s20, 1
        %s226 = scalar_select %p225, %s20, 1
        %p227 = scmp.lt.s32.totalorder %s21, 0
        %s228 = scalar_select %p227, %s21, 0
        %s229 = sadd.s32 %s228, %s226
        %s230 = smul.addr %s229, 8
        %s231 = scalar_lea.vmem %s1, %s230
        %p232 = scmp.lt.s32.totalorder %s20, 1
        %s233 = scalar_select %p232, %s20, 1
        %p234 = scmp.lt.s32.totalorder %s21, 0
        %s235 = scalar_select %p234, %s21, 0
        %s236 = smul.addr %s233, 4
        %s237 = sadd.s32 %s235, %s236
        %s238 = smul.addr %s237, 4
        %s239 = scalar_lea.vmem %s4, %s238
        %v241 = vld [vmem:[%s231] sm:$0xff]
        %s242 = sld [smem:[#allocation2]]
        %s243 = sld [smem:[#allocation2 + $0x1]]
        %vm244 = vcmask 261120
        %v245 = vsel %vm244, %v241, 0.0
        %246 = vadd.xlane.f32.xlu0 %v245
        %v247 = vpop.xlane.xlu0 %246
        %v248 = vrcp.pop 32.0
        %v249 = vmul.f32 %v247, %v248
        %v250 = vsub.f32 %v241, %v249
        %v251 = vmul.f32 %v250, %v250
        %v252 = vsel %vm244, %v251, 0.0
        %253 = vadd.xlane.f32.xlu0 %v252
        %v254 = vpop.xlane.xlu0 %253
        %v255 = vmul.f32 %v254, %v248
        %v256 = vstv %s242
        %v257 = vmul.f32 %v256, %v250
        %v258 = vadd.f32 %v255, 1e-06
        %v259 = vrsqrt.pop %v258
        %v260 = vmul.f32 %v257, %v259
        %v261 = vstv %s243
        %v262 = vadd.f32 %v260, %v261
        %v263 = vpack.c.bf16 %v262, %v262
        %v264 = vld [vmem:[%s2] sm:$0xf]
        %v265 = vld [vmem:[%s2 + $0x4] sm:$0xf]
        %v266 = vld [vmem:[%s2 + $0x8] sm:$0xf]
        %v267 = vld [vmem:[%s2 + $0xc] sm:$0xf]
        %v268 = vld [vmem:[%s3] sm:$0x1]
        %v270 = vlaneseq
        %v271 = vshrl.u32 %v270, 7
        %v272 = vsub.s32 0, %v271
        %v273 = vrot.slane %v268, %v272
        %v279 = vunpack.c.l.b16 %v264
        %v280 = vunpack.c.l.b16 %v265
        %v281 = vunpack.c.l.b16 %v266
        %v282 = vunpack.c.l.b16 %v267
        %v283 = vpack.c.b16 %v280, %v279
        %v284 = vpack.c.b16 %v282, %v281
        %v288 = vsel %vm244, %v263, 0
        %290 = vmatprep.subr.bf16.mxu0 0
        %291 = vmatpush1.bf16.msra.mxu0 0
        %292 = vmatprep.subr.bf16.mxu0 0
        %293 = vmatpush1.bf16.msra.mxu0 0
        %294 = vmatprep.subr.bf16.mxu0 0
        %295 = vmatpush1.bf16.msra.mxu0 0
        %296 = vmatprep.subr.bf16.mxu0 0
        %297 = vmatpush1.bf16.msra.mxu0 0
        %298 = vmatprep.subr.bf16.mxu0 0
        %299 = vmatpush1.bf16.msra.mxu0 0
        %300 = vmatprep.subr.bf16.mxu0 0
        %301 = vmatpush1.bf16.msra.mxu0 0
        %302 = vmatprep.subr.bf16.mxu0 0
        %303 = vmatpush1.bf16.msra.mxu0 %v284
        %304 = vmatprep.subr.bf16.mxu0 0
        %305 = vmatpush1.bf16.msra.mxu0 %v283
        %306 = vmatprep.subr.bf16.mxu0 0
        %307 = vmatpush2.bf16.msra.mxu0 0
        %308 = vmatprep.subr.bf16.mxu0 0
        %309 = vmatpush2.bf16.msra.mxu0 0
        %310 = vmatprep.subr.bf16.mxu0 0
        %311 = vmatpush2.bf16.msra.mxu0 0
        %312 = vmatprep.subr.bf16.mxu0 0
        %313 = vmatpush2.bf16.msra.mxu0 0
        %314 = vmatprep.subr.bf16.mxu0 0
        %315 = vmatpush2.bf16.msra.mxu0 0
        %316 = vmatprep.subr.bf16.mxu0 0
        %317 = vmatpush2.bf16.msra.mxu0 0
        %318 = vmatprep.subr.bf16.mxu0 0
        %319 = vmatpush2.bf16.msra.mxu0 0
        %320 = vmatprep.subr.bf16.mxu0 0
        %321 = vmatpush2.bf16.msra.mxu0 0
        %322 = vmatprep.mubr.bf16.mxu0 0
        %323 = vmatmul.mubr.bf16.gmra.mxu0 %v288
        %v324 = vpop.f32.mrf.mxu0
        %v325 = vadd.f32 %v273, %v324
        %v326 = vpop.f32.mrf.mxu0
        %v327 = vpop.f32.mrf.mxu0
        %v328 = vpop.f32.mrf.mxu0
        %329 = vdwg.mxu0
        %v330 = vpack.c.bf16 %v325, %v325
        %vm331 = vcmask 60416
        %332 = vst.msk [vmem:[%s239] sm:$0xf] %vm331, %v330
        %s333 = scalar_lea.vmem %s2, 16
        %v334 = vld [vmem:[%s333] sm:$0xf]
        %v335 = vld [vmem:[%s333 + $0x4] sm:$0xf]
        %v336 = vld [vmem:[%s333 + $0x8] sm:$0xf]
        %v337 = vld [vmem:[%s333 + $0xc] sm:$0xf]
        %s338 = scalar_lea.vmem %s3, 1
        %v339 = vld [vmem:[%s338] sm:$0x1]
        %v341 = vlaneseq
        %v342 = vshrl.u32 %v341, 7
        %v343 = vsub.s32 0, %v342
        %v344 = vrot.slane %v339, %v343
        %v350 = vunpack.c.l.b16 %v334
        %v351 = vunpack.c.l.b16 %v335
        %v352 = vunpack.c.l.b16 %v336
        %v353 = vunpack.c.l.b16 %v337
        %v354 = vpack.c.b16 %v351, %v350
        %v355 = vpack.c.b16 %v353, %v352
        %358 = vmatprep.subr.bf16.mxu0 0
        %359 = vmatpush1.bf16.msra.mxu0 0
        %360 = vmatprep.subr.bf16.mxu0 0
        %361 = vmatpush1.bf16.msra.mxu0 0
        %362 = vmatprep.subr.bf16.mxu0 0
        %363 = vmatpush1.bf16.msra.mxu0 0
        %364 = vmatprep.subr.bf16.mxu0 0
        %365 = vmatpush1.bf16.msra.mxu0 0
        %366 = vmatprep.subr.bf16.mxu0 0
        %367 = vmatpush1.bf16.msra.mxu0 0
        %368 = vmatprep.subr.bf16.mxu0 0
        %369 = vmatpush1.bf16.msra.mxu0 0
        %370 = vmatprep.subr.bf16.mxu0 0
        %371 = vmatpush1.bf16.msra.mxu0 %v355
        %372 = vmatprep.subr.bf16.mxu0 0
        %373 = vmatpush1.bf16.msra.mxu0 %v354
        %374 = vmatprep.subr.bf16.mxu0 0
        %375 = vmatpush2.bf16.msra.mxu0 0
        %376 = vmatprep.subr.bf16.mxu0 0
        %377 = vmatpush2.bf16.msra.mxu0 0
        %378 = vmatprep.subr.bf16.mxu0 0
        %379 = vmatpush2.bf16.msra.mxu0 0
        %380 = vmatprep.subr.bf16.mxu0 0
        %381 = vmatpush2.bf16.msra.mxu0 0
        %382 = vmatprep.subr.bf16.mxu0 0
        %383 = vmatpush2.bf16.msra.mxu0 0
        %384 = vmatprep.subr.bf16.mxu0 0
        %385 = vmatpush2.bf16.msra.mxu0 0
        %386 = vmatprep.subr.bf16.mxu0 0
        %387 = vmatpush2.bf16.msra.mxu0 0
        %388 = vmatprep.subr.bf16.mxu0 0
        %389 = vmatpush2.bf16.msra.mxu0 0
        %390 = vmatprep.mubr.bf16.mxu0 0
        %391 = vmatmul.mubr.bf16.gmra.mxu0 %v288
        %v392 = vpop.f32.mrf.mxu0
        %v393 = vadd.f32 %v344, %v392
        %v394 = vpop.f32.mrf.mxu0
        %v395 = vpop.f32.mrf.mxu0
        %v396 = vpop.f32.mrf.mxu0
        %397 = vdwg.mxu0
        %v398 = vpack.c.bf16 %v393, %v393
        %s399 = scalar_lea.vmem %s239, 4
        %400 = vst.msk [vmem:[%s399] sm:$0xf] %vm331, %v398
        %s401 = scalar_lea.vmem %s2, 32
        %v402 = vld [vmem:[%s401] sm:$0xf]
        %v403 = vld [vmem:[%s401 + $0x4] sm:$0xf]
        %v404 = vld [vmem:[%s401 + $0x8] sm:$0xf]
        %v405 = vld [vmem:[%s401 + $0xc] sm:$0xf]
        %s406 = scalar_lea.vmem %s3, 2
        %v407 = vld [vmem:[%s406] sm:$0x1]
        %v409 = vlaneseq
        %v410 = vshrl.u32 %v409, 7
        %v411 = vsub.s32 0, %v410
        %v412 = vrot.slane %v407, %v411
        %v418 = vunpack.c.l.b16 %v402
        %v419 = vunpack.c.l.b16 %v403
        %v420 = vunpack.c.l.b16 %v404
        %v421 = vunpack.c.l.b16 %v405
        %v422 = vpack.c.b16 %v419, %v418
        %v423 = vpack.c.b16 %v421, %v420
        %426 = vmatprep.subr.bf16.mxu0 0
        %427 = vmatpush1.bf16.msra.mxu0 0
        %428 = vmatprep.subr.bf16.mxu0 0
        %429 = vmatpush1.bf16.msra.mxu0 0
        %430 = vmatprep.subr.bf16.mxu0 0
        %431 = vmatpush1.bf16.msra.mxu0 0
        %432 = vmatprep.subr.bf16.mxu0 0
        %433 = vmatpush1.bf16.msra.mxu0 0
        %434 = vmatprep.subr.bf16.mxu0 0
        %435 = vmatpush1.bf16.msra.mxu0 0
        %436 = vmatprep.subr.bf16.mxu0 0
        %437 = vmatpush1.bf16.msra.mxu0 0
        %438 = vmatprep.subr.bf16.mxu0 0
        %439 = vmatpush1.bf16.msra.mxu0 %v423
        %440 = vmatprep.subr.bf16.mxu0 0
        %441 = vmatpush1.bf16.msra.mxu0 %v422
        %442 = vmatprep.subr.bf16.mxu0 0
        %443 = vmatpush2.bf16.msra.mxu0 0
        %444 = vmatprep.subr.bf16.mxu0 0
        %445 = vmatpush2.bf16.msra.mxu0 0
        %446 = vmatprep.subr.bf16.mxu0 0
        %447 = vmatpush2.bf16.msra.mxu0 0
        %448 = vmatprep.subr.bf16.mxu0 0
        %449 = vmatpush2.bf16.msra.mxu0 0
        %450 = vmatprep.subr.bf16.mxu0 0
        %451 = vmatpush2.bf16.msra.mxu0 0
        %452 = vmatprep.subr.bf16.mxu0 0
        %453 = vmatpush2.bf16.msra.mxu0 0
        %454 = vmatprep.subr.bf16.mxu0 0
        %455 = vmatpush2.bf16.msra.mxu0 0
        %456 = vmatprep.subr.bf16.mxu0 0
        %457 = vmatpush2.bf16.msra.mxu0 0
        %458 = vmatprep.mubr.bf16.mxu0 0
        %459 = vmatmul.mubr.bf16.gmra.mxu0 %v288
        %v460 = vpop.f32.mrf.mxu0
        %v461 = vadd.f32 %v412, %v460
        %v462 = vpop.f32.mrf.mxu0
        %v463 = vpop.f32.mrf.mxu0
        %v464 = vpop.f32.mrf.mxu0
        %465 = vdwg.mxu0
        %v466 = vpack.c.bf16 %v461, %v461
        %s467 = scalar_lea.vmem %s239, 8
        %468 = vst.msk [vmem:[%s467] sm:$0xf] %vm331, %v466
        %s469 = scalar_lea.vmem %s2, 48
        %v470 = vld [vmem:[%s469] sm:$0xf]
        %v471 = vld [vmem:[%s469 + $0x4] sm:$0xf]
        %v472 = vld [vmem:[%s469 + $0x8] sm:$0xf]
        %v473 = vld [vmem:[%s469 + $0xc] sm:$0xf]
        %s474 = scalar_lea.vmem %s3, 3
        %v475 = vld [vmem:[%s474] sm:$0x1]
        %v477 = vlaneseq
        %v478 = vshrl.u32 %v477, 7
        %v479 = vsub.s32 0, %v478
        %v480 = vrot.slane %v475, %v479
        %v486 = vunpack.c.l.b16 %v470
        %v487 = vunpack.c.l.b16 %v471
        %v488 = vunpack.c.l.b16 %v472
        %v489 = vunpack.c.l.b16 %v473
        %v490 = vpack.c.b16 %v487, %v486
        %v491 = vpack.c.b16 %v489, %v488
        %494 = vmatprep.subr.bf16.mxu0 0
        %495 = vmatpush1.bf16.msra.mxu0 0
        %496 = vmatprep.subr.bf16.mxu0 0
        %497 = vmatpush1.bf16.msra.mxu0 0
        %498 = vmatprep.subr.bf16.mxu0 0
        %499 = vmatpush1.bf16.msra.mxu0 0
        %500 = vmatprep.subr.bf16.mxu0 0
        %501 = vmatpush1.bf16.msra.mxu0 0
        %502 = vmatprep.subr.bf16.mxu0 0
        %503 = vmatpush1.bf16.msra.mxu0 0
        %504 = vmatprep.subr.bf16.mxu0 0
        %505 = vmatpush1.bf16.msra.mxu0 0
        %506 = vmatprep.subr.bf16.mxu0 0
        %507 = vmatpush1.bf16.msra.mxu0 %v491
        %508 = vmatprep.subr.bf16.mxu0 0
        %509 = vmatpush1.bf16.msra.mxu0 %v490
        %510 = vmatprep.subr.bf16.mxu0 0
        %511 = vmatpush2.bf16.msra.mxu0 0
        %512 = vmatprep.subr.bf16.mxu0 0
        %513 = vmatpush2.bf16.msra.mxu0 0
        %514 = vmatprep.subr.bf16.mxu0 0
        %515 = vmatpush2.bf16.msra.mxu0 0
        %516 = vmatprep.subr.bf16.mxu0 0
        %517 = vmatpush2.bf16.msra.mxu0 0
        %518 = vmatprep.subr.bf16.mxu0 0
        %519 = vmatpush2.bf16.msra.mxu0 0
        %520 = vmatprep.subr.bf16.mxu0 0
        %521 = vmatpush2.bf16.msra.mxu0 0
        %522 = vmatprep.subr.bf16.mxu0 0
        %523 = vmatpush2.bf16.msra.mxu0 0
        %524 = vmatprep.subr.bf16.mxu0 0
        %525 = vmatpush2.bf16.msra.mxu0 0
        %526 = vmatprep.mubr.bf16.mxu0 0
        %527 = vmatmul.mubr.bf16.gmra.mxu0 %v288
        %v528 = vpop.f32.mrf.mxu0
        %v529 = vadd.f32 %v480, %v528
        %v530 = vpop.f32.mrf.mxu0
        %v531 = vpop.f32.mrf.mxu0
        %v532 = vpop.f32.mrf.mxu0
        %533 = vdwg.mxu0
        %v534 = vpack.c.bf16 %v529, %v529
        %s535 = scalar_lea.vmem %s239, 12
        %536 = vst.msk [vmem:[%s535] sm:$0xf] %vm331, %v534
        %p537 = scmp.lt.s32.totalorder %s20, 1
        %s538 = scalar_select %p537, %s20, 1
        %p539 = scmp.lt.s32.totalorder %s21, 0
        %s540 = scalar_select %p539, %s21, 0
        %s541 = smul.addr %s538, 4
        %s542 = sadd.s32 %s540, %s541
        %s543 = smul.addr %s542, 4
        %s544 = scalar_lea.vmem %s4, %s543
        // Predicated region
        $region41: #{decoder_block_forward.8} parent=35 // pred_check
          %p545 = pneg %p139
        $region42: #{decoder_block_forward.8} parent=35 // pred_check_branch
          %547 = sbr.rel (%p545) target = $region44
        $region43: #{decoder_block_forward.8} parent=35 // pred_region
          _
        $region44: #{decoder_block_forward.8} parent=35 // pred_fallthru
          _
      $region36: #{decoder_block_forward.8} parent=5 // pred_fallthru
        _
      %p548 = scmp.le.s32.totalorder 2, %s11
      // Predicated region
      $region45: #{decoder_block_forward.8} parent=5 // pred_check
        %p549 = pneg %p548
      $region46: #{decoder_block_forward.8} parent=5 // pred_check_branch
        %551 = sbr.rel (%p549) target = $region48
      $region47: #{decoder_block_forward.8} parent=5 // pred_region
        %s552 = ssub.s32 %s11, 2
        // Predicated region
        $region49: #{decoder_block_forward.8} parent=47 // pred_check
          %p553 = pneg %p145
        $region50: #{decoder_block_forward.8} parent=47 // pred_check_branch
          %555 = sbr.rel (%p553) target = $region52
        $region51: #{decoder_block_forward.8} parent=47 // pred_region
          %p556 = scmp.lt.s32.totalorder %s22, 1
          %s557 = scalar_select %p556, %s22, 1
          %p558 = scmp.lt.s32.totalorder %s23, 0
          %s559 = scalar_select %p558, %s23, 0
          %s560 = smul.addr %s557, 4
          %s561 = sadd.s32 %s559, %s560
          %s562 = smul.addr %s561, 4
          %s563 = scalar_lea.vmem %s4, %s562
        $region52: #{decoder_block_forward.8} parent=47 // pred_fallthru
          _
      $region48: #{decoder_block_forward.8} parent=5 // pred_fallthru
        _
    $region6: #{decoder_block_forward.8} parent=1 // loop_footer
      %s15 = sadd.s32 1, %s11
    $region7: #{decoder_block_forward.8} parent=1 // loop_footer_branch
      %10 = sbr.rel target = $region3
    $region8: #{decoder_block_forward.8} parent=1 // loop_exit
      _
    %564 = vsyncpa [#allocation3], 1
    %s565 = scalar_lea.sflag [#allocation3], 1
    %566 = vsyncpa %s565, 1

// kernel: decoder_block_forward.7
$region0: #{decoder_block_forward.7}
  #allocation0 [shape = 'u32[]', space=smem, size = 0x4, offset = 0x4, fixed_abs, tag = 'smem constant byte address 0x4 - core index']
  #allocation1 [shape = 'u32[144,128]{1,0:T(1,128)}', space=vmem, size = 0x12000, scoped, tag = 'internal scratch']
  %s0 = inlined_call_operand.vmem [shape: bf16[2,4,8,8], index: 0, kind: input, shape index: {}]
  %s1 = inlined_call_operand.vmem [shape: bf16[2,4,8,8], index: 1, kind: input, shape index: {}]
  %s2 = inlined_call_operand.vmem [shape: bf16[2,4,8,8], index: 2, kind: input, shape index: {}]
  %s3 = inlined_call_operand.vmem [shape: bf16[8,8], index: 3, kind: input, shape index: {}]
  %s4 = inlined_call_operand.vmem [shape: bf16[4,8,32], index: 4, kind: input, shape index: {}]
  %s5 = inlined_call_operand.vmem [shape: f32[1,32], index: 5, kind: input, shape index: {}]
  %s6 = inlined_call_operand.vmem [shape: f32[2,8,32], index: 6, kind: input, shape index: {}, may-alias: {6,7}]
  %s7 = inlined_call_operand.vmem [shape: f32[2,8,32], index: 7, kind: output, shape index: {}, may-alias: {6,7}]
  %s8 = sld [smem:[#allocation0]]
  $region61: #{decoder_block_forward.7} parent=0
    _
  %s10 = ssub.s32 1, %s8
  %s11 = scalar_select 0, %s10, %s8
  loop: start=0, step=1, limit=4
  $region2: #{decoder_block_forward.7} parent=0 // loop_pre_header
    _
  $region3: #{decoder_block_forward.7} parent=0 // loop_header
    %s13 = sphi 0, %s17
    %p14 = scmp.ge.s32.totalorder %s13, 4
    %s20 = sphi 0, %s32
    %s21 = sphi 0, %s28
    %s22 = sphi 0, %s20
    %s23 = sphi 0, %s21
    %s24 = sphi 0, %s22
    %s25 = sphi 0, %s23
    %s37 = sphi 0, %s39
    %s40 = sphi 0, %s37
    %s41 = sphi 0, %s40
    %s57 = sphi 0, %s41
    %s63 = sphi 0, %s65
    %s66 = sphi 0, %s63
    %s67 = sphi 0, %s66
    %s83 = sphi 0, %s67
    %s89 = sphi 0, %s91
    %s92 = sphi 0, %s89
    %s93 = sphi 0, %s92
    %s109 = sphi 0, %s93
    %s115 = sphi 0, %s117
    %s118 = sphi 0, %s115
    %s119 = sphi 0, %s118
    %s135 = sphi 0, %s119
    %s139 = sphi 0, %s139
    %s141 = sphi 0, %s139
    %s142 = sphi 0, %s141
    %s156 = sphi 0, %s142
    %s160 = sphi 0, %s160
    %s162 = sphi 0, %s160
    %s163 = sphi 0, %s162
    %s177 = sphi 0, %s163
    %s185 = sphi 0, %s187
    %s188 = sphi 0, %s185
    %s189 = sphi 0, %s188
    %s205 = sphi 0, %s189
    %s213 = sphi 0, %s215
    %s216 = sphi 0, %s213
    %s217 = sphi 0, %s216
    %s233 = sphi 0, %s217
  $region4: #{decoder_block_forward.7} parent=0 // loop_header_branch
    %16 = sbr.rel (%p14) target = $region8
  $region5: #{decoder_block_forward.7} parent=0 // loop_body
    %s18 = ssub.s32 %s13, 1
    %s19 = ssub.s32 %s13, 2
    %s26 = sadd.s32 1, %s21
    %p27 = scmp.ge.s32.totalorder %s26, 1
    %s28 = scalar_select %p27, 0, %s26
    %s29 = sadd.s32 1, %s20
    %s30 = scalar_select %p27, %s29, %s20
    %p31 = scmp.ge.s32.totalorder %s30, 2
    %s32 = scalar_select %p31, 0, %s30
    %s33 = ssub.s32 %s20, %s32
    %s34 = ssub.s32 %s21, %s28
    %s35 = sor.u32 %s33, %s34
    %p36 = scmp.eq.s32.totalorder %s35, 0
    %s38 = sadd.s32 %s37, 1
    %s39 = scalar_select %p36, %s37, %s38
    %p42 = pneg %p36
    %p43 = scmp.eq.s32.totalorder %s13, 1
    %p44 = por %p42, %p43
    %p45 = scmp.ne.s32.totalorder %s37, %s40
    %p46 = scmp.eq.s32.totalorder %s13, 0
    %p47 = por %p45, %p46
    %p48 = scmp.ne.s32.totalorder %s37, %s40
    %p49 = scmp.eq.s32.totalorder %s18, 1
    %p50 = por %p48, %p49
    %p51 = scmp.ne.s32.totalorder %s40, %s41
    %p52 = scmp.eq.s32.totalorder %s18, 0
    %p53 = por %p51, %p52
    %p54 = scmp.ne.s32.totalorder %s40, %s41
    %p55 = scmp.eq.s32.totalorder %s19, 1
    %p56 = por %p54, %p55
    %p58 = scmp.ne.s32.totalorder %s41, %s57
    %p59 = scmp.eq.s32.totalorder %s19, 0
    %p60 = por %p58, %p59
    %s61 = ssub.s32 %s20, %s32
    %p62 = scmp.eq.s32.totalorder %s61, 0
    %s64 = sadd.s32 %s63, 1
    %s65 = scalar_select %p62, %s63, %s64
    %p68 = pneg %p62
    %p69 = scmp.eq.s32.totalorder %s13, 1
    %p70 = por %p68, %p69
    %p71 = scmp.ne.s32.totalorder %s63, %s66
    %p72 = scmp.eq.s32.totalorder %s13, 0
    %p73 = por %p71, %p72
    %p74 = scmp.ne.s32.totalorder %s63, %s66
    %p75 = scmp.eq.s32.totalorder %s18, 1
    %p76 = por %p74, %p75
    %p77 = scmp.ne.s32.totalorder %s66, %s67
    %p78 = scmp.eq.s32.totalorder %s18, 0
    %p79 = por %p77, %p78
    %p80 = scmp.ne.s32.totalorder %s66, %s67
    %p81 = scmp.eq.s32.totalorder %s19, 1
    %p82 = por %p80, %p81
    %p84 = scmp.ne.s32.totalorder %s67, %s83
    %p85 = scmp.eq.s32.totalorder %s19, 0
    %p86 = por %p84, %p85
    %s87 = ssub.s32 %s20, %s32
    %p88 = scmp.eq.s32.totalorder %s87, 0
    %s90 = sadd.s32 %s89, 1
    %s91 = scalar_select %p88, %s89, %s90
    %p94 = pneg %p88
    %p95 = scmp.eq.s32.totalorder %s13, 1
    %p96 = por %p94, %p95
    %p97 = scmp.ne.s32.totalorder %s89, %s92
    %p98 = scmp.eq.s32.totalorder %s13, 0
    %p99 = por %p97, %p98
    %p100 = scmp.ne.s32.totalorder %s89, %s92
    %p101 = scmp.eq.s32.totalorder %s18, 1
    %p102 = por %p100, %p101
    %p103 = scmp.ne.s32.totalorder %s92, %s93
    %p104 = scmp.eq.s32.totalorder %s18, 0
    %p105 = por %p103, %p104
    %p106 = scmp.ne.s32.totalorder %s92, %s93
    %p107 = scmp.eq.s32.totalorder %s19, 1
    %p108 = por %p106, %p107
    %p110 = scmp.ne.s32.totalorder %s93, %s109
    %p111 = scmp.eq.s32.totalorder %s19, 0
    %p112 = por %p110, %p111
    %s113 = ssub.s32 %s21, %s28
    %p114 = scmp.eq.s32.totalorder %s113, 0
    %s116 = sadd.s32 %s115, 1
    %s117 = scalar_select %p114, %s115, %s116
    %p120 = pneg %p114
    %p121 = scmp.eq.s32.totalorder %s13, 1
    %p122 = por %p120, %p121
    %p123 = scmp.ne.s32.totalorder %s115, %s118
    %p124 = scmp.eq.s32.totalorder %s13, 0
    %p125 = por %p123, %p124
    %p126 = scmp.ne.s32.totalorder %s115, %s118
    %p127 = scmp.eq.s32.totalorder %s18, 1
    %p128 = por %p126, %p127
    %p129 = scmp.ne.s32.totalorder %s118, %s119
    %p130 = scmp.eq.s32.totalorder %s18, 0
    %p131 = por %p129, %p130
    %p132 = scmp.ne.s32.totalorder %s118, %s119
    %p133 = scmp.eq.s32.totalorder %s19, 1
    %p134 = por %p132, %p133
    %p136 = scmp.ne.s32.totalorder %s119, %s135
    %p137 = scmp.eq.s32.totalorder %s19, 0
    %p138 = por %p136, %p137
    %s140 = sadd.s32 %s139, 1
    %p143 = scmp.eq.s32.totalorder %s13, 1
    %p144 = scmp.ne.s32.totalorder %s139, %s141
    %p145 = scmp.eq.s32.totalorder %s13, 0
    %p146 = por %p144, %p145
    %p147 = scmp.ne.s32.totalorder %s139, %s141
    %p148 = scmp.eq.s32.totalorder %s18, 1
    %p149 = por %p147, %p148
    %p150 = scmp.ne.s32.totalorder %s141, %s142
    %p151 = scmp.eq.s32.totalorder %s18, 0
    %p152 = por %p150, %p151
    %p153 = scmp.ne.s32.totalorder %s141, %s142
    %p154 = scmp.eq.s32.totalorder %s19, 1
    %p155 = por %p153, %p154
    %p157 = scmp.ne.s32.totalorder %s142, %s156
    %p158 = scmp.eq.s32.totalorder %s19, 0
    %p159 = por %p157, %p158
    %s161 = sadd.s32 %s160, 1
    %p164 = scmp.eq.s32.totalorder %s13, 1
    %p165 = scmp.ne.s32.totalorder %s160, %s162
    %p166 = scmp.eq.s32.totalorder %s13, 0
    %p167 = por %p165, %p166
    %p168 = scmp.ne.s32.totalorder %s160, %s162
    %p169 = scmp.eq.s32.totalorder %s18, 1
    %p170 = por %p168, %p169
    %p171 = scmp.ne.s32.totalorder %s162, %s163
    %p172 = scmp.eq.s32.totalorder %s18, 0
    %p173 = por %p171, %p172
    %p174 = scmp.ne.s32.totalorder %s162, %s163
    %p175 = scmp.eq.s32.totalorder %s19, 1
    %p176 = por %p174, %p175
    %p178 = scmp.ne.s32.totalorder %s163, %s177
    %p179 = scmp.eq.s32.totalorder %s19, 0
    %p180 = por %p178, %p179
    %s181 = ssub.s32 %s20, %s32
    %s182 = ssub.s32 %s21, %s28
    %s183 = sor.u32 %s181, %s182
    %p184 = scmp.eq.s32.totalorder %s183, 0
    %s186 = sadd.s32 %s185, 1
    %s187 = scalar_select %p184, %s185, %s186
    %p190 = pneg %p184
    %p191 = scmp.eq.s32.totalorder %s13, 1
    %p192 = por %p190, %p191
    %p193 = scmp.ne.s32.totalorder %s185, %s188
    %p194 = scmp.eq.s32.totalorder %s13, 0
    %p195 = por %p193, %p194
    %p196 = scmp.ne.s32.totalorder %s185, %s188
    %p197 = scmp.eq.s32.totalorder %s18, 1
    %p198 = por %p196, %p197
    %p199 = scmp.ne.s32.totalorder %s188, %s189
    %p200 = scmp.eq.s32.totalorder %s18, 0
    %p201 = por %p199, %p200
    %p202 = scmp.ne.s32.totalorder %s188, %s189
    %p203 = scmp.eq.s32.totalorder %s19, 1
    %p204 = por %p202, %p203
    %p206 = scmp.ne.s32.totalorder %s189, %s205
    %p207 = scmp.eq.s32.totalorder %s19, 0
    %p208 = por %p206, %p207
    %s209 = ssub.s32 %s20, %s32
    %s210 = ssub.s32 %s21, %s28
    %s211 = sor.u32 %s209, %s210
    %p212 = scmp.eq.s32.totalorder %s211, 0
    %s214 = sadd.s32 %s213, 1
    %s215 = scalar_select %p212, %s213, %s214
    %p218 = pneg %p212
    %p219 = scmp.eq.s32.totalorder %s13, 1
    %p220 = por %p218, %p219
    %p221 = scmp.ne.s32.totalorder %s213, %s216
    %p222 = scmp.eq.s32.totalorder %s13, 0
    %p223 = por %p221, %p222
    %p224 = scmp.ne.s32.totalorder %s213, %s216
    %p225 = scmp.eq.s32.totalorder %s18, 1
    %p226 = por %p224, %p225
    %p227 = scmp.ne.s32.totalorder %s216, %s217
    %p228 = scmp.eq.s32.totalorder %s18, 0
    %p229 = por %p227, %p228
    %p230 = scmp.ne.s32.totalorder %s216, %s217
    %p231 = scmp.eq.s32.totalorder %s19, 1
    %p232 = por %p230, %p231
    %p234 = scmp.ne.s32.totalorder %s217, %s233
    %p235 = scmp.eq.s32.totalorder %s19, 0
    %p236 = por %p234, %p235
    %p237 = scmp.le.s32.totalorder 1, %s13
    %p238 = scmp.lt.s32.totalorder %s13, 3
    %p239 = pnand %p237, %p238
    %p240 = pneg %p239
    // Predicated region
    $region9: #{decoder_block_forward.7} parent=5 // pred_check
      _
    $region10: #{decoder_block_forward.7} parent=5 // pred_check_branch
      %242 = sbr.rel (%p239) target = $region12
    $region11: #{decoder_block_forward.7} parent=5 // pred_region
      %s243 = ssub.s32 %s13, 1
      // Predicated region
      $region13: #{decoder_block_forward.7} parent=11 // pred_check
        %p244 = pneg %p131
      $region14: #{decoder_block_forward.7} parent=11 // pred_check_branch
        %246 = sbr.rel (%p244) target = $region16
      $region15: #{decoder_block_forward.7} parent=11 // pred_region
        %p247 = scmp.lt.s32.totalorder %s23, 0
        %s248 = scalar_select %p247, %s23, 0
        %s249 = smul.addr %s248, 4
        %s250 = scalar_lea.vmem %s3, %s249
      $region16: #{decoder_block_forward.7} parent=11 // pred_fallthru
        _
      // Predicated region
      $region17: #{decoder_block_forward.7} parent=11 // pred_check
        %p251 = pneg %p152
      $region18: #{decoder_block_forward.7} parent=11 // pred_check_branch
        %253 = sbr.rel (%p251) target = $region20
      $region19: #{decoder_block_forward.7} parent=11 // pred_region
        _
      $region20: #{decoder_block_forward.7} parent=11 // pred_fallthru
        _
      // Predicated region
      $region21: #{decoder_block_forward.7} parent=11 // pred_check
        %p254 = pneg %p173
      $region22: #{decoder_block_forward.7} parent=11 // pred_check_branch
        %256 = sbr.rel (%p254) target = $region24
      $region23: #{decoder_block_forward.7} parent=11 // pred_region
        _
      $region24: #{decoder_block_forward.7} parent=11 // pred_fallthru
        _
    $region12: #{decoder_block_forward.7} parent=5 // pred_fallthru
      _
    %p257 = scmp.lt.s32.totalorder %s13, 2
    // Predicated region
    $region25: #{decoder_block_forward.7} parent=5 // pred_check
      %p258 = pneg %p257
    $region26: #{decoder_block_forward.7} parent=5 // pred_check_branch
      %260 = sbr.rel (%p258) target = $region28
    $region27: #{decoder_block_forward.7} parent=5 // pred_region
      // Predicated region
      $region29: #{decoder_block_forward.7} parent=27 // pred_check
        %p261 = pneg %p47
      $region30: #{decoder_block_forward.7} parent=27 // pred_check_branch
        %263 = sbr.rel (%p261) target = $region32
      $region31: #{decoder_block_forward.7} parent=27 // pred_region
        %p264 = scmp.lt.s32.totalorder %s20, 1
        %s265 = scalar_select %p264, %s20, 1
        %p266 = scmp.lt.s32.totalorder %s21, 0
        %s267 = scalar_select %p266, %s21, 0
        %s268 = smul.addr %s265, 4
        %s269 = sadd.s32 %s267, %s268
        %s270 = smul.addr %s269, 4
        %s271 = scalar_lea.vmem %s0, %s270
      $region32: #{decoder_block_forward.7} parent=27 // pred_fallthru
        _
      // Predicated region
      $region33: #{decoder_block_forward.7} parent=27 // pred_check
        %p272 = pneg %p73
      $region34: #{decoder_block_forward.7} parent=27 // pred_check_branch
        %274 = sbr.rel (%p272) target = $region36
      $region35: #{decoder_block_forward.7} parent=27 // pred_region
        %p275 = scmp.lt.s32.totalorder %s20, 1
        %s276 = scalar_select %p275, %s20, 1
        %s277 = smul.addr %s276, 4
        %s278 = smul.addr %s277, 4
        %s279 = scalar_lea.vmem %s1, %s278
      $region36: #{decoder_block_forward.7} parent=27 // pred_fallthru
        _
      // Predicated region
      $region37: #{decoder_block_forward.7} parent=27 // pred_check
        %p280 = pneg %p99
      $region38: #{decoder_block_forward.7} parent=27 // pred_check_branch
        %282 = sbr.rel (%p280) target = $region40
      $region39: #{decoder_block_forward.7} parent=27 // pred_region
        %p283 = scmp.lt.s32.totalorder %s20, 1
        %s284 = scalar_select %p283, %s20, 1
        %s285 = smul.addr %s284, 4
        %s286 = smul.addr %s285, 4
        %s287 = scalar_lea.vmem %s2, %s286
      $region40: #{decoder_block_forward.7} parent=27 // pred_fallthru
        _
      // Predicated region
      $region41: #{decoder_block_forward.7} parent=27 // pred_check
        %p288 = pneg %p195
      $region42: #{decoder_block_forward.7} parent=27 // pred_check_branch
        %290 = sbr.rel (%p288) target = $region44
      $region43: #{decoder_block_forward.7} parent=27 // pred_region
        %p291 = scmp.lt.s32.totalorder %s20, 1
        %s292 = scalar_select %p291, %s20, 1
        %p293 = scmp.lt.s32.totalorder %s21, 0
        %s294 = scalar_select %p293, %s21, 0
        %s295 = sadd.s32 %s294, %s292
        %s296 = smul.addr %s295, 8
        %s297 = scalar_lea.vmem %s6, %s296
      $region44: #{decoder_block_forward.7} parent=27 // pred_fallthru
        _
    $region28: #{decoder_block_forward.7} parent=5 // pred_fallthru
      _
    %p298 = scmp.le.s32.totalorder 1, %s13
    %p299 = scmp.lt.s32.totalorder %s13, 3
    %p300 = pnand %p298, %p299
    %p301 = pneg %p300
    // Predicated region
    $region45: #{decoder_block_forward.7} parent=5 // pred_check
      _
    $region46: #{decoder_block_forward.7} parent=5 // pred_check_branch
      %303 = sbr.rel (%p300) target = $region48
    $region47: #{decoder_block_forward.7} parent=5 // pred_region
      %s304 = ssub.s32 %s13, 1
      %p305 = scmp.lt.s32.totalorder %s22, 1
      %s306 = scalar_select %p305, %s22, 1
      %p307 = scmp.lt.s32.totalorder %s23, 0
      %s308 = scalar_select %p307, %s23, 0
      %s309 = smul.addr %s306, 4
      %s310 = sadd.s32 %s308, %s309
      %s311 = smul.addr %s310, 4
      %s312 = scalar_lea.vmem %s0, %s311
      %p313 = pneg %p53
      %p314 = pneg %p50
      %p315 = scmp.lt.s32.totalorder %s22, 1
      %s316 = scalar_select %p315, %s22, 1
      %s317 = smul.addr %s316, 4
      %s318 = smul.addr %s317, 4
      %s319 = scalar_lea.vmem %s1, %s318
      %p320 = pneg %p79
      %p321 = pneg %p76
      %p322 = scmp.lt.s32.totalorder %s22, 1
      %s323 = scalar_select %p322, %s22, 1
      %s324 = smul.addr %s323, 4
      %s325 = smul.addr %s324, 4
      %s326 = scalar_lea.vmem %s2, %s325
      %p327 = pneg %p105
      %p328 = pneg %p102
      %p329 = scmp.lt.s32.totalorder %s23, 0
      %s330 = scalar_select %p329, %s23, 0
      %s331 = smul.addr %s330, 4
      %s332 = scalar_lea.vmem %s3, %s331
      %p333 = pneg %p131
      %p334 = pneg %p128
      %p335 = pneg %p152
      %p336 = pneg %p149
      %p337 = pneg %p173
      %p338 = pneg %p170
      %p339 = scmp.lt.s32.totalorder %s22, 1
      %s340 = scalar_select %p339, %s22, 1
      %p341 = scmp.lt.s32.totalorder %s23, 0
      %s342 = scalar_select %p341, %s23, 0
      %s343 = sadd.s32 %s342, %s340
      %s344 = smul.addr %s343, 8
      %s345 = scalar_lea.vmem %s6, %s344
      %p346 = pneg %p201
      %p347 = pneg %p198
      %p348 = pneg %p229
      %p349 = pneg %p226
      %p350 = scmp.lt.s32.totalorder %s22, 1
      %s351 = scalar_select %p350, %s22, 1
      %p352 = scmp.lt.s32.totalorder %s23, 0
      %s353 = scalar_select %p352, %s23, 0
      %s354 = sadd.s32 %s353, %s351
      %s355 = smul.addr %s354, 8
      %s356 = scalar_lea.vmem %s7, %s355
      %p357 = scmp.lt.s32.totalorder %s22, 1
      %s358 = scalar_select %p357, %s22, 1
      %p359 = scmp.lt.s32.totalorder %s23, 0
      %s360 = scalar_select %p359, %s23, 0
      %s361 = smul.addr %s358, 4
      %s362 = sadd.s32 %s360, %s361
      %s363 = smul.addr %s362, 4
      %s364 = scalar_lea.vmem %s0, %s363
      %p365 = scmp.lt.s32.totalorder %s22, 1
      %s366 = scalar_select %p365, %s22, 1
      %s367 = smul.addr %s366, 4
      %s368 = smul.addr %s367, 4
      %s369 = scalar_lea.vmem %s1, %s368
      %p370 = scmp.lt.s32.totalorder %s22, 1
      %s371 = scalar_select %p370, %s22, 1
      %s372 = smul.addr %s371, 4
      %s373 = smul.addr %s372, 4
      %s374 = scalar_lea.vmem %s2, %s373
      %p375 = scmp.lt.s32.totalorder %s23, 0
      %s376 = scalar_select %p375, %s23, 0
      %s377 = smul.addr %s376, 4
      %s378 = scalar_lea.vmem %s3, %s377
      %p379 = scmp.lt.s32.totalorder %s22, 1
      %s380 = scalar_select %p379, %s22, 1
      %p381 = scmp.lt.s32.totalorder %s23, 0
      %s382 = scalar_select %p381, %s23, 0
      %s383 = sadd.s32 %s382, %s380
      %s384 = smul.addr %s383, 8
      %s385 = scalar_lea.vmem %s6, %s384
      %p386 = scmp.lt.s32.totalorder %s22, 1
      %s387 = scalar_select %p386, %s22, 1
      %p388 = scmp.lt.s32.totalorder %s23, 0
      %s389 = scalar_select %p388, %s23, 0
      %s390 = sadd.s32 %s389, %s387
      %s391 = smul.addr %s390, 8
      %s392 = scalar_lea.vmem %s7, %s391
      %v394 = vld [vmem:[%s378] sm:$0xf]
      %v395 = vunpack.c.l.bf16 %v394
      %v396 = vld [vmem:[%s385] sm:$0xff]
      %v397 = vld [vmem:[%s5] sm:$0x1]
      %v399 = vlaneseq
      %v400 = vshrl.u32 %v399, 7
      %v401 = vsub.s32 0, %v400
      %v402 = vrot.slane %v397, %v401
      %v404 = vadd.f32 %v396, %v402
      %v405 = vld [vmem:[%s364] sm:$0xf]
      %v406 = vld [vmem:[%s369] sm:$0xf]
      %vm407 = vcmask 64512
      %v409 = vsel %vm407, %v405, 0
      %v412 = vsel %vm407, %v406, 0
      %414 = vmatprep.subr.bf16.mxu0 0
      %415 = vmatpush1.bf16.xpose.msra.mxu0 0
      %416 = vmatprep.subr.bf16.mxu0 0
      %417 = vmatpush1.bf16.xpose.msra.mxu0 0
      %418 = vmatprep.subr.bf16.mxu0 0
      %419 = vmatpush1.bf16.xpose.msra.mxu0 0
      %420 = vmatprep.subr.bf16.mxu0 0
      %421 = vmatpush1.bf16.xpose.msra.mxu0 0
      %422 = vmatprep.subr.bf16.mxu0 0
      %423 = vmatpush1.bf16.xpose.msra.mxu0 0
      %424 = vmatprep.subr.bf16.mxu0 0
      %425 = vmatpush1.bf16.xpose.msra.mxu0 0
      %426 = vmatprep.subr.bf16.mxu0 0
      %427 = vmatpush1.bf16.xpose.msra.mxu0 0
      %428 = vmatprep.subr.bf16.mxu0 0
      %429 = vmatpush1.bf16.xpose.msra.mxu0 %v412
      %430 = vmatprep.subr.bf16.mxu0 0
      %431 = vmatpush2.bf16.xpose.msra.mxu0 0
      %432 = vmatprep.subr.bf16.mxu0 0
      %433 = vmatpush2.bf16.xpose.msra.mxu0 0
      %434 = vmatprep.subr.bf16.mxu0 0
      %435 = vmatpush2.bf16.xpose.msra.mxu0 0
      %436 = vmatprep.subr.bf16.mxu0 0
      %437 = vmatpush2.bf16.xpose.msra.mxu0 0
      %438 = vmatprep.subr.bf16.mxu0 0
      %439 = vmatpush2.bf16.xpose.msra.mxu0 0
      %440 = vmatprep.subr.bf16.mxu0 0
      %441 = vmatpush2.bf16.xpose.msra.mxu0 0
      %442 = vmatprep.subr.bf16.mxu0 0
      %443 = vmatpush2.bf16.xpose.msra.mxu0 0
      %444 = vmatprep.subr.bf16.mxu0 0
      %445 = vmatpush2.bf16.xpose.msra.mxu0 0
      %446 = vmatprep.mubr.bf16.mxu0 0
      %447 = vmatmul.mubr.bf16.gmra.mxu0 %v409
      %v448 = vpop.f32.mrf.mxu0
      %v449 = vadd.f32 %v395, %v448
      %v450 = vpop.f32.mrf.mxu0
      %v451 = vpop.f32.mrf.mxu0
      %v452 = vpop.f32.mrf.mxu0
      %453 = vdwg.mxu0
      %v454 = vsel %vm407, %v449, -inf
      %455 = vmax.xlane.f32.xlu0 %v454
      %v456 = vpop.xlane.xlu0 %455
      %v457 = vsub.f32 %v449, %v456
      %v458 = vmul.f32 %v457, 1.442695
      %v459 = vpow.pop %v458
      %v460 = vsel %vm407, %v459, 0.0
      %461 = vadd.xlane.f32.xlu0 %v460
      %v462 = vpop.xlane.xlu0 %461
      %v463 = vrcp.pop %v462
      %v464 = vmul.f32 %v459, %v463
      %v465 = vpack.c.bf16 %v464, %v464
      %v466 = vld [vmem:[%s374] sm:$0xf]
      %v468 = vsel %vm407, %v465, 0
      %vm470 = vcmask 1043456
      %v472 = vsel %vm470, %v466, 0
      %474 = vmatprep.subr.bf16.mxu0 0
      %475 = vmatpush1.bf16.msra.mxu0 0
      %476 = vmatprep.subr.bf16.mxu0 0
      %477 = vmatpush1.bf16.msra.mxu0 0
      %478 = vmatprep.subr.bf16.mxu0 0
      %479 = vmatpush1.bf16.msra.mxu0 0
      %480 = vmatprep.subr.bf16.mxu0 0
      %481 = vmatpush1.bf16.msra.mxu0 0
      %482 = vmatprep.subr.bf16.mxu0 0
      %483 = vmatpush1.bf16.msra.mxu0 0
      %484 = vmatprep.subr.bf16.mxu0 0
      %485 = vmatpush1.bf16.msra.mxu0 0
      %486 = vmatprep.subr.bf16.mxu0 0
      %487 = vmatpush1.bf16.msra.mxu0 0
      %488 = vmatprep.subr.bf16.mxu0 0
      %489 = vmatpush1.bf16.msra.mxu0 %v472
      %490 = vmatprep.subr.bf16.mxu0 0
      %491 = vmatpush2.bf16.msra.mxu0 0
      %492 = vmatprep.subr.bf16.mxu0 0
      %493 = vmatpush2.bf16.msra.mxu0 0
      %494 = vmatprep.subr.bf16.mxu0 0
      %495 = vmatpush2.bf16.msra.mxu0 0
      %496 = vmatprep.subr.bf16.mxu0 0
      %497 = vmatpush2.bf16.msra.mxu0 0
      %498 = vmatprep.subr.bf16.mxu0 0
      %499 = vmatpush2.bf16.msra.mxu0 0
      %500 = vmatprep.subr.bf16.mxu0 0
      %501 = vmatpush2.bf16.msra.mxu0 0
      %502 = vmatprep.subr.bf16.mxu0 0
      %503 = vmatpush2.bf16.msra.mxu0 0
      %504 = vmatprep.subr.bf16.mxu0 0
      %505 = vmatpush2.bf16.msra.mxu0 0
      %506 = vmatprep.mubr.bf16.mxu0 0
      %507 = vmatmul.mubr.bf16.gmra.mxu0 %v468
      %v508 = vpop.f32.mrf.mxu0
      %v509 = vadd.f32 0.0, %v508
      %v510 = vpop.f32.mrf.mxu0
      %v511 = vpop.f32.mrf.mxu0
      %v512 = vpop.f32.mrf.mxu0
      %513 = vdwg.mxu0
      %v514 = vpack.c.bf16 %v509, %v509
      %v515 = vld [vmem:[%s4] sm:$0xf]
      %v517 = vsel %vm407, %v514, 0
      %v520 = vsel %vm470, %v515, 0
      %522 = vmatprep.subr.bf16.mxu0 0
      %523 = vmatpush1.bf16.msra.mxu0 0
      %524 = vmatprep.subr.bf16.mxu0 0
      %525 = vmatpush1.bf16.msra.mxu0 0
      %526 = vmatprep.subr.bf16.mxu0 0
      %527 = vmatpush1.bf16.msra.mxu0 0
      %528 = vmatprep.subr.bf16.mxu0 0
      %529 = vmatpush1.bf16.msra.mxu0 0
      %530 = vmatprep.subr.bf16.mxu0 0
      %531 = vmatpush1.bf16.msra.mxu0 0
      %532 = vmatprep.subr.bf16.mxu0 0
      %533 = vmatpush1.bf16.msra.mxu0 0
      %534 = vmatprep.subr.bf16.mxu0 0
      %535 = vmatpush1.bf16.msra.mxu0 0
      %536 = vmatprep.subr.bf16.mxu0 0
      %537 = vmatpush1.bf16.msra.mxu0 %v520
      %538 = vmatprep.subr.bf16.mxu0 0
      %539 = vmatpush2.bf16.msra.mxu0 0
      %540 = vmatprep.subr.bf16.mxu0 0
      %541 = vmatpush2.bf16.msra.mxu0 0
      %542 = vmatprep.subr.bf16.mxu0 0
      %543 = vmatpush2.bf16.msra.mxu0 0
      %544 = vmatprep.subr.bf16.mxu0 0
      %545 = vmatpush2.bf16.msra.mxu0 0
      %546 = vmatprep.subr.bf16.mxu0 0
      %547 = vmatpush2.bf16.msra.mxu0 0
      %548 = vmatprep.subr.bf16.mxu0 0
      %549 = vmatpush2.bf16.msra.mxu0 0
      %550 = vmatprep.subr.bf16.mxu0 0
      %551 = vmatpush2.bf16.msra.mxu0 0
      %552 = vmatprep.subr.bf16.mxu0 0
      %553 = vmatpush2.bf16.msra.mxu0 0
      %554 = vmatprep.mubr.bf16.mxu0 0
      %555 = vmatmul.mubr.bf16.gmra.mxu0 %v517
      %v556 = vpop.f32.mrf.mxu0
      %v557 = vadd.f32 0.0, %v556
      %v558 = vpop.f32.mrf.mxu0
      %v559 = vpop.f32.mrf.mxu0
      %v560 = vpop.f32.mrf.mxu0
      %561 = vdwg.mxu0
      %v562 = vadd.f32 %v404, %v557
      %s563 = scalar_lea.vmem %s364, 4
      %v564 = vld [vmem:[%s563] sm:$0xf]
      %s565 = scalar_lea.vmem %s369, 4
      %v566 = vld [vmem:[%s565] sm:$0xf]
      %v568 = vsel %vm407, %v564, 0
      %v571 = vsel %vm407, %v566, 0
      %573 = vmatprep.subr.bf16.mxu0 0
      %574 = vmatpush1.bf16.xpose.msra.mxu0 0
      %575 = vmatprep.subr.bf16.mxu0 0
      %576 = vmatpush1.bf16.xpose.msra.mxu0 0
      %577 = vmatprep.subr.bf16.mxu0 0
      %578 = vmatpush1.bf16.xpose.msra.mxu0 0
      %579 = vmatprep.subr.bf16.mxu0 0
      %580 = vmatpush1.bf16.xpose.msra.mxu0 0
      %581 = vmatprep.subr.bf16.mxu0 0
      %582 = vmatpush1.bf16.xpose.msra.mxu0 0
      %583 = vmatprep.subr.bf16.mxu0 0
      %584 = vmatpush1.bf16.xpose.msra.mxu0 0
      %585 = vmatprep.subr.bf16.mxu0 0
      %586 = vmatpush1.bf16.xpose.msra.mxu0 0
      %587 = vmatprep.subr.bf16.mxu0 0
      %588 = vmatpush1.bf16.xpose.msra.mxu0 %v571
      %589 = vmatprep.subr.bf16.mxu0 0
      %590 = vmatpush2.bf16.xpose.msra.mxu0 0
      %591 = vmatprep.subr.bf16.mxu0 0
      %592 = vmatpush2.bf16.xpose.msra.mxu0 0
      %593 = vmatprep.subr.bf16.mxu0 0
      %594 = vmatpush2.bf16.xpose.msra.mxu0 0
      %595 = vmatprep.subr.bf16.mxu0 0
      %596 = vmatpush2.bf16.xpose.msra.mxu0 0
      %597 = vmatprep.subr.bf16.mxu0 0
      %598 = vmatpush2.bf16.xpose.msra.mxu0 0
      %599 = vmatprep.subr.bf16.mxu0 0
      %600 = vmatpush2.bf16.xpose.msra.mxu0 0
      %601 = vmatprep.subr.bf16.mxu0 0
      %602 = vmatpush2.bf16.xpose.msra.mxu0 0
      %603 = vmatprep.subr.bf16.mxu0 0
      %604 = vmatpush2.bf16.xpose.msra.mxu0 0
      %605 = vmatprep.mubr.bf16.mxu0 0
      %606 = vmatmul.mubr.bf16.gmra.mxu0 %v568
      %v607 = vpop.f32.mrf.mxu0
      %v608 = vadd.f32 %v395, %v607
      %v609 = vpop.f32.mrf.mxu0
      %v610 = vpop.f32.mrf.mxu0
      %v611 = vpop.f32.mrf.mxu0
      %612 = vdwg.mxu0
      %v613 = vsel %vm407, %v608, -inf
      %614 = vmax.xlane.f32.xlu0 %v613
      %v615 = vpop.xlane.xlu0 %614
      %v616 = vsub.f32 %v608, %v615
      %v617 = vmul.f32 %v616, 1.442695
      %v618 = vpow.pop %v617
      %v619 = vsel %vm407, %v618, 0.0
      %620 = vadd.xlane.f32.xlu0 %v619
      %v621 = vpop.xlane.xlu0 %620
      %v622 = vrcp.pop %v621
      %v623 = vmul.f32 %v618, %v622
      %v624 = vpack.c.bf16 %v623, %v623
      %s625 = scalar_lea.vmem %s374, 4
      %v626 = vld [vmem:[%s625] sm:$0xf]
      %v628 = vsel %vm407, %v624, 0
      %v631 = vsel %vm470, %v626, 0
      %633 = vmatprep.subr.bf16.mxu0 0
      %634 = vmatpush1.bf16.msra.mxu0 0
      %635 = vmatprep.subr.bf16.mxu0 0
      %636 = vmatpush1.bf16.msra.mxu0 0
      %637 = vmatprep.subr.bf16.mxu0 0
      %638 = vmatpush1.bf16.msra.mxu0 0
      %639 = vmatprep.subr.bf16.mxu0 0
      %640 = vmatpush1.bf16.msra.mxu0 0
      %641 = vmatprep.subr.bf16.mxu0 0
      %642 = vmatpush1.bf16.msra.mxu0 0
      %643 = vmatprep.subr.bf16.mxu0 0
      %644 = vmatpush1.bf16.msra.mxu0 0
      %645 = vmatprep.subr.bf16.mxu0 0
      %646 = vmatpush1.bf16.msra.mxu0 0
      %647 = vmatprep.subr.bf16.mxu0 0
      %648 = vmatpush1.bf16.msra.mxu0 %v631
      %649 = vmatprep.subr.bf16.mxu0 0
      %650 = vmatpush2.bf16.msra.mxu0 0
      %651 = vmatprep.subr.bf16.mxu0 0
      %652 = vmatpush2.bf16.msra.mxu0 0
      %653 = vmatprep.subr.bf16.mxu0 0
      %654 = vmatpush2.bf16.msra.mxu0 0
      %655 = vmatprep.subr.bf16.mxu0 0
      %656 = vmatpush2.bf16.msra.mxu0 0
      %657 = vmatprep.subr.bf16.mxu0 0
      %658 = vmatpush2.bf16.msra.mxu0 0
      %659 = vmatprep.subr.bf16.mxu0 0
      %660 = vmatpush2.bf16.msra.mxu0 0
      %661 = vmatprep.subr.bf16.mxu0 0
      %662 = vmatpush2.bf16.msra.mxu0 0
      %663 = vmatprep.subr.bf16.mxu0 0
      %664 = vmatpush2.bf16.msra.mxu0 0
      %665 = vmatprep.mubr.bf16.mxu0 0
      %666 = vmatmul.mubr.bf16.gmra.mxu0 %v628
      %v667 = vpop.f32.mrf.mxu0
      %v668 = vadd.f32 0.0, %v667
      %v669 = vpop.f32.mrf.mxu0
      %v670 = vpop.f32.mrf.mxu0
      %v671 = vpop.f32.mrf.mxu0
      %672 = vdwg.mxu0
      %v673 = vpack.c.bf16 %v668, %v668
      %s674 = scalar_lea.vmem %s4, 4
      %v675 = vld [vmem:[%s674] sm:$0xf]
      %v677 = vsel %vm407, %v673, 0
      %v680 = vsel %vm470, %v675, 0
      %682 = vmatprep.subr.bf16.mxu0 0
      %683 = vmatpush1.bf16.msra.mxu0 0
      %684 = vmatprep.subr.bf16.mxu0 0
      %685 = vmatpush1.bf16.msra.mxu0 0
      %686 = vmatprep.subr.bf16.mxu0 0
      %687 = vmatpush1.bf16.msra.mxu0 0
      %688 = vmatprep.subr.bf16.mxu0 0
      %689 = vmatpush1.bf16.msra.mxu0 0
      %690 = vmatprep.subr.bf16.mxu0 0
      %691 = vmatpush1.bf16.msra.mxu0 0
      %692 = vmatprep.subr.bf16.mxu0 0
      %693 = vmatpush1.bf16.msra.mxu0 0
      %694 = vmatprep.subr.bf16.mxu0 0
      %695 = vmatpush1.bf16.msra.mxu0 0
      %696 = vmatprep.subr.bf16.mxu0 0
      %697 = vmatpush1.bf16.msra.mxu0 %v680
      %698 = vmatprep.subr.bf16.mxu0 0
      %699 = vmatpush2.bf16.msra.mxu0 0
      %700 = vmatprep.subr.bf16.mxu0 0
      %701 = vmatpush2.bf16.msra.mxu0 0
      %702 = vmatprep.subr.bf16.mxu0 0
      %703 = vmatpush2.bf16.msra.mxu0 0
      %704 = vmatprep.subr.bf16.mxu0 0
      %705 = vmatpush2.bf16.msra.mxu0 0
      %706 = vmatprep.subr.bf16.mxu0 0
      %707 = vmatpush2.bf16.msra.mxu0 0
      %708 = vmatprep.subr.bf16.mxu0 0
      %709 = vmatpush2.bf16.msra.mxu0 0
      %710 = vmatprep.subr.bf16.mxu0 0
      %711 = vmatpush2.bf16.msra.mxu0 0
      %712 = vmatprep.subr.bf16.mxu0 0
      %713 = vmatpush2.bf16.msra.mxu0 0
      %714 = vmatprep.mubr.bf16.mxu0 0
      %715 = vmatmul.mubr.bf16.gmra.mxu0 %v677
      %v716 = vpop.f32.mrf.mxu0
      %v717 = vadd.f32 0.0, %v716
      %v718 = vpop.f32.mrf.mxu0
      %v719 = vpop.f32.mrf.mxu0
      %v720 = vpop.f32.mrf.mxu0
      %721 = vdwg.mxu0
      %v722 = vadd.f32 %v562, %v717
      %s723 = scalar_lea.vmem %s364, 8
      %v724 = vld [vmem:[%s723] sm:$0xf]
      %s725 = scalar_lea.vmem %s369, 8
      %v726 = vld [vmem:[%s725] sm:$0xf]
      %v728 = vsel %vm407, %v724, 0
      %v731 = vsel %vm407, %v726, 0
      %733 = vmatprep.subr.bf16.mxu0 0
      %734 = vmatpush1.bf16.xpose.msra.mxu0 0
      %735 = vmatprep.subr.bf16.mxu0 0
      %736 = vmatpush1.bf16.xpose.msra.mxu0 0
      %737 = vmatprep.subr.bf16.mxu0 0
      %738 = vmatpush1.bf16.xpose.msra.mxu0 0
      %739 = vmatprep.subr.bf16.mxu0 0
      %740 = vmatpush1.bf16.xpose.msra.mxu0 0
      %741 = vmatprep.subr.bf16.mxu0 0
      %742 = vmatpush1.bf16.xpose.msra.mxu0 0
      %743 = vmatprep.subr.bf16.mxu0 0
      %744 = vmatpush1.bf16.xpose.msra.mxu0 0
      %745 = vmatprep.subr.bf16.mxu0 0
      %746 = vmatpush1.bf16.xpose.msra.mxu0 0
      %747 = vmatprep.subr.bf16.mxu0 0
      %748 = vmatpush1.bf16.xpose.msra.mxu0 %v731
      %749 = vmatprep.subr.bf16.mxu0 0
      %750 = vmatpush2.bf16.xpose.msra.mxu0 0
      %751 = vmatprep.subr.bf16.mxu0 0
      %752 = vmatpush2.bf16.xpose.msra.mxu0 0
      %753 = vmatprep.subr.bf16.mxu0 0
      %754 = vmatpush2.bf16.xpose.msra.mxu0 0
      %755 = vmatprep.subr.bf16.mxu0 0
      %756 = vmatpush2.bf16.xpose.msra.mxu0 0
      %757 = vmatprep.subr.bf16.mxu0 0
      %758 = vmatpush2.bf16.xpose.msra.mxu0 0
      %759 = vmatprep.subr.bf16.mxu0 0
      %760 = vmatpush2.bf16.xpose.msra.mxu0 0
      %761 = vmatprep.subr.bf16.mxu0 0
      %762 = vmatpush2.bf16.xpose.msra.mxu0 0
      %763 = vmatprep.subr.bf16.mxu0 0
      %764 = vmatpush2.bf16.xpose.msra.mxu0 0
      %765 = vmatprep.mubr.bf16.mxu0 0
      %766 = vmatmul.mubr.bf16.gmra.mxu0 %v728
      %v767 = vpop.f32.mrf.mxu0
      %v768 = vadd.f32 %v395, %v767
      %v769 = vpop.f32.mrf.mxu0
      %v770 = vpop.f32.mrf.mxu0
      %v771 = vpop.f32.mrf.mxu0
      %772 = vdwg.mxu0
      %v773 = vsel %vm407, %v768, -inf
      %774 = vmax.xlane.f32.xlu0 %v773
      %v775 = vpop.xlane.xlu0 %774
      %v776 = vsub.f32 %v768, %v775
      %v777 = vmul.f32 %v776, 1.442695
      %v778 = vpow.pop %v777
      %v779 = vsel %vm407, %v778, 0.0
      %780 = vadd.xlane.f32.xlu0 %v779
      %v781 = vpop.xlane.xlu0 %780
      %v782 = vrcp.pop %v781
      %v783 = vmul.f32 %v778, %v782
      %v784 = vpack.c.bf16 %v783, %v783
      %s785 = scalar_lea.vmem %s374, 8
      %v786 = vld [vmem:[%s785] sm:$0xf]
      %v788 = vsel %vm407, %v784, 0
      %v791 = vsel %vm470, %v786, 0
      %793 = vmatprep.subr.bf16.mxu0 0
      %794 = vmatpush1.bf16.msra.mxu0 0
      %795 = vmatprep.subr.bf16.mxu0 0
      %796 = vmatpush1.bf16.msra.mxu0 0
      %797 = vmatprep.subr.bf16.mxu0 0
      %798 = vmatpush1.bf16.msra.mxu0 0
      %799 = vmatprep.subr.bf16.mxu0 0
      %800 = vmatpush1.bf16.msra.mxu0 0
      %801 = vmatprep.subr.bf16.mxu0 0
      %802 = vmatpush1.bf16.msra.mxu0 0
      %803 = vmatprep.subr.bf16.mxu0 0
      %804 = vmatpush1.bf16.msra.mxu0 0
      %805 = vmatprep.subr.bf16.mxu0 0
      %806 = vmatpush1.bf16.msra.mxu0 0
      %807 = vmatprep.subr.bf16.mxu0 0
      %808 = vmatpush1.bf16.msra.mxu0 %v791
      %809 = vmatprep.subr.bf16.mxu0 0
      %810 = vmatpush2.bf16.msra.mxu0 0
      %811 = vmatprep.subr.bf16.mxu0 0
      %812 = vmatpush2.bf16.msra.mxu0 0
      %813 = vmatprep.subr.bf16.mxu0 0
      %814 = vmatpush2.bf16.msra.mxu0 0
      %815 = vmatprep.subr.bf16.mxu0 0
      %816 = vmatpush2.bf16.msra.mxu0 0
      %817 = vmatprep.subr.bf16.mxu0 0
      %818 = vmatpush2.bf16.msra.mxu0 0
      %819 = vmatprep.subr.bf16.mxu0 0
      %820 = vmatpush2.bf16.msra.mxu0 0
      %821 = vmatprep.subr.bf16.mxu0 0
      %822 = vmatpush2.bf16.msra.mxu0 0
      %823 = vmatprep.subr.bf16.mxu0 0
      %824 = vmatpush2.bf16.msra.mxu0 0
      %825 = vmatprep.mubr.bf16.mxu0 0
      %826 = vmatmul.mubr.bf16.gmra.mxu0 %v788
      %v827 = vpop.f32.mrf.mxu0
      %v828 = vadd.f32 0.0, %v827
      %v829 = vpop.f32.mrf.mxu0
      %v830 = vpop.f32.mrf.mxu0
      %v831 = vpop.f32.mrf.mxu0
      %832 = vdwg.mxu0
      %v833 = vpack.c.bf16 %v828, %v828
      %s834 = scalar_lea.vmem %s4, 8
      %v835 = vld [vmem:[%s834] sm:$0xf]
      %v837 = vsel %vm407, %v833, 0
      %v840 = vsel %vm470, %v835, 0
      %842 = vmatprep.subr.bf16.mxu0 0
      %843 = vmatpush1.bf16.msra.mxu0 0
      %844 = vmatprep.subr.bf16.mxu0 0
      %845 = vmatpush1.bf16.msra.mxu0 0
      %846 = vmatprep.subr.bf16.mxu0 0
      %847 = vmatpush1.bf16.msra.mxu0 0
      %848 = vmatprep.subr.bf16.mxu0 0
      %849 = vmatpush1.bf16.msra.mxu0 0
      %850 = vmatprep.subr.bf16.mxu0 0
      %851 = vmatpush1.bf16.msra.mxu0 0
      %852 = vmatprep.subr.bf16.mxu0 0
      %853 = vmatpush1.bf16.msra.mxu0 0
      %854 = vmatprep.subr.bf16.mxu0 0
      %855 = vmatpush1.bf16.msra.mxu0 0
      %856 = vmatprep.subr.bf16.mxu0 0
      %857 = vmatpush1.bf16.msra.mxu0 %v840
      %858 = vmatprep.subr.bf16.mxu0 0
      %859 = vmatpush2.bf16.msra.mxu0 0
      %860 = vmatprep.subr.bf16.mxu0 0
      %861 = vmatpush2.bf16.msra.mxu0 0
      %862 = vmatprep.subr.bf16.mxu0 0
      %863 = vmatpush2.bf16.msra.mxu0 0
      %864 = vmatprep.subr.bf16.mxu0 0
      %865 = vmatpush2.bf16.msra.mxu0 0
      %866 = vmatprep.subr.bf16.mxu0 0
      %867 = vmatpush2.bf16.msra.mxu0 0
      %868 = vmatprep.subr.bf16.mxu0 0
      %869 = vmatpush2.bf16.msra.mxu0 0
      %870 = vmatprep.subr.bf16.mxu0 0
      %871 = vmatpush2.bf16.msra.mxu0 0
      %872 = vmatprep.subr.bf16.mxu0 0
      %873 = vmatpush2.bf16.msra.mxu0 0
      %874 = vmatprep.mubr.bf16.mxu0 0
      %875 = vmatmul.mubr.bf16.gmra.mxu0 %v837
      %v876 = vpop.f32.mrf.mxu0
      %v877 = vadd.f32 0.0, %v876
      %v878 = vpop.f32.mrf.mxu0
      %v879 = vpop.f32.mrf.mxu0
      %v880 = vpop.f32.mrf.mxu0
      %881 = vdwg.mxu0
      %v882 = vadd.f32 %v722, %v877
      %s883 = scalar_lea.vmem %s364, 12
      %v884 = vld [vmem:[%s883] sm:$0xf]
      %s885 = scalar_lea.vmem %s369, 12
      %v886 = vld [vmem:[%s885] sm:$0xf]
      %v888 = vsel %vm407, %v884, 0
      %v891 = vsel %vm407, %v886, 0
      %893 = vmatprep.subr.bf16.mxu0 0
      %894 = vmatpush1.bf16.xpose.msra.mxu0 0
      %895 = vmatprep.subr.bf16.mxu0 0
      %896 = vmatpush1.bf16.xpose.msra.mxu0 0
      %897 = vmatprep.subr.bf16.mxu0 0
      %898 = vmatpush1.bf16.xpose.msra.mxu0 0
      %899 = vmatprep.subr.bf16.mxu0 0
      %900 = vmatpush1.bf16.xpose.msra.mxu0 0
      %901 = vmatprep.subr.bf16.mxu0 0
      %902 = vmatpush1.bf16.xpose.msra.mxu0 0
      %903 = vmatprep.subr.bf16.mxu0 0
      %904 = vmatpush1.bf16.xpose.msra.mxu0 0
      %905 = vmatprep.subr.bf16.mxu0 0
      %906 = vmatpush1.bf16.xpose.msra.mxu0 0
      %907 = vmatprep.subr.bf16.mxu0 0
      %908 = vmatpush1.bf16.xpose.msra.mxu0 %v891
      %909 = vmatprep.subr.bf16.mxu0 0
      %910 = vmatpush2.bf16.xpose.msra.mxu0 0
      %911 = vmatprep.subr.bf16.mxu0 0
      %912 = vmatpush2.bf16.xpose.msra.mxu0 0
      %913 = vmatprep.subr.bf16.mxu0 0
      %914 = vmatpush2.bf16.xpose.msra.mxu0 0
      %915 = vmatprep.subr.bf16.mxu0 0
      %916 = vmatpush2.bf16.xpose.msra.mxu0 0
      %917 = vmatprep.subr.bf16.mxu0 0
      %918 = vmatpush2.bf16.xpose.msra.mxu0 0
      %919 = vmatprep.subr.bf16.mxu0 0
      %920 = vmatpush2.bf16.xpose.msra.mxu0 0
      %921 = vmatprep.subr.bf16.mxu0 0
      %922 = vmatpush2.bf16.xpose.msra.mxu0 0
      %923 = vmatprep.subr.bf16.mxu0 0
      %924 = vmatpush2.bf16.xpose.msra.mxu0 0
      %925 = vmatprep.mubr.bf16.mxu0 0
      %926 = vmatmul.mubr.bf16.gmra.mxu0 %v888
      %v927 = vpop.f32.mrf.mxu0
      %v928 = vadd.f32 %v395, %v927
      %v929 = vpop.f32.mrf.mxu0
      %v930 = vpop.f32.mrf.mxu0
      %v931 = vpop.f32.mrf.mxu0
      %932 = vdwg.mxu0
      %v933 = vsel %vm407, %v928, -inf
      %934 = vmax.xlane.f32.xlu0 %v933
      %v935 = vpop.xlane.xlu0 %934
      %v936 = vsub.f32 %v928, %v935
      %v937 = vmul.f32 %v936, 1.442695
      %v938 = vpow.pop %v937
      %v939 = vsel %vm407, %v938, 0.0
      %940 = vadd.xlane.f32.xlu0 %v939
      %v941 = vpop.xlane.xlu0 %940
      %v942 = vrcp.pop %v941
      %v943 = vmul.f32 %v938, %v942
      %v944 = vpack.c.bf16 %v943, %v943
      %s945 = scalar_lea.vmem %s374, 12
      %v946 = vld [vmem:[%s945] sm:$0xf]
      %v948 = vsel %vm407, %v944, 0
      %v951 = vsel %vm470, %v946, 0
      %953 = vmatprep.subr.bf16.mxu0 0
      %954 = vmatpush1.bf16.msra.mxu0 0
      %955 = vmatprep.subr.bf16.mxu0 0
      %956 = vmatpush1.bf16.msra.mxu0 0
      %957 = vmatprep.subr.bf16.mxu0 0
      %958 = vmatpush1.bf16.msra.mxu0 0
      %959 = vmatprep.subr.bf16.mxu0 0
      %960 = vmatpush1.bf16.msra.mxu0 0
      %961 = vmatprep.subr.bf16.mxu0 0
      %962 = vmatpush1.bf16.msra.mxu0 0
      %963 = vmatprep.subr.bf16.mxu0 0
      %964 = vmatpush1.bf16.msra.mxu0 0
      %965 = vmatprep.subr.bf16.mxu0 0
      %966 = vmatpush1.bf16.msra.mxu0 0
      %967 = vmatprep.subr.bf16.mxu0 0
      %968 = vmatpush1.bf16.msra.mxu0 %v951
      %969 = vmatprep.subr.bf16.mxu0 0
      %970 = vmatpush2.bf16.msra.mxu0 0
      %971 = vmatprep.subr.bf16.mxu0 0
      %972 = vmatpush2.bf16.msra.mxu0 0
      %973 = vmatprep.subr.bf16.mxu0 0
      %974 = vmatpush2.bf16.msra.mxu0 0
      %975 = vmatprep.subr.bf16.mxu0 0
      %976 = vmatpush2.bf16.msra.mxu0 0
      %977 = vmatprep.subr.bf16.mxu0 0
      %978 = vmatpush2.bf16.msra.mxu0 0
      %979 = vmatprep.subr.bf16.mxu0 0
      %980 = vmatpush2.bf16.msra.mxu0 0
      %981 = vmatprep.subr.bf16.mxu0 0
      %982 = vmatpush2.bf16.msra.mxu0 0
      %983 = vmatprep.subr.bf16.mxu0 0
      %984 = vmatpush2.bf16.msra.mxu0 0
      %985 = vmatprep.mubr.bf16.mxu0 0
      %986 = vmatmul.mubr.bf16.gmra.mxu0 %v948
      %v987 = vpop.f32.mrf.mxu0
      %v988 = vadd.f32 0.0, %v987
      %v989 = vpop.f32.mrf.mxu0
      %v990 = vpop.f32.mrf.mxu0
      %v991 = vpop.f32.mrf.mxu0
      %992 = vdwg.mxu0
      %v993 = vpack.c.bf16 %v988, %v988
      %s994 = scalar_lea.vmem %s4, 12
      %v995 = vld [vmem:[%s994] sm:$0xf]
      %v997 = vsel %vm407, %v993, 0
      %v1000 = vsel %vm470, %v995, 0
      %1002 = vmatprep.subr.bf16.mxu0 0
      %1003 = vmatpush1.bf16.msra.mxu0 0
      %1004 = vmatprep.subr.bf16.mxu0 0
      %1005 = vmatpush1.bf16.msra.mxu0 0
      %1006 = vmatprep.subr.bf16.mxu0 0
      %1007 = vmatpush1.bf16.msra.mxu0 0
      %1008 = vmatprep.subr.bf16.mxu0 0
      %1009 = vmatpush1.bf16.msra.mxu0 0
      %1010 = vmatprep.subr.bf16.mxu0 0
      %1011 = vmatpush1.bf16.msra.mxu0 0
      %1012 = vmatprep.subr.bf16.mxu0 0
      %1013 = vmatpush1.bf16.msra.mxu0 0
      %1014 = vmatprep.subr.bf16.mxu0 0
      %1015 = vmatpush1.bf16.msra.mxu0 0
      %1016 = vmatprep.subr.bf16.mxu0 0
      %1017 = vmatpush1.bf16.msra.mxu0 %v1000
      %1018 = vmatprep.subr.bf16.mxu0 0
      %1019 = vmatpush2.bf16.msra.mxu0 0
      %1020 = vmatprep.subr.bf16.mxu0 0
      %1021 = vmatpush2.bf16.msra.mxu0 0
      %1022 = vmatprep.subr.bf16.mxu0 0
      %1023 = vmatpush2.bf16.msra.mxu0 0
      %1024 = vmatprep.subr.bf16.mxu0 0
      %1025 = vmatpush2.bf16.msra.mxu0 0
      %1026 = vmatprep.subr.bf16.mxu0 0
      %1027 = vmatpush2.bf16.msra.mxu0 0
      %1028 = vmatprep.subr.bf16.mxu0 0
      %1029 = vmatpush2.bf16.msra.mxu0 0
      %1030 = vmatprep.subr.bf16.mxu0 0
      %1031 = vmatpush2.bf16.msra.mxu0 0
      %1032 = vmatprep.subr.bf16.mxu0 0
      %1033 = vmatpush2.bf16.msra.mxu0 0
      %1034 = vmatprep.mubr.bf16.mxu0 0
      %1035 = vmatmul.mubr.bf16.gmra.mxu0 %v997
      %v1036 = vpop.f32.mrf.mxu0
      %v1037 = vadd.f32 0.0, %v1036
      %v1038 = vpop.f32.mrf.mxu0
      %v1039 = vpop.f32.mrf.mxu0
      %v1040 = vpop.f32.mrf.mxu0
      %1041 = vdwg.mxu0
      %v1042 = vadd.f32 %v882, %v1037
      %vm1043 = vcmask 261120
      %1044 = vst.msk [vmem:[%s392] sm:$0xff] %vm1043, %v1042
      %p1045 = scmp.lt.s32.totalorder %s22, 1
      %s1046 = scalar_select %p1045, %s22, 1
      %p1047 = scmp.lt.s32.totalorder %s23, 0
      %s1048 = scalar_select %p1047, %s23, 0
      %s1049 = sadd.s32 %s1048, %s1046
      %s1050 = smul.addr %s1049, 8
      %s1051 = scalar_lea.vmem %s7, %s1050
      // Predicated region
      $region49: #{decoder_block_forward.7} parent=47 // pred_check
        %p1052 = pneg %p226
      $region50: #{decoder_block_forward.7} parent=47 // pred_check_branch
        %1054 = sbr.rel (%p1052) target = $region52
      $region51: #{decoder_block_forward.7} parent=47 // pred_region
        _
      $region52: #{decoder_block_forward.7} parent=47 // pred_fallthru
        _
    $region48: #{decoder_block_forward.7} parent=5 // pred_fallthru
      _
    %p1055 = scmp.le.s32.totalorder 2, %s13
    // Predicated region
    $region53: #{decoder_block_forward.7} parent=5 // pred_check
      %p1056 = pneg %p1055
    $region54: #{decoder_block_forward.7} parent=5 // pred_check_branch
      %1058 = sbr.rel (%p1056) target = $region56
    $region55: #{decoder_block_forward.7} parent=5 // pred_region
      %s1059 = ssub.s32 %s13, 2
      // Predicated region
      $region57: #{decoder_block_forward.7} parent=55 // pred_check
        %p1060 = pneg %p232
      $region58: #{decoder_block_forward.7} parent=55 // pred_check_branch
        %1062 = sbr.rel (%p1060) target = $region60
      $region59: #{decoder_block_forward.7} parent=55 // pred_region
        %p1063 = scmp.lt.s32.totalorder %s24, 1
        %s1064 = scalar_select %p1063, %s24, 1
        %p1065 = scmp.lt.s32.totalorder %s25, 0
        %s1066 = scalar_select %p1065, %s25, 0
        %s1067 = sadd.s32 %s1066, %s1064
        %s1068 = smul.addr %s1067, 8
        %s1069 = scalar_lea.vmem %s7, %s1068
      $region60: #{decoder_block_forward.7} parent=55 // pred_fallthru
        _
    $region56: #{decoder_block_forward.7} parent=5 // pred_fallthru
      _
  $region6: #{decoder_block_forward.7} parent=0 // loop_footer
    %s17 = sadd.s32 1, %s13
  $region7: #{decoder_block_forward.7} parent=0 // loop_footer_branch
    %12 = sbr.rel target = $region3
  $region8: #{decoder_block_forward.7} parent=0 // loop_exit
    _

// kernel: decoder_block_forward.6
$region0: #{decoder_block_forward.6}
  #allocation0 [shape = 'u32[]', space=smem, size = 0x4, offset = 0x4, fixed_abs, tag = 'smem constant byte address 0x4 - core index']
  #allocation1 [shape = 'u32[144,128]{1,0:T(1,128)}', space=vmem, size = 0x12000, scoped, tag = 'internal scratch']
  %s0 = inlined_call_operand.vmem [shape: f32[2], index: 0, kind: input, shape index: {}]
  %s1 = inlined_call_operand.vmem [shape: f32[2,8,32], index: 1, kind: input, shape index: {}]
  %s2 = inlined_call_operand.vmem [shape: bf16[4,32,8], index: 2, kind: input, shape index: {}]
  %s3 = inlined_call_operand.vmem [shape: f32[4,1,8], index: 3, kind: input, shape index: {}]
  %s4 = inlined_call_operand.vmem [shape: bf16[4,32,8], index: 4, kind: input, shape index: {}]
  %s5 = inlined_call_operand.vmem [shape: f32[4,1,8], index: 5, kind: input, shape index: {}]
  %s6 = inlined_call_operand.vmem [shape: bf16[4,32,8], index: 6, kind: input, shape index: {}]
  %s7 = inlined_call_operand.vmem [shape: f32[4,1,8], index: 7, kind: input, shape index: {}]
  %s8 = inlined_call_operand.vmem [shape: bf16[2,4,8,8], index: 8, kind: output, shape index: {0}]
  %s9 = inlined_call_operand.vmem [shape: bf16[2,4,8,8], index: 9, kind: output, shape index: {1}]
  %s10 = inlined_call_operand.vmem [shape: bf16[2,4,8,8], index: 10, kind: output, shape index: {2}]
  %11 = xla_tuple %s8, %s9, %s10
  %s12 = sld [smem:[#allocation0]]
  $region85: #{decoder_block_forward.6} parent=0
    _
  %s14 = ssub.s32 1, %s12
  %s15 = scalar_select 0, %s14, %s12
  $region1: #{decoder_block_forward.6} parent=0
    #allocation2 [shape = 'u8[512]{0}', space=smem, size = 0x200, scoped, tag = 'input window, operand 0, single buffered']
    #allocation3 [shape = 's32[2]{0}', space=sflag, size = 0x8, scoped, tag = 'scoped memory for decoder_block_forward.6']
    %16 = vsyncpa [#allocation3], 0
    loop: start=0, step=1, limit=4
    $region2: #{decoder_block_forward.6} parent=1 // loop_pre_header
      _
    $region3: #{decoder_block_forward.6} parent=1 // loop_header
      %s18 = sphi 0, %s22
      %p19 = scmp.ge.s32.totalorder %s18, 4
      %s25 = sphi 0, %s37
      %s26 = sphi 0, %s33
      %s27 = sphi 0, %s25
      %s28 = sphi 0, %s26
      %s29 = sphi 0, %s27
      %s30 = sphi 0, %s28
      %s38 = sphi 0, %s38
      %s40 = sphi 0, %s38
      %s41 = sphi 0, %s40
      %s55 = sphi 0, %s41
      %s63 = sphi 0, %s65
      %s66 = sphi 0, %s63
      %s67 = sphi 0, %s66
      %s83 = sphi 0, %s67
      %s87 = sphi 0, %s87
      %s89 = sphi 0, %s87
      %s90 = sphi 0, %s89
      %s104 = sphi 0, %s90
      %s108 = sphi 0, %s108
      %s110 = sphi 0, %s108
      %s111 = sphi 0, %s110
      %s125 = sphi 0, %s111
      %s129 = sphi 0, %s129
      %s131 = sphi 0, %s129
      %s132 = sphi 0, %s131
      %s146 = sphi 0, %s132
      %s150 = sphi 0, %s150
      %s152 = sphi 0, %s150
      %s153 = sphi 0, %s152
      %s167 = sphi 0, %s153
      %s171 = sphi 0, %s171
      %s173 = sphi 0, %s171
      %s174 = sphi 0, %s173
      %s188 = sphi 0, %s174
      %s192 = sphi 0, %s192
      %s194 = sphi 0, %s192
      %s195 = sphi 0, %s194
      %s209 = sphi 0, %s195
      %s217 = sphi 0, %s219
      %s220 = sphi 0, %s217
      %s221 = sphi 0, %s220
      %s237 = sphi 0, %s221
      %s245 = sphi 0, %s247
      %s248 = sphi 0, %s245
      %s249 = sphi 0, %s248
      %s265 = sphi 0, %s249
      %s273 = sphi 0, %s275
      %s276 = sphi 0, %s273
      %s277 = sphi 0, %s276
      %s293 = sphi 0, %s277
    $region4: #{decoder_block_forward.6} parent=1 // loop_header_branch
      %21 = sbr.rel (%p19) target = $region8
    $region5: #{decoder_block_forward.6} parent=1 // loop_body
      %s23 = ssub.s32 %s18, 1
      %s24 = ssub.s32 %s18, 2
      %s31 = sadd.s32 1, %s26
      %p32 = scmp.ge.s32.totalorder %s31, 1
      %s33 = scalar_select %p32, 0, %s31
      %s34 = sadd.s32 1, %s25
      %s35 = scalar_select %p32, %s34, %s25
      %p36 = scmp.ge.s32.totalorder %s35, 2
      %s37 = scalar_select %p36, 0, %s35
      %s39 = sadd.s32 %s38, 1
      %p42 = scmp.eq.s32.totalorder %s18, 1
      %p43 = scmp.ne.s32.totalorder %s38, %s40
      %p44 = scmp.eq.s32.totalorder %s18, 0
      %p45 = por %p43, %p44
      %p46 = scmp.ne.s32.totalorder %s38, %s40
      %p47 = scmp.eq.s32.totalorder %s23, 1
      %p48 = por %p46, %p47
      %p49 = scmp.ne.s32.totalorder %s40, %s41
      %p50 = scmp.eq.s32.totalorder %s23, 0
      %p51 = por %p49, %p50
      %p52 = scmp.ne.s32.totalorder %s40, %s41
      %p53 = scmp.eq.s32.totalorder %s24, 1
      %p54 = por %p52, %p53
      %p56 = scmp.ne.s32.totalorder %s41, %s55
      %p57 = scmp.eq.s32.totalorder %s24, 0
      %p58 = por %p56, %p57
      %s59 = ssub.s32 %s25, %s37
      %s60 = ssub.s32 %s26, %s33
      %s61 = sor.u32 %s59, %s60
      %p62 = scmp.eq.s32.totalorder %s61, 0
      %s64 = sadd.s32 %s63, 1
      %s65 = scalar_select %p62, %s63, %s64
      %p68 = pneg %p62
      %p69 = scmp.eq.s32.totalorder %s18, 1
      %p70 = por %p68, %p69
      %p71 = scmp.ne.s32.totalorder %s63, %s66
      %p72 = scmp.eq.s32.totalorder %s18, 0
      %p73 = por %p71, %p72
      %p74 = scmp.ne.s32.totalorder %s63, %s66
      %p75 = scmp.eq.s32.totalorder %s23, 1
      %p76 = por %p74, %p75
      %p77 = scmp.ne.s32.totalorder %s66, %s67
      %p78 = scmp.eq.s32.totalorder %s23, 0
      %p79 = por %p77, %p78
      %p80 = scmp.ne.s32.totalorder %s66, %s67
      %p81 = scmp.eq.s32.totalorder %s24, 1
      %p82 = por %p80, %p81
      %p84 = scmp.ne.s32.totalorder %s67, %s83
      %p85 = scmp.eq.s32.totalorder %s24, 0
      %p86 = por %p84, %p85
      %s88 = sadd.s32 %s87, 1
      %p91 = scmp.eq.s32.totalorder %s18, 1
      %p92 = scmp.ne.s32.totalorder %s87, %s89
      %p93 = scmp.eq.s32.totalorder %s18, 0
      %p94 = por %p92, %p93
      %p95 = scmp.ne.s32.totalorder %s87, %s89
      %p96 = scmp.eq.s32.totalorder %s23, 1
      %p97 = por %p95, %p96
      %p98 = scmp.ne.s32.totalorder %s89, %s90
      %p99 = scmp.eq.s32.totalorder %s23, 0
      %p100 = por %p98, %p99
      %p101 = scmp.ne.s32.totalorder %s89, %s90
      %p102 = scmp.eq.s32.totalorder %s24, 1
      %p103 = por %p101, %p102
      %p105 = scmp.ne.s32.totalorder %s90, %s104
      %p106 = scmp.eq.s32.totalorder %s24, 0
      %p107 = por %p105, %p106
      %s109 = sadd.s32 %s108, 1
      %p112 = scmp.eq.s32.totalorder %s18, 1
      %p113 = scmp.ne.s32.totalorder %s108, %s110
      %p114 = scmp.eq.s32.totalorder %s18, 0
      %p115 = por %p113, %p114
      %p116 = scmp.ne.s32.totalorder %s108, %s110
      %p117 = scmp.eq.s32.totalorder %s23, 1
      %p118 = por %p116, %p117
      %p119 = scmp.ne.s32.totalorder %s110, %s111
      %p120 = scmp.eq.s32.totalorder %s23, 0
      %p121 = por %p119, %p120
      %p122 = scmp.ne.s32.totalorder %s110, %s111
      %p123 = scmp.eq.s32.totalorder %s24, 1
      %p124 = por %p122, %p123
      %p126 = scmp.ne.s32.totalorder %s111, %s125
      %p127 = scmp.eq.s32.totalorder %s24, 0
      %p128 = por %p126, %p127
      %s130 = sadd.s32 %s129, 1
      %p133 = scmp.eq.s32.totalorder %s18, 1
      %p134 = scmp.ne.s32.totalorder %s129, %s131
      %p135 = scmp.eq.s32.totalorder %s18, 0
      %p136 = por %p134, %p135
      %p137 = scmp.ne.s32.totalorder %s129, %s131
      %p138 = scmp.eq.s32.totalorder %s23, 1
      %p139 = por %p137, %p138
      %p140 = scmp.ne.s32.totalorder %s131, %s132
      %p141 = scmp.eq.s32.totalorder %s23, 0
      %p142 = por %p140, %p141
      %p143 = scmp.ne.s32.totalorder %s131, %s132
      %p144 = scmp.eq.s32.totalorder %s24, 1
      %p145 = por %p143, %p144
      %p147 = scmp.ne.s32.totalorder %s132, %s146
      %p148 = scmp.eq.s32.totalorder %s24, 0
      %p149 = por %p147, %p148
      %s151 = sadd.s32 %s150, 1
      %p154 = scmp.eq.s32.totalorder %s18, 1
      %p155 = scmp.ne.s32.totalorder %s150, %s152
      %p156 = scmp.eq.s32.totalorder %s18, 0
      %p157 = por %p155, %p156
      %p158 = scmp.ne.s32.totalorder %s150, %s152
      %p159 = scmp.eq.s32.totalorder %s23, 1
      %p160 = por %p158, %p159
      %p161 = scmp.ne.s32.totalorder %s152, %s153
      %p162 = scmp.eq.s32.totalorder %s23, 0
      %p163 = por %p161, %p162
      %p164 = scmp.ne.s32.totalorder %s152, %s153
      %p165 = scmp.eq.s32.totalorder %s24, 1
      %p166 = por %p164, %p165
      %p168 = scmp.ne.s32.totalorder %s153, %s167
      %p169 = scmp.eq.s32.totalorder %s24, 0
      %p170 = por %p168, %p169
      %s172 = sadd.s32 %s171, 1
      %p175 = scmp.eq.s32.totalorder %s18, 1
      %p176 = scmp.ne.s32.totalorder %s171, %s173
      %p177 = scmp.eq.s32.totalorder %s18, 0
      %p178 = por %p176, %p177
      %p179 = scmp.ne.s32.totalorder %s171, %s173
      %p180 = scmp.eq.s32.totalorder %s23, 1
      %p181 = por %p179, %p180
      %p182 = scmp.ne.s32.totalorder %s173, %s174
      %p183 = scmp.eq.s32.totalorder %s23, 0
      %p184 = por %p182, %p183
      %p185 = scmp.ne.s32.totalorder %s173, %s174
      %p186 = scmp.eq.s32.totalorder %s24, 1
      %p187 = por %p185, %p186
      %p189 = scmp.ne.s32.totalorder %s174, %s188
      %p190 = scmp.eq.s32.totalorder %s24, 0
      %p191 = por %p189, %p190
      %s193 = sadd.s32 %s192, 1
      %p196 = scmp.eq.s32.totalorder %s18, 1
      %p197 = scmp.ne.s32.totalorder %s192, %s194
      %p198 = scmp.eq.s32.totalorder %s18, 0
      %p199 = por %p197, %p198
      %p200 = scmp.ne.s32.totalorder %s192, %s194
      %p201 = scmp.eq.s32.totalorder %s23, 1
      %p202 = por %p200, %p201
      %p203 = scmp.ne.s32.totalorder %s194, %s195
      %p204 = scmp.eq.s32.totalorder %s23, 0
      %p205 = por %p203, %p204
      %p206 = scmp.ne.s32.totalorder %s194, %s195
      %p207 = scmp.eq.s32.totalorder %s24, 1
      %p208 = por %p206, %p207
      %p210 = scmp.ne.s32.totalorder %s195, %s209
      %p211 = scmp.eq.s32.totalorder %s24, 0
      %p212 = por %p210, %p211
      %s213 = ssub.s32 %s25, %s37
      %s214 = ssub.s32 %s26, %s33
      %s215 = sor.u32 %s213, %s214
      %p216 = scmp.eq.s32.totalorder %s215, 0
      %s218 = sadd.s32 %s217, 1
      %s219 = scalar_select %p216, %s217, %s218
      %p222 = pneg %p216
      %p223 = scmp.eq.s32.totalorder %s18, 1
      %p224 = por %p222, %p223
      %p225 = scmp.ne.s32.totalorder %s217, %s220
      %p226 = scmp.eq.s32.totalorder %s18, 0
      %p227 = por %p225, %p226
      %p228 = scmp.ne.s32.totalorder %s217, %s220
      %p229 = scmp.eq.s32.totalorder %s23, 1
      %p230 = por %p228, %p229
      %p231 = scmp.ne.s32.totalorder %s220, %s221
      %p232 = scmp.eq.s32.totalorder %s23, 0
      %p233 = por %p231, %p232
      %p234 = scmp.ne.s32.totalorder %s220, %s221
      %p235 = scmp.eq.s32.totalorder %s24, 1
      %p236 = por %p234, %p235
      %p238 = scmp.ne.s32.totalorder %s221, %s237
      %p239 = scmp.eq.s32.totalorder %s24, 0
      %p240 = por %p238, %p239
      %s241 = ssub.s32 %s25, %s37
      %s242 = ssub.s32 %s26, %s33
      %s243 = sor.u32 %s241, %s242
      %p244 = scmp.eq.s32.totalorder %s243, 0
      %s246 = sadd.s32 %s245, 1
      %s247 = scalar_select %p244, %s245, %s246
      %p250 = pneg %p244
      %p251 = scmp.eq.s32.totalorder %s18, 1
      %p252 = por %p250, %p251
      %p253 = scmp.ne.s32.totalorder %s245, %s248
      %p254 = scmp.eq.s32.totalorder %s18, 0
      %p255 = por %p253, %p254
      %p256 = scmp.ne.s32.totalorder %s245, %s248
      %p257 = scmp.eq.s32.totalorder %s23, 1
      %p258 = por %p256, %p257
      %p259 = scmp.ne.s32.totalorder %s248, %s249
      %p260 = scmp.eq.s32.totalorder %s23, 0
      %p261 = por %p259, %p260
      %p262 = scmp.ne.s32.totalorder %s248, %s249
      %p263 = scmp.eq.s32.totalorder %s24, 1
      %p264 = por %p262, %p263
      %p266 = scmp.ne.s32.totalorder %s249, %s265
      %p267 = scmp.eq.s32.totalorder %s24, 0
      %p268 = por %p266, %p267
      %s269 = ssub.s32 %s25, %s37
      %s270 = ssub.s32 %s26, %s33
      %s271 = sor.u32 %s269, %s270
      %p272 = scmp.eq.s32.totalorder %s271, 0
      %s274 = sadd.s32 %s273, 1
      %s275 = scalar_select %p272, %s273, %s274
      %p278 = pneg %p272
      %p279 = scmp.eq.s32.totalorder %s18, 1
      %p280 = por %p278, %p279
      %p281 = scmp.ne.s32.totalorder %s273, %s276
      %p282 = scmp.eq.s32.totalorder %s18, 0
      %p283 = por %p281, %p282
      %p284 = scmp.ne.s32.totalorder %s273, %s276
      %p285 = scmp.eq.s32.totalorder %s23, 1
      %p286 = por %p284, %p285
      %p287 = scmp.ne.s32.totalorder %s276, %s277
      %p288 = scmp.eq.s32.totalorder %s23, 0
      %p289 = por %p287, %p288
      %p290 = scmp.ne.s32.totalorder %s276, %s277
      %p291 = scmp.eq.s32.totalorder %s24, 1
      %p292 = por %p290, %p291
      %p294 = scmp.ne.s32.totalorder %s277, %s293
      %p295 = scmp.eq.s32.totalorder %s24, 0
      %p296 = por %p294, %p295
      %p297 = scmp.le.s32.totalorder 1, %s18
      %p298 = scmp.lt.s32.totalorder %s18, 3
      %p299 = pnand %p297, %p298
      %p300 = pneg %p299
      // Predicated region
      $region9: #{decoder_block_forward.6} parent=5 // pred_check
        _
      $region10: #{decoder_block_forward.6} parent=5 // pred_check_branch
        %302 = sbr.rel (%p299) target = $region12
      $region11: #{decoder_block_forward.6} parent=5 // pred_region
        %s303 = ssub.s32 %s18, 1
        // Predicated region
        $region13: #{decoder_block_forward.6} parent=11 // pred_check
          %p304 = pneg %p51
        $region14: #{decoder_block_forward.6} parent=11 // pred_check_branch
          %306 = sbr.rel (%p304) target = $region16
        $region15: #{decoder_block_forward.6} parent=11 // pred_region
          %s308 = ssub.s32 16, 16
          %309 = vsyncadd [#allocation3], %s308
          %s311 = sshll.u32 %s0, 4
          %s312 = int_to_ptr.vmem [resolvable:$true] %s311
          %314 = dma.vmem_to_smem %s312, 16, [#allocation2], [#allocation3]
        $region16: #{decoder_block_forward.6} parent=11 // pred_fallthru
          _
        // Predicated region
        $region17: #{decoder_block_forward.6} parent=11 // pred_check
          %p315 = pneg %p100
        $region18: #{decoder_block_forward.6} parent=11 // pred_check_branch
          %317 = sbr.rel (%p315) target = $region20
        $region19: #{decoder_block_forward.6} parent=11 // pred_region
          _
        $region20: #{decoder_block_forward.6} parent=11 // pred_fallthru
          _
        // Predicated region
        $region21: #{decoder_block_forward.6} parent=11 // pred_check
          %p318 = pneg %p121
        $region22: #{decoder_block_forward.6} parent=11 // pred_check_branch
          %320 = sbr.rel (%p318) target = $region24
        $region23: #{decoder_block_forward.6} parent=11 // pred_region
          _
        $region24: #{decoder_block_forward.6} parent=11 // pred_fallthru
          _
        // Predicated region
        $region25: #{decoder_block_forward.6} parent=11 // pred_check
          %p321 = pneg %p142
        $region26: #{decoder_block_forward.6} parent=11 // pred_check_branch
          %323 = sbr.rel (%p321) target = $region28
        $region27: #{decoder_block_forward.6} parent=11 // pred_region
          _
        $region28: #{decoder_block_forward.6} parent=11 // pred_fallthru
          _
        // Predicated region
        $region29: #{decoder_block_forward.6} parent=11 // pred_check
          %p324 = pneg %p163
        $region30: #{decoder_block_forward.6} parent=11 // pred_check_branch
          %326 = sbr.rel (%p324) target = $region32
        $region31: #{decoder_block_forward.6} parent=11 // pred_region
          _
        $region32: #{decoder_block_forward.6} parent=11 // pred_fallthru
          _
        // Predicated region
        $region33: #{decoder_block_forward.6} parent=11 // pred_check
          %p327 = pneg %p184
        $region34: #{decoder_block_forward.6} parent=11 // pred_check_branch
          %329 = sbr.rel (%p327) target = $region36
        $region35: #{decoder_block_forward.6} parent=11 // pred_region
          _
        $region36: #{decoder_block_forward.6} parent=11 // pred_fallthru
          _
        // Predicated region
        $region37: #{decoder_block_forward.6} parent=11 // pred_check
          %p330 = pneg %p205
        $region38: #{decoder_block_forward.6} parent=11 // pred_check_branch
          %332 = sbr.rel (%p330) target = $region40
        $region39: #{decoder_block_forward.6} parent=11 // pred_region
          _
        $region40: #{decoder_block_forward.6} parent=11 // pred_fallthru
          _
      $region12: #{decoder_block_forward.6} parent=5 // pred_fallthru
        _
      %p333 = scmp.lt.s32.totalorder %s18, 2
      // Predicated region
      $region41: #{decoder_block_forward.6} parent=5 // pred_check
        %p334 = pneg %p333
      $region42: #{decoder_block_forward.6} parent=5 // pred_check_branch
        %336 = sbr.rel (%p334) target = $region44
      $region43: #{decoder_block_forward.6} parent=5 // pred_region
        // Predicated region
        $region45: #{decoder_block_forward.6} parent=43 // pred_check
          %p337 = pneg %p73
        $region46: #{decoder_block_forward.6} parent=43 // pred_check_branch
          %339 = sbr.rel (%p337) target = $region48
        $region47: #{decoder_block_forward.6} parent=43 // pred_region
          %p340 = scmp.lt.s32.totalorder %s25, 1
          %s341 = scalar_select %p340, %s25, 1
          %p342 = scmp.lt.s32.totalorder %s26, 0
          %s343 = scalar_select %p342, %s26, 0
          %s344 = sadd.s32 %s343, %s341
          %s345 = smul.addr %s344, 8
          %s346 = scalar_lea.vmem %s1, %s345
        $region48: #{decoder_block_forward.6} parent=43 // pred_fallthru
          _
      $region44: #{decoder_block_forward.6} parent=5 // pred_fallthru
        _
      %p347 = scmp.le.s32.totalorder 1, %s18
      %p348 = scmp.lt.s32.totalorder %s18, 3
      %p349 = pnand %p347, %p348
      %p350 = pneg %p349
      // Predicated region
      $region49: #{decoder_block_forward.6} parent=5 // pred_check
        _
      $region50: #{decoder_block_forward.6} parent=5 // pred_check_branch
        %352 = sbr.rel (%p349) target = $region52
      $region51: #{decoder_block_forward.6} parent=5 // pred_region
        %s353 = ssub.s32 %s18, 1
        // Predicated region
        $region53: #{decoder_block_forward.6} parent=51 // pred_check
          %p354 = pneg %p51
        $region54: #{decoder_block_forward.6} parent=51 // pred_check_branch
          %356 = sbr.rel (%p354) target = $region56
        $region55: #{decoder_block_forward.6} parent=51 // pred_region
          %357 = dma.done [#allocation3], 16
        $region56: #{decoder_block_forward.6} parent=51 // pred_fallthru
          _
        %358 = sfence
        %p359 = pneg %p51
        %p360 = pneg %p48
        %p361 = scmp.lt.s32.totalorder %s27, 1
        %s362 = scalar_select %p361, %s27, 1
        %p363 = scmp.lt.s32.totalorder %s28, 0
        %s364 = scalar_select %p363, %s28, 0
        %s365 = sadd.s32 %s364, %s362
        %s366 = smul.addr %s365, 8
        %s367 = scalar_lea.vmem %s1, %s366
        %p368 = pneg %p79
        %p369 = pneg %p76
        %p370 = pneg %p100
        %p371 = pneg %p97
        %p372 = pneg %p121
        %p373 = pneg %p118
        %p374 = pneg %p142
        %p375 = pneg %p139
        %p376 = pneg %p163
        %p377 = pneg %p160
        %p378 = pneg %p184
        %p379 = pneg %p181
        %p380 = pneg %p205
        %p381 = pneg %p202
        %p382 = pneg %p233
        %p383 = pneg %p230
        %p384 = scmp.lt.s32.totalorder %s27, 1
        %s385 = scalar_select %p384, %s27, 1
        %p386 = scmp.lt.s32.totalorder %s28, 0
        %s387 = scalar_select %p386, %s28, 0
        %s388 = smul.addr %s385, 4
        %s389 = sadd.s32 %s387, %s388
        %s390 = smul.addr %s389, 4
        %s391 = scalar_lea.vmem %s8, %s390
        %p392 = pneg %p261
        %p393 = pneg %p258
        %p394 = scmp.lt.s32.totalorder %s27, 1
        %s395 = scalar_select %p394, %s27, 1
        %p396 = scmp.lt.s32.totalorder %s28, 0
        %s397 = scalar_select %p396, %s28, 0
        %s398 = smul.addr %s395, 4
        %s399 = sadd.s32 %s397, %s398
        %s400 = smul.addr %s399, 4
        %s401 = scalar_lea.vmem %s9, %s400
        %p402 = pneg %p289
        %p403 = pneg %p286
        %p404 = scmp.lt.s32.totalorder %s27, 1
        %s405 = scalar_select %p404, %s27, 1
        %p406 = scmp.lt.s32.totalorder %s28, 0
        %s407 = scalar_select %p406, %s28, 0
        %s408 = smul.addr %s405, 4
        %s409 = sadd.s32 %s407, %s408
        %s410 = smul.addr %s409, 4
        %s411 = scalar_lea.vmem %s10, %s410
        %p412 = scmp.lt.s32.totalorder %s27, 1
        %s413 = scalar_select %p412, %s27, 1
        %p414 = scmp.lt.s32.totalorder %s28, 0
        %s415 = scalar_select %p414, %s28, 0
        %s416 = sadd.s32 %s415, %s413
        %s417 = smul.addr %s416, 8
        %s418 = scalar_lea.vmem %s1, %s417
        %p419 = scmp.lt.s32.totalorder %s27, 1
        %s420 = scalar_select %p419, %s27, 1
        %p421 = scmp.lt.s32.totalorder %s28, 0
        %s422 = scalar_select %p421, %s28, 0
        %s423 = smul.addr %s420, 4
        %s424 = sadd.s32 %s422, %s423
        %s425 = smul.addr %s424, 4
        %s426 = scalar_lea.vmem %s8, %s425
        %p427 = scmp.lt.s32.totalorder %s27, 1
        %s428 = scalar_select %p427, %s27, 1
        %p429 = scmp.lt.s32.totalorder %s28, 0
        %s430 = scalar_select %p429, %s28, 0
        %s431 = smul.addr %s428, 4
        %s432 = sadd.s32 %s430, %s431
        %s433 = smul.addr %s432, 4
        %s434 = scalar_lea.vmem %s9, %s433
        %p435 = scmp.lt.s32.totalorder %s27, 1
        %s436 = scalar_select %p435, %s27, 1
        %p437 = scmp.lt.s32.totalorder %s28, 0
        %s438 = scalar_select %p437, %s28, 0
        %s439 = smul.addr %s436, 4
        %s440 = sadd.s32 %s438, %s439
        %s441 = smul.addr %s440, 4
        %s442 = scalar_lea.vmem %s10, %s441
        %v444 = vld [vmem:[%s418] sm:$0xff]
        %s445 = sld [smem:[#allocation2]]
        %s446 = sld [smem:[#allocation2 + $0x1]]
        %vm447 = vcmask 261120
        %v448 = vsel %vm447, %v444, 0.0
        %449 = vadd.xlane.f32.xlu0 %v448
        %v450 = vpop.xlane.xlu0 %449
        %v451 = vrcp.pop 32.0
        %v452 = vmul.f32 %v450, %v451
        %v453 = vsub.f32 %v444, %v452
        %v454 = vmul.f32 %v453, %v453
        %v455 = vsel %vm447, %v454, 0.0
        %456 = vadd.xlane.f32.xlu0 %v455
        %v457 = vpop.xlane.xlu0 %456
        %v458 = vmul.f32 %v457, %v451
        %v459 = vstv %s445
        %v460 = vmul.f32 %v459, %v453
        %v461 = vadd.f32 %v458, 1e-06
        %v462 = vrsqrt.pop %v461
        %v463 = vmul.f32 %v460, %v462
        %v464 = vstv %s446
        %v465 = vadd.f32 %v463, %v464
        %v466 = vpack.c.bf16 %v465, %v465
        %v467 = vld [vmem:[%s2] sm:$0xf]
        %v468 = vld [vmem:[%s2 + $0x4] sm:$0xf]
        %v469 = vld [vmem:[%s2 + $0x8] sm:$0xf]
        %v470 = vld [vmem:[%s2 + $0xc] sm:$0xf]
        %v471 = vld [vmem:[%s3] sm:$0x1]
        %v473 = vlaneseq
        %v474 = vshrl.u32 %v473, 7
        %v475 = vsub.s32 0, %v474
        %v476 = vrot.slane %v471, %v475
        %v482 = vunpack.c.l.b16 %v467
        %v483 = vunpack.c.l.b16 %v468
        %v484 = vunpack.c.l.b16 %v469
        %v485 = vunpack.c.l.b16 %v470
        %v486 = vpack.c.b16 %v483, %v482
        %v487 = vpack.c.b16 %v485, %v484
        %v491 = vsel %vm447, %v466, 0
        %493 = vmatprep.subr.bf16.mxu0 0
        %494 = vmatpush1.bf16.msra.mxu0 0
        %495 = vmatprep.subr.bf16.mxu0 0
        %496 = vmatpush1.bf16.msra.mxu0 0
        %497 = vmatprep.subr.bf16.mxu0 0
        %498 = vmatpush1.bf16.msra.mxu0 0
        %499 = vmatprep.subr.bf16.mxu0 0
        %500 = vmatpush1.bf16.msra.mxu0 0
        %501 = vmatprep.subr.bf16.mxu0 0
        %502 = vmatpush1.bf16.msra.mxu0 0
        %503 = vmatprep.subr.bf16.mxu0 0
        %504 = vmatpush1.bf16.msra.mxu0 0
        %505 = vmatprep.subr.bf16.mxu0 0
        %506 = vmatpush1.bf16.msra.mxu0 %v487
        %507 = vmatprep.subr.bf16.mxu0 0
        %508 = vmatpush1.bf16.msra.mxu0 %v486
        %509 = vmatprep.subr.bf16.mxu0 0
        %510 = vmatpush2.bf16.msra.mxu0 0
        %511 = vmatprep.subr.bf16.mxu0 0
        %512 = vmatpush2.bf16.msra.mxu0 0
        %513 = vmatprep.subr.bf16.mxu0 0
        %514 = vmatpush2.bf16.msra.mxu0 0
        %515 = vmatprep.subr.bf16.mxu0 0
        %516 = vmatpush2.bf16.msra.mxu0 0
        %517 = vmatprep.subr.bf16.mxu0 0
        %518 = vmatpush2.bf16.msra.mxu0 0
        %519 = vmatprep.subr.bf16.mxu0 0
        %520 = vmatpush2.bf16.msra.mxu0 0
        %521 = vmatprep.subr.bf16.mxu0 0
        %522 = vmatpush2.bf16.msra.mxu0 0
        %523 = vmatprep.subr.bf16.mxu0 0
        %524 = vmatpush2.bf16.msra.mxu0 0
        %525 = vmatprep.mubr.bf16.mxu0 0
        %526 = vmatmul.mubr.bf16.gmra.mxu0 %v491
        %v527 = vpop.f32.mrf.mxu0
        %v528 = vadd.f32 %v476, %v527
        %v529 = vpop.f32.mrf.mxu0
        %v530 = vpop.f32.mrf.mxu0
        %v531 = vpop.f32.mrf.mxu0
        %532 = vdwg.mxu0
        %v533 = vpack.c.bf16 %v528, %v528
        %vm534 = vcmask 60416
        %535 = vst.msk [vmem:[%s426] sm:$0xf] %vm534, %v533
        %v536 = vld [vmem:[%s4] sm:$0xf]
        %v537 = vld [vmem:[%s4 + $0x4] sm:$0xf]
        %v538 = vld [vmem:[%s4 + $0x8] sm:$0xf]
        %v539 = vld [vmem:[%s4 + $0xc] sm:$0xf]
        %v540 = vld [vmem:[%s5] sm:$0x1]
        %v542 = vlaneseq
        %v543 = vshrl.u32 %v542, 7
        %v544 = vsub.s32 0, %v543
        %v545 = vrot.slane %v540, %v544
        %v551 = vunpack.c.l.b16 %v536
        %v552 = vunpack.c.l.b16 %v537
        %v553 = vunpack.c.l.b16 %v538
        %v554 = vunpack.c.l.b16 %v539
        %v555 = vpack.c.b16 %v552, %v551
        %v556 = vpack.c.b16 %v554, %v553
        %559 = vmatprep.subr.bf16.mxu0 0
        %560 = vmatpush1.bf16.msra.mxu0 0
        %561 = vmatprep.subr.bf16.mxu0 0
        %562 = vmatpush1.bf16.msra.mxu0 0
        %563 = vmatprep.subr.bf16.mxu0 0
        %564 = vmatpush1.bf16.msra.mxu0 0
        %565 = vmatprep.subr.bf16.mxu0 0
        %566 = vmatpush1.bf16.msra.mxu0 0
        %567 = vmatprep.subr.bf16.mxu0 0
        %568 = vmatpush1.bf16.msra.mxu0 0
        %569 = vmatprep.subr.bf16.mxu0 0
        %570 = vmatpush1.bf16.msra.mxu0 0
        %571 = vmatprep.subr.bf16.mxu0 0
        %572 = vmatpush1.bf16.msra.mxu0 %v556
        %573 = vmatprep.subr.bf16.mxu0 0
        %574 = vmatpush1.bf16.msra.mxu0 %v555
        %575 = vmatprep.subr.bf16.mxu0 0
        %576 = vmatpush2.bf16.msra.mxu0 0
        %577 = vmatprep.subr.bf16.mxu0 0
        %578 = vmatpush2.bf16.msra.mxu0 0
        %579 = vmatprep.subr.bf16.mxu0 0
        %580 = vmatpush2.bf16.msra.mxu0 0
        %581 = vmatprep.subr.bf16.mxu0 0
        %582 = vmatpush2.bf16.msra.mxu0 0
        %583 = vmatprep.subr.bf16.mxu0 0
        %584 = vmatpush2.bf16.msra.mxu0 0
        %585 = vmatprep.subr.bf16.mxu0 0
        %586 = vmatpush2.bf16.msra.mxu0 0
        %587 = vmatprep.subr.bf16.mxu0 0
        %588 = vmatpush2.bf16.msra.mxu0 0
        %589 = vmatprep.subr.bf16.mxu0 0
        %590 = vmatpush2.bf16.msra.mxu0 0
        %591 = vmatprep.mubr.bf16.mxu0 0
        %592 = vmatmul.mubr.bf16.gmra.mxu0 %v491
        %v593 = vpop.f32.mrf.mxu0
        %v594 = vadd.f32 %v545, %v593
        %v595 = vpop.f32.mrf.mxu0
        %v596 = vpop.f32.mrf.mxu0
        %v597 = vpop.f32.mrf.mxu0
        %598 = vdwg.mxu0
        %v599 = vpack.c.bf16 %v594, %v594
        %600 = vst.msk [vmem:[%s434] sm:$0xf] %vm534, %v599
        %v601 = vld [vmem:[%s6] sm:$0xf]
        %v602 = vld [vmem:[%s6 + $0x4] sm:$0xf]
        %v603 = vld [vmem:[%s6 + $0x8] sm:$0xf]
        %v604 = vld [vmem:[%s6 + $0xc] sm:$0xf]
        %v605 = vld [vmem:[%s7] sm:$0x1]
        %v607 = vlaneseq
        %v608 = vshrl.u32 %v607, 7
        %v609 = vsub.s32 0, %v608
        %v610 = vrot.slane %v605, %v609
        %v616 = vunpack.c.l.b16 %v601
        %v617 = vunpack.c.l.b16 %v602
        %v618 = vunpack.c.l.b16 %v603
        %v619 = vunpack.c.l.b16 %v604
        %v620 = vpack.c.b16 %v617, %v616
        %v621 = vpack.c.b16 %v619, %v618
        %624 = vmatprep.subr.bf16.mxu0 0
        %625 = vmatpush1.bf16.msra.mxu0 0
        %626 = vmatprep.subr.bf16.mxu0 0
        %627 = vmatpush1.bf16.msra.mxu0 0
        %628 = vmatprep.subr.bf16.mxu0 0
        %629 = vmatpush1.bf16.msra.mxu0 0
        %630 = vmatprep.subr.bf16.mxu0 0
        %631 = vmatpush1.bf16.msra.mxu0 0
        %632 = vmatprep.subr.bf16.mxu0 0
        %633 = vmatpush1.bf16.msra.mxu0 0
        %634 = vmatprep.subr.bf16.mxu0 0
        %635 = vmatpush1.bf16.msra.mxu0 0
        %636 = vmatprep.subr.bf16.mxu0 0
        %637 = vmatpush1.bf16.msra.mxu0 %v621
        %638 = vmatprep.subr.bf16.mxu0 0
        %639 = vmatpush1.bf16.msra.mxu0 %v620
        %640 = vmatprep.subr.bf16.mxu0 0
        %641 = vmatpush2.bf16.msra.mxu0 0
        %642 = vmatprep.subr.bf16.mxu0 0
        %643 = vmatpush2.bf16.msra.mxu0 0
        %644 = vmatprep.subr.bf16.mxu0 0
        %645 = vmatpush2.bf16.msra.mxu0 0
        %646 = vmatprep.subr.bf16.mxu0 0
        %647 = vmatpush2.bf16.msra.mxu0 0
        %648 = vmatprep.subr.bf16.mxu0 0
        %649 = vmatpush2.bf16.msra.mxu0 0
        %650 = vmatprep.subr.bf16.mxu0 0
        %651 = vmatpush2.bf16.msra.mxu0 0
        %652 = vmatprep.subr.bf16.mxu0 0
        %653 = vmatpush2.bf16.msra.mxu0 0
        %654 = vmatprep.subr.bf16.mxu0 0
        %655 = vmatpush2.bf16.msra.mxu0 0
        %656 = vmatprep.mubr.bf16.mxu0 0
        %657 = vmatmul.mubr.bf16.gmra.mxu0 %v491
        %v658 = vpop.f32.mrf.mxu0
        %v659 = vadd.f32 %v610, %v658
        %v660 = vpop.f32.mrf.mxu0
        %v661 = vpop.f32.mrf.mxu0
        %v662 = vpop.f32.mrf.mxu0
        %663 = vdwg.mxu0
        %v664 = vpack.c.bf16 %v659, %v659
        %665 = vst.msk [vmem:[%s442] sm:$0xf] %vm534, %v664
        %s666 = scalar_lea.vmem %s2, 16
        %v667 = vld [vmem:[%s666] sm:$0xf]
        %v668 = vld [vmem:[%s666 + $0x4] sm:$0xf]
        %v669 = vld [vmem:[%s666 + $0x8] sm:$0xf]
        %v670 = vld [vmem:[%s666 + $0xc] sm:$0xf]
        %s671 = scalar_lea.vmem %s3, 1
        %v672 = vld [vmem:[%s671] sm:$0x1]
        %v674 = vlaneseq
        %v675 = vshrl.u32 %v674, 7
        %v676 = vsub.s32 0, %v675
        %v677 = vrot.slane %v672, %v676
        %v683 = vunpack.c.l.b16 %v667
        %v684 = vunpack.c.l.b16 %v668
        %v685 = vunpack.c.l.b16 %v669
        %v686 = vunpack.c.l.b16 %v670
        %v687 = vpack.c.b16 %v684, %v683
        %v688 = vpack.c.b16 %v686, %v685
        %691 = vmatprep.subr.bf16.mxu0 0
        %692 = vmatpush1.bf16.msra.mxu0 0
        %693 = vmatprep.subr.bf16.mxu0 0
        %694 = vmatpush1.bf16.msra.mxu0 0
        %695 = vmatprep.subr.bf16.mxu0 0
        %696 = vmatpush1.bf16.msra.mxu0 0
        %697 = vmatprep.subr.bf16.mxu0 0
        %698 = vmatpush1.bf16.msra.mxu0 0
        %699 = vmatprep.subr.bf16.mxu0 0
        %700 = vmatpush1.bf16.msra.mxu0 0
        %701 = vmatprep.subr.bf16.mxu0 0
        %702 = vmatpush1.bf16.msra.mxu0 0
        %703 = vmatprep.subr.bf16.mxu0 0
        %704 = vmatpush1.bf16.msra.mxu0 %v688
        %705 = vmatprep.subr.bf16.mxu0 0
        %706 = vmatpush1.bf16.msra.mxu0 %v687
        %707 = vmatprep.subr.bf16.mxu0 0
        %708 = vmatpush2.bf16.msra.mxu0 0
        %709 = vmatprep.subr.bf16.mxu0 0
        %710 = vmatpush2.bf16.msra.mxu0 0
        %711 = vmatprep.subr.bf16.mxu0 0
        %712 = vmatpush2.bf16.msra.mxu0 0
        %713 = vmatprep.subr.bf16.mxu0 0
        %714 = vmatpush2.bf16.msra.mxu0 0
        %715 = vmatprep.subr.bf16.mxu0 0
        %716 = vmatpush2.bf16.msra.mxu0 0
        %717 = vmatprep.subr.bf16.mxu0 0
        %718 = vmatpush2.bf16.msra.mxu0 0
        %719 = vmatprep.subr.bf16.mxu0 0
        %720 = vmatpush2.bf16.msra.mxu0 0
        %721 = vmatprep.subr.bf16.mxu0 0
        %722 = vmatpush2.bf16.msra.mxu0 0
        %723 = vmatprep.mubr.bf16.mxu0 0
        %724 = vmatmul.mubr.bf16.gmra.mxu0 %v491
        %v725 = vpop.f32.mrf.mxu0
        %v726 = vadd.f32 %v677, %v725
        %v727 = vpop.f32.mrf.mxu0
        %v728 = vpop.f32.mrf.mxu0
        %v729 = vpop.f32.mrf.mxu0
        %730 = vdwg.mxu0
        %v731 = vpack.c.bf16 %v726, %v726
        %s732 = scalar_lea.vmem %s426, 4
        %733 = vst.msk [vmem:[%s732] sm:$0xf] %vm534, %v731
        %s734 = scalar_lea.vmem %s4, 16
        %v735 = vld [vmem:[%s734] sm:$0xf]
        %v736 = vld [vmem:[%s734 + $0x4] sm:$0xf]
        %v737 = vld [vmem:[%s734 + $0x8] sm:$0xf]
        %v738 = vld [vmem:[%s734 + $0xc] sm:$0xf]
        %s739 = scalar_lea.vmem %s5, 1
        %v740 = vld [vmem:[%s739] sm:$0x1]
        %v742 = vlaneseq
        %v743 = vshrl.u32 %v742, 7
        %v744 = vsub.s32 0, %v743
        %v745 = vrot.slane %v740, %v744
        %v751 = vunpack.c.l.b16 %v735
        %v752 = vunpack.c.l.b16 %v736
        %v753 = vunpack.c.l.b16 %v737
        %v754 = vunpack.c.l.b16 %v738
        %v755 = vpack.c.b16 %v752, %v751
        %v756 = vpack.c.b16 %v754, %v753
        %759 = vmatprep.subr.bf16.mxu0 0
        %760 = vmatpush1.bf16.msra.mxu0 0
        %761 = vmatprep.subr.bf16.mxu0 0
        %762 = vmatpush1.bf16.msra.mxu0 0
        %763 = vmatprep.subr.bf16.mxu0 0
        %764 = vmatpush1.bf16.msra.mxu0 0
        %765 = vmatprep.subr.bf16.mxu0 0
        %766 = vmatpush1.bf16.msra.mxu0 0
        %767 = vmatprep.subr.bf16.mxu0 0
        %768 = vmatpush1.bf16.msra.mxu0 0
        %769 = vmatprep.subr.bf16.mxu0 0
        %770 = vmatpush1.bf16.msra.mxu0 0
        %771 = vmatprep.subr.bf16.mxu0 0
        %772 = vmatpush1.bf16.msra.mxu0 %v756
        %773 = vmatprep.subr.bf16.mxu0 0
        %774 = vmatpush1.bf16.msra.mxu0 %v755
        %775 = vmatprep.subr.bf16.mxu0 0
        %776 = vmatpush2.bf16.msra.mxu0 0
        %777 = vmatprep.subr.bf16.mxu0 0
        %778 = vmatpush2.bf16.msra.mxu0 0
        %779 = vmatprep.subr.bf16.mxu0 0
        %780 = vmatpush2.bf16.msra.mxu0 0
        %781 = vmatprep.subr.bf16.mxu0 0
        %782 = vmatpush2.bf16.msra.mxu0 0
        %783 = vmatprep.subr.bf16.mxu0 0
        %784 = vmatpush2.bf16.msra.mxu0 0
        %785 = vmatprep.subr.bf16.mxu0 0
        %786 = vmatpush2.bf16.msra.mxu0 0
        %787 = vmatprep.subr.bf16.mxu0 0
        %788 = vmatpush2.bf16.msra.mxu0 0
        %789 = vmatprep.subr.bf16.mxu0 0
        %790 = vmatpush2.bf16.msra.mxu0 0
        %791 = vmatprep.mubr.bf16.mxu0 0
        %792 = vmatmul.mubr.bf16.gmra.mxu0 %v491
        %v793 = vpop.f32.mrf.mxu0
        %v794 = vadd.f32 %v745, %v793
        %v795 = vpop.f32.mrf.mxu0
        %v796 = vpop.f32.mrf.mxu0
        %v797 = vpop.f32.mrf.mxu0
        %798 = vdwg.mxu0
        %v799 = vpack.c.bf16 %v794, %v794
        %s800 = scalar_lea.vmem %s434, 4
        %801 = vst.msk [vmem:[%s800] sm:$0xf] %vm534, %v799
        %s802 = scalar_lea.vmem %s6, 16
        %v803 = vld [vmem:[%s802] sm:$0xf]
        %v804 = vld [vmem:[%s802 + $0x4] sm:$0xf]
        %v805 = vld [vmem:[%s802 + $0x8] sm:$0xf]
        %v806 = vld [vmem:[%s802 + $0xc] sm:$0xf]
        %s807 = scalar_lea.vmem %s7, 1
        %v808 = vld [vmem:[%s807] sm:$0x1]
        %v810 = vlaneseq
        %v811 = vshrl.u32 %v810, 7
        %v812 = vsub.s32 0, %v811
        %v813 = vrot.slane %v808, %v812
        %v819 = vunpack.c.l.b16 %v803
        %v820 = vunpack.c.l.b16 %v804
        %v821 = vunpack.c.l.b16 %v805
        %v822 = vunpack.c.l.b16 %v806
        %v823 = vpack.c.b16 %v820, %v819
        %v824 = vpack.c.b16 %v822, %v821
        %827 = vmatprep.subr.bf16.mxu0 0
        %828 = vmatpush1.bf16.msra.mxu0 0
        %829 = vmatprep.subr.bf16.mxu0 0
        %830 = vmatpush1.bf16.msra.mxu0 0
        %831 = vmatprep.subr.bf16.mxu0 0
        %832 = vmatpush1.bf16.msra.mxu0 0
        %833 = vmatprep.subr.bf16.mxu0 0
        %834 = vmatpush1.bf16.msra.mxu0 0
        %835 = vmatprep.subr.bf16.mxu0 0
        %836 = vmatpush1.bf16.msra.mxu0 0
        %837 = vmatprep.subr.bf16.mxu0 0
        %838 = vmatpush1.bf16.msra.mxu0 0
        %839 = vmatprep.subr.bf16.mxu0 0
        %840 = vmatpush1.bf16.msra.mxu0 %v824
        %841 = vmatprep.subr.bf16.mxu0 0
        %842 = vmatpush1.bf16.msra.mxu0 %v823
        %843 = vmatprep.subr.bf16.mxu0 0
        %844 = vmatpush2.bf16.msra.mxu0 0
        %845 = vmatprep.subr.bf16.mxu0 0
        %846 = vmatpush2.bf16.msra.mxu0 0
        %847 = vmatprep.subr.bf16.mxu0 0
        %848 = vmatpush2.bf16.msra.mxu0 0
        %849 = vmatprep.subr.bf16.mxu0 0
        %850 = vmatpush2.bf16.msra.mxu0 0
        %851 = vmatprep.subr.bf16.mxu0 0
        %852 = vmatpush2.bf16.msra.mxu0 0
        %853 = vmatprep.subr.bf16.mxu0 0
        %854 = vmatpush2.bf16.msra.mxu0 0
        %855 = vmatprep.subr.bf16.mxu0 0
        %856 = vmatpush2.bf16.msra.mxu0 0
        %857 = vmatprep.subr.bf16.mxu0 0
        %858 = vmatpush2.bf16.msra.mxu0 0
        %859 = vmatprep.mubr.bf16.mxu0 0
        %860 = vmatmul.mubr.bf16.gmra.mxu0 %v491
        %v861 = vpop.f32.mrf.mxu0
        %v862 = vadd.f32 %v813, %v861
        %v863 = vpop.f32.mrf.mxu0
        %v864 = vpop.f32.mrf.mxu0
        %v865 = vpop.f32.mrf.mxu0
        %866 = vdwg.mxu0
        %v867 = vpack.c.bf16 %v862, %v862
        %s868 = scalar_lea.vmem %s442, 4
        %869 = vst.msk [vmem:[%s868] sm:$0xf] %vm534, %v867
        %s870 = scalar_lea.vmem %s2, 32
        %v871 = vld [vmem:[%s870] sm:$0xf]
        %v872 = vld [vmem:[%s870 + $0x4] sm:$0xf]
        %v873 = vld [vmem:[%s870 + $0x8] sm:$0xf]
        %v874 = vld [vmem:[%s870 + $0xc] sm:$0xf]
        %s875 = scalar_lea.vmem %s3, 2
        %v876 = vld [vmem:[%s875] sm:$0x1]
        %v878 = vlaneseq
        %v879 = vshrl.u32 %v878, 7
        %v880 = vsub.s32 0, %v879
        %v881 = vrot.slane %v876, %v880
        %v887 = vunpack.c.l.b16 %v871
        %v888 = vunpack.c.l.b16 %v872
        %v889 = vunpack.c.l.b16 %v873
        %v890 = vunpack.c.l.b16 %v874
        %v891 = vpack.c.b16 %v888, %v887
        %v892 = vpack.c.b16 %v890, %v889
        %895 = vmatprep.subr.bf16.mxu0 0
        %896 = vmatpush1.bf16.msra.mxu0 0
        %897 = vmatprep.subr.bf16.mxu0 0
        %898 = vmatpush1.bf16.msra.mxu0 0
        %899 = vmatprep.subr.bf16.mxu0 0
        %900 = vmatpush1.bf16.msra.mxu0 0
        %901 = vmatprep.subr.bf16.mxu0 0
        %902 = vmatpush1.bf16.msra.mxu0 0
        %903 = vmatprep.subr.bf16.mxu0 0
        %904 = vmatpush1.bf16.msra.mxu0 0
        %905 = vmatprep.subr.bf16.mxu0 0
        %906 = vmatpush1.bf16.msra.mxu0 0
        %907 = vmatprep.subr.bf16.mxu0 0
        %908 = vmatpush1.bf16.msra.mxu0 %v892
        %909 = vmatprep.subr.bf16.mxu0 0
        %910 = vmatpush1.bf16.msra.mxu0 %v891
        %911 = vmatprep.subr.bf16.mxu0 0
        %912 = vmatpush2.bf16.msra.mxu0 0
        %913 = vmatprep.subr.bf16.mxu0 0
        %914 = vmatpush2.bf16.msra.mxu0 0
        %915 = vmatprep.subr.bf16.mxu0 0
        %916 = vmatpush2.bf16.msra.mxu0 0
        %917 = vmatprep.subr.bf16.mxu0 0
        %918 = vmatpush2.bf16.msra.mxu0 0
        %919 = vmatprep.subr.bf16.mxu0 0
        %920 = vmatpush2.bf16.msra.mxu0 0
        %921 = vmatprep.subr.bf16.mxu0 0
        %922 = vmatpush2.bf16.msra.mxu0 0
        %923 = vmatprep.subr.bf16.mxu0 0
        %924 = vmatpush2.bf16.msra.mxu0 0
        %925 = vmatprep.subr.bf16.mxu0 0
        %926 = vmatpush2.bf16.msra.mxu0 0
        %927 = vmatprep.mubr.bf16.mxu0 0
        %928 = vmatmul.mubr.bf16.gmra.mxu0 %v491
        %v929 = vpop.f32.mrf.mxu0
        %v930 = vadd.f32 %v881, %v929
        %v931 = vpop.f32.mrf.mxu0
        %v932 = vpop.f32.mrf.mxu0
        %v933 = vpop.f32.mrf.mxu0
        %934 = vdwg.mxu0
        %v935 = vpack.c.bf16 %v930, %v930
        %s936 = scalar_lea.vmem %s426, 8
        %937 = vst.msk [vmem:[%s936] sm:$0xf] %vm534, %v935
        %s938 = scalar_lea.vmem %s4, 32
        %v939 = vld [vmem:[%s938] sm:$0xf]
        %v940 = vld [vmem:[%s938 + $0x4] sm:$0xf]
        %v941 = vld [vmem:[%s938 + $0x8] sm:$0xf]
        %v942 = vld [vmem:[%s938 + $0xc] sm:$0xf]
        %s943 = scalar_lea.vmem %s5, 2
        %v944 = vld [vmem:[%s943] sm:$0x1]
        %v946 = vlaneseq
        %v947 = vshrl.u32 %v946, 7
        %v948 = vsub.s32 0, %v947
        %v949 = vrot.slane %v944, %v948
        %v955 = vunpack.c.l.b16 %v939
        %v956 = vunpack.c.l.b16 %v940
        %v957 = vunpack.c.l.b16 %v941
        %v958 = vunpack.c.l.b16 %v942
        %v959 = vpack.c.b16 %v956, %v955
        %v960 = vpack.c.b16 %v958, %v957
        %963 = vmatprep.subr.bf16.mxu0 0
        %964 = vmatpush1.bf16.msra.mxu0 0
        %965 = vmatprep.subr.bf16.mxu0 0
        %966 = vmatpush1.bf16.msra.mxu0 0
        %967 = vmatprep.subr.bf16.mxu0 0
        %968 = vmatpush1.bf16.msra.mxu0 0
        %969 = vmatprep.subr.bf16.mxu0 0
        %970 = vmatpush1.bf16.msra.mxu0 0
        %971 = vmatprep.subr.bf16.mxu0 0
        %972 = vmatpush1.bf16.msra.mxu0 0
        %973 = vmatprep.subr.bf16.mxu0 0
        %974 = vmatpush1.bf16.msra.mxu0 0
        %975 = vmatprep.subr.bf16.mxu0 0
        %976 = vmatpush1.bf16.msra.mxu0 %v960
        %977 = vmatprep.subr.bf16.mxu0 0
        %978 = vmatpush1.bf16.msra.mxu0 %v959
        %979 = vmatprep.subr.bf16.mxu0 0
        %980 = vmatpush2.bf16.msra.mxu0 0
        %981 = vmatprep.subr.bf16.mxu0 0
        %982 = vmatpush2.bf16.msra.mxu0 0
        %983 = vmatprep.subr.bf16.mxu0 0
        %984 = vmatpush2.bf16.msra.mxu0 0
        %985 = vmatprep.subr.bf16.mxu0 0
        %986 = vmatpush2.bf16.msra.mxu0 0
        %987 = vmatprep.subr.bf16.mxu0 0
        %988 = vmatpush2.bf16.msra.mxu0 0
        %989 = vmatprep.subr.bf16.mxu0 0
        %990 = vmatpush2.bf16.msra.mxu0 0
        %991 = vmatprep.subr.bf16.mxu0 0
        %992 = vmatpush2.bf16.msra.mxu0 0
        %993 = vmatprep.subr.bf16.mxu0 0
        %994 = vmatpush2.bf16.msra.mxu0 0
        %995 = vmatprep.mubr.bf16.mxu0 0
        %996 = vmatmul.mubr.bf16.gmra.mxu0 %v491
        %v997 = vpop.f32.mrf.mxu0
        %v998 = vadd.f32 %v949, %v997
        %v999 = vpop.f32.mrf.mxu0
        %v1000 = vpop.f32.mrf.mxu0
        %v1001 = vpop.f32.mrf.mxu0
        %1002 = vdwg.mxu0
        %v1003 = vpack.c.bf16 %v998, %v998
        %s1004 = scalar_lea.vmem %s434, 8
        %1005 = vst.msk [vmem:[%s1004] sm:$0xf] %vm534, %v1003
        %s1006 = scalar_lea.vmem %s6, 32
        %v1007 = vld [vmem:[%s1006] sm:$0xf]
        %v1008 = vld [vmem:[%s1006 + $0x4] sm:$0xf]
        %v1009 = vld [vmem:[%s1006 + $0x8] sm:$0xf]
        %v1010 = vld [vmem:[%s1006 + $0xc] sm:$0xf]
        %s1011 = scalar_lea.vmem %s7, 2
        %v1012 = vld [vmem:[%s1011] sm:$0x1]
        %v1014 = vlaneseq
        %v1015 = vshrl.u32 %v1014, 7
        %v1016 = vsub.s32 0, %v1015
        %v1017 = vrot.slane %v1012, %v1016
        %v1023 = vunpack.c.l.b16 %v1007
        %v1024 = vunpack.c.l.b16 %v1008
        %v1025 = vunpack.c.l.b16 %v1009
        %v1026 = vunpack.c.l.b16 %v1010
        %v1027 = vpack.c.b16 %v1024, %v1023
        %v1028 = vpack.c.b16 %v1026, %v1025
        %1031 = vmatprep.subr.bf16.mxu0 0
        %1032 = vmatpush1.bf16.msra.mxu0 0
        %1033 = vmatprep.subr.bf16.mxu0 0
        %1034 = vmatpush1.bf16.msra.mxu0 0
        %1035 = vmatprep.subr.bf16.mxu0 0
        %1036 = vmatpush1.bf16.msra.mxu0 0
        %1037 = vmatprep.subr.bf16.mxu0 0
        %1038 = vmatpush1.bf16.msra.mxu0 0
        %1039 = vmatprep.subr.bf16.mxu0 0
        %1040 = vmatpush1.bf16.msra.mxu0 0
        %1041 = vmatprep.subr.bf16.mxu0 0
        %1042 = vmatpush1.bf16.msra.mxu0 0
        %1043 = vmatprep.subr.bf16.mxu0 0
        %1044 = vmatpush1.bf16.msra.mxu0 %v1028
        %1045 = vmatprep.subr.bf16.mxu0 0
        %1046 = vmatpush1.bf16.msra.mxu0 %v1027
        %1047 = vmatprep.subr.bf16.mxu0 0
        %1048 = vmatpush2.bf16.msra.mxu0 0
        %1049 = vmatprep.subr.bf16.mxu0 0
        %1050 = vmatpush2.bf16.msra.mxu0 0
        %1051 = vmatprep.subr.bf16.mxu0 0
        %1052 = vmatpush2.bf16.msra.mxu0 0
        %1053 = vmatprep.subr.bf16.mxu0 0
        %1054 = vmatpush2.bf16.msra.mxu0 0
        %1055 = vmatprep.subr.bf16.mxu0 0
        %1056 = vmatpush2.bf16.msra.mxu0 0
        %1057 = vmatprep.subr.bf16.mxu0 0
        %1058 = vmatpush2.bf16.msra.mxu0 0
        %1059 = vmatprep.subr.bf16.mxu0 0
        %1060 = vmatpush2.bf16.msra.mxu0 0
        %1061 = vmatprep.subr.bf16.mxu0 0
        %1062 = vmatpush2.bf16.msra.mxu0 0
        %1063 = vmatprep.mubr.bf16.mxu0 0
        %1064 = vmatmul.mubr.bf16.gmra.mxu0 %v491
        %v1065 = vpop.f32.mrf.mxu0
        %v1066 = vadd.f32 %v1017, %v1065
        %v1067 = vpop.f32.mrf.mxu0
        %v1068 = vpop.f32.mrf.mxu0
        %v1069 = vpop.f32.mrf.mxu0
        %1070 = vdwg.mxu0
        %v1071 = vpack.c.bf16 %v1066, %v1066
        %s1072 = scalar_lea.vmem %s442, 8
        %1073 = vst.msk [vmem:[%s1072] sm:$0xf] %vm534, %v1071
        %s1074 = scalar_lea.vmem %s2, 48
        %v1075 = vld [vmem:[%s1074] sm:$0xf]
        %v1076 = vld [vmem:[%s1074 + $0x4] sm:$0xf]
        %v1077 = vld [vmem:[%s1074 + $0x8] sm:$0xf]
        %v1078 = vld [vmem:[%s1074 + $0xc] sm:$0xf]
        %s1079 = scalar_lea.vmem %s3, 3
        %v1080 = vld [vmem:[%s1079] sm:$0x1]
        %v1082 = vlaneseq
        %v1083 = vshrl.u32 %v1082, 7
        %v1084 = vsub.s32 0, %v1083
        %v1085 = vrot.slane %v1080, %v1084
        %v1091 = vunpack.c.l.b16 %v1075
        %v1092 = vunpack.c.l.b16 %v1076
        %v1093 = vunpack.c.l.b16 %v1077
        %v1094 = vunpack.c.l.b16 %v1078
        %v1095 = vpack.c.b16 %v1092, %v1091
        %v1096 = vpack.c.b16 %v1094, %v1093
        %1099 = vmatprep.subr.bf16.mxu0 0
        %1100 = vmatpush1.bf16.msra.mxu0 0
        %1101 = vmatprep.subr.bf16.mxu0 0
        %1102 = vmatpush1.bf16.msra.mxu0 0
        %1103 = vmatprep.subr.bf16.mxu0 0
        %1104 = vmatpush1.bf16.msra.mxu0 0
        %1105 = vmatprep.subr.bf16.mxu0 0
        %1106 = vmatpush1.bf16.msra.mxu0 0
        %1107 = vmatprep.subr.bf16.mxu0 0
        %1108 = vmatpush1.bf16.msra.mxu0 0
        %1109 = vmatprep.subr.bf16.mxu0 0
        %1110 = vmatpush1.bf16.msra.mxu0 0
        %1111 = vmatprep.subr.bf16.mxu0 0
        %1112 = vmatpush1.bf16.msra.mxu0 %v1096
        %1113 = vmatprep.subr.bf16.mxu0 0
        %1114 = vmatpush1.bf16.msra.mxu0 %v1095
        %1115 = vmatprep.subr.bf16.mxu0 0
        %1116 = vmatpush2.bf16.msra.mxu0 0
        %1117 = vmatprep.subr.bf16.mxu0 0
        %1118 = vmatpush2.bf16.msra.mxu0 0
        %1119 = vmatprep.subr.bf16.mxu0 0
        %1120 = vmatpush2.bf16.msra.mxu0 0
        %1121 = vmatprep.subr.bf16.mxu0 0
        %1122 = vmatpush2.bf16.msra.mxu0 0
        %1123 = vmatprep.subr.bf16.mxu0 0
        %1124 = vmatpush2.bf16.msra.mxu0 0
        %1125 = vmatprep.subr.bf16.mxu0 0
        %1126 = vmatpush2.bf16.msra.mxu0 0
        %1127 = vmatprep.subr.bf16.mxu0 0
        %1128 = vmatpush2.bf16.msra.mxu0 0
        %1129 = vmatprep.subr.bf16.mxu0 0
        %1130 = vmatpush2.bf16.msra.mxu0 0
        %1131 = vmatprep.mubr.bf16.mxu0 0
        %1132 = vmatmul.mubr.bf16.gmra.mxu0 %v491
        %v1133 = vpop.f32.mrf.mxu0
        %v1134 = vadd.f32 %v1085, %v1133
        %v1135 = vpop.f32.mrf.mxu0
        %v1136 = vpop.f32.mrf.mxu0
        %v1137 = vpop.f32.mrf.mxu0
        %1138 = vdwg.mxu0
        %v1139 = vpack.c.bf16 %v1134, %v1134
        %s1140 = scalar_lea.vmem %s426, 12
        %1141 = vst.msk [vmem:[%s1140] sm:$0xf] %vm534, %v1139
        %s1142 = scalar_lea.vmem %s4, 48
        %v1143 = vld [vmem:[%s1142] sm:$0xf]
        %v1144 = vld [vmem:[%s1142 + $0x4] sm:$0xf]
        %v1145 = vld [vmem:[%s1142 + $0x8] sm:$0xf]
        %v1146 = vld [vmem:[%s1142 + $0xc] sm:$0xf]
        %s1147 = scalar_lea.vmem %s5, 3
        %v1148 = vld [vmem:[%s1147] sm:$0x1]
        %v1150 = vlaneseq
        %v1151 = vshrl.u32 %v1150, 7
        %v1152 = vsub.s32 0, %v1151
        %v1153 = vrot.slane %v1148, %v1152
        %v1159 = vunpack.c.l.b16 %v1143
        %v1160 = vunpack.c.l.b16 %v1144
        %v1161 = vunpack.c.l.b16 %v1145
        %v1162 = vunpack.c.l.b16 %v1146
        %v1163 = vpack.c.b16 %v1160, %v1159
        %v1164 = vpack.c.b16 %v1162, %v1161
        %1167 = vmatprep.subr.bf16.mxu0 0
        %1168 = vmatpush1.bf16.msra.mxu0 0
        %1169 = vmatprep.subr.bf16.mxu0 0
        %1170 = vmatpush1.bf16.msra.mxu0 0
        %1171 = vmatprep.subr.bf16.mxu0 0
        %1172 = vmatpush1.bf16.msra.mxu0 0
        %1173 = vmatprep.subr.bf16.mxu0 0
        %1174 = vmatpush1.bf16.msra.mxu0 0
        %1175 = vmatprep.subr.bf16.mxu0 0
        %1176 = vmatpush1.bf16.msra.mxu0 0
        %1177 = vmatprep.subr.bf16.mxu0 0
        %1178 = vmatpush1.bf16.msra.mxu0 0
        %1179 = vmatprep.subr.bf16.mxu0 0
        %1180 = vmatpush1.bf16.msra.mxu0 %v1164
        %1181 = vmatprep.subr.bf16.mxu0 0
        %1182 = vmatpush1.bf16.msra.mxu0 %v1163
        %1183 = vmatprep.subr.bf16.mxu0 0
        %1184 = vmatpush2.bf16.msra.mxu0 0
        %1185 = vmatprep.subr.bf16.mxu0 0
        %1186 = vmatpush2.bf16.msra.mxu0 0
        %1187 = vmatprep.subr.bf16.mxu0 0
        %1188 = vmatpush2.bf16.msra.mxu0 0
        %1189 = vmatprep.subr.bf16.mxu0 0
        %1190 = vmatpush2.bf16.msra.mxu0 0
        %1191 = vmatprep.subr.bf16.mxu0 0
        %1192 = vmatpush2.bf16.msra.mxu0 0
        %1193 = vmatprep.subr.bf16.mxu0 0
        %1194 = vmatpush2.bf16.msra.mxu0 0
        %1195 = vmatprep.subr.bf16.mxu0 0
        %1196 = vmatpush2.bf16.msra.mxu0 0
        %1197 = vmatprep.subr.bf16.mxu0 0
        %1198 = vmatpush2.bf16.msra.mxu0 0
        %1199 = vmatprep.mubr.bf16.mxu0 0
        %1200 = vmatmul.mubr.bf16.gmra.mxu0 %v491
        %v1201 = vpop.f32.mrf.mxu0
        %v1202 = vadd.f32 %v1153, %v1201
        %v1203 = vpop.f32.mrf.mxu0
        %v1204 = vpop.f32.mrf.mxu0
        %v1205 = vpop.f32.mrf.mxu0
        %1206 = vdwg.mxu0
        %v1207 = vpack.c.bf16 %v1202, %v1202
        %s1208 = scalar_lea.vmem %s434, 12
        %1209 = vst.msk [vmem:[%s1208] sm:$0xf] %vm534, %v1207
        %s1210 = scalar_lea.vmem %s6, 48
        %v1211 = vld [vmem:[%s1210] sm:$0xf]
        %v1212 = vld [vmem:[%s1210 + $0x4] sm:$0xf]
        %v1213 = vld [vmem:[%s1210 + $0x8] sm:$0xf]
        %v1214 = vld [vmem:[%s1210 + $0xc] sm:$0xf]
        %s1215 = scalar_lea.vmem %s7, 3
        %v1216 = vld [vmem:[%s1215] sm:$0x1]
        %v1218 = vlaneseq
        %v1219 = vshrl.u32 %v1218, 7
        %v1220 = vsub.s32 0, %v1219
        %v1221 = vrot.slane %v1216, %v1220
        %v1227 = vunpack.c.l.b16 %v1211
        %v1228 = vunpack.c.l.b16 %v1212
        %v1229 = vunpack.c.l.b16 %v1213
        %v1230 = vunpack.c.l.b16 %v1214
        %v1231 = vpack.c.b16 %v1228, %v1227
        %v1232 = vpack.c.b16 %v1230, %v1229
        %1235 = vmatprep.subr.bf16.mxu0 0
        %1236 = vmatpush1.bf16.msra.mxu0 0
        %1237 = vmatprep.subr.bf16.mxu0 0
        %1238 = vmatpush1.bf16.msra.mxu0 0
        %1239 = vmatprep.subr.bf16.mxu0 0
        %1240 = vmatpush1.bf16.msra.mxu0 0
        %1241 = vmatprep.subr.bf16.mxu0 0
        %1242 = vmatpush1.bf16.msra.mxu0 0
        %1243 = vmatprep.subr.bf16.mxu0 0
        %1244 = vmatpush1.bf16.msra.mxu0 0
        %1245 = vmatprep.subr.bf16.mxu0 0
        %1246 = vmatpush1.bf16.msra.mxu0 0
        %1247 = vmatprep.subr.bf16.mxu0 0
        %1248 = vmatpush1.bf16.msra.mxu0 %v1232
        %1249 = vmatprep.subr.bf16.mxu0 0
        %1250 = vmatpush1.bf16.msra.mxu0 %v1231
        %1251 = vmatprep.subr.bf16.mxu0 0
        %1252 = vmatpush2.bf16.msra.mxu0 0
        %1253 = vmatprep.subr.bf16.mxu0 0
        %1254 = vmatpush2.bf16.msra.mxu0 0
        %1255 = vmatprep.subr.bf16.mxu0 0
        %1256 = vmatpush2.bf16.msra.mxu0 0
        %1257 = vmatprep.subr.bf16.mxu0 0
        %1258 = vmatpush2.bf16.msra.mxu0 0
        %1259 = vmatprep.subr.bf16.mxu0 0
        %1260 = vmatpush2.bf16.msra.mxu0 0
        %1261 = vmatprep.subr.bf16.mxu0 0
        %1262 = vmatpush2.bf16.msra.mxu0 0
        %1263 = vmatprep.subr.bf16.mxu0 0
        %1264 = vmatpush2.bf16.msra.mxu0 0
        %1265 = vmatprep.subr.bf16.mxu0 0
        %1266 = vmatpush2.bf16.msra.mxu0 0
        %1267 = vmatprep.mubr.bf16.mxu0 0
        %1268 = vmatmul.mubr.bf16.gmra.mxu0 %v491
        %v1269 = vpop.f32.mrf.mxu0
        %v1270 = vadd.f32 %v1221, %v1269
        %v1271 = vpop.f32.mrf.mxu0
        %v1272 = vpop.f32.mrf.mxu0
        %v1273 = vpop.f32.mrf.mxu0
        %1274 = vdwg.mxu0
        %v1275 = vpack.c.bf16 %v1270, %v1270
        %s1276 = scalar_lea.vmem %s442, 12
        %1277 = vst.msk [vmem:[%s1276] sm:$0xf] %vm534, %v1275
        %p1278 = scmp.lt.s32.totalorder %s27, 1
        %s1279 = scalar_select %p1278, %s27, 1
        %p1280 = scmp.lt.s32.totalorder %s28, 0
        %s1281 = scalar_select %p1280, %s28, 0
        %s1282 = smul.addr %s1279, 4
        %s1283 = sadd.s32 %s1281, %s1282
        %s1284 = smul.addr %s1283, 4
        %s1285 = scalar_lea.vmem %s8, %s1284
        %p1286 = scmp.lt.s32.totalorder %s27, 1
        %s1287 = scalar_select %p1286, %s27, 1
        %p1288 = scmp.lt.s32.totalorder %s28, 0
        %s1289 = scalar_select %p1288, %s28, 0
        %s1290 = smul.addr %s1287, 4
        %s1291 = sadd.s32 %s1289, %s1290
        %s1292 = smul.addr %s1291, 4
        %s1293 = scalar_lea.vmem %s9, %s1292
        %p1294 = scmp.lt.s32.totalorder %s27, 1
        %s1295 = scalar_select %p1294, %s27, 1
        %p1296 = scmp.lt.s32.totalorder %s28, 0
        %s1297 = scalar_select %p1296, %s28, 0
        %s1298 = smul.addr %s1295, 4
        %s1299 = sadd.s32 %s1297, %s1298
        %s1300 = smul.addr %s1299, 4
        %s1301 = scalar_lea.vmem %s10, %s1300
        // Predicated region
        $region57: #{decoder_block_forward.6} parent=51 // pred_check
          %p1302 = pneg %p230
        $region58: #{decoder_block_forward.6} parent=51 // pred_check_branch
          %1304 = sbr.rel (%p1302) target = $region60
        $region59: #{decoder_block_forward.6} parent=51 // pred_region
          _
        $region60: #{decoder_block_forward.6} parent=51 // pred_fallthru
          _
        // Predicated region
        $region61: #{decoder_block_forward.6} parent=51 // pred_check
          %p1305 = pneg %p258
        $region62: #{decoder_block_forward.6} parent=51 // pred_check_branch
          %1307 = sbr.rel (%p1305) target = $region64
        $region63: #{decoder_block_forward.6} parent=51 // pred_region
          _
        $region64: #{decoder_block_forward.6} parent=51 // pred_fallthru
          _
        // Predicated region
        $region65: #{decoder_block_forward.6} parent=51 // pred_check
          %p1308 = pneg %p286
        $region66: #{decoder_block_forward.6} parent=51 // pred_check_branch
          %1310 = sbr.rel (%p1308) target = $region68
        $region67: #{decoder_block_forward.6} parent=51 // pred_region
          _
        $region68: #{decoder_block_forward.6} parent=51 // pred_fallthru
          _
      $region52: #{decoder_block_forward.6} parent=5 // pred_fallthru
        _
      %p1311 = scmp.le.s32.totalorder 2, %s18
      // Predicated region
      $region69: #{decoder_block_forward.6} parent=5 // pred_check
        %p1312 = pneg %p1311
      $region70: #{decoder_block_forward.6} parent=5 // pred_check_branch
        %1314 = sbr.rel (%p1312) target = $region72
      $region71: #{decoder_block_forward.6} parent=5 // pred_region
        %s1315 = ssub.s32 %s18, 2
        // Predicated region
        $region73: #{decoder_block_forward.6} parent=71 // pred_check
          %p1316 = pneg %p236
        $region74: #{decoder_block_forward.6} parent=71 // pred_check_branch
          %1318 = sbr.rel (%p1316) target = $region76
        $region75: #{decoder_block_forward.6} parent=71 // pred_region
          %p1319 = scmp.lt.s32.totalorder %s29, 1
          %s1320 = scalar_select %p1319, %s29, 1
          %p1321 = scmp.lt.s32.totalorder %s30, 0
          %s1322 = scalar_select %p1321, %s30, 0
          %s1323 = smul.addr %s1320, 4
          %s1324 = sadd.s32 %s1322, %s1323
          %s1325 = smul.addr %s1324, 4
          %s1326 = scalar_lea.vmem %s8, %s1325
        $region76: #{decoder_block_forward.6} parent=71 // pred_fallthru
          _
        // Predicated region
        $region77: #{decoder_block_forward.6} parent=71 // pred_check
          %p1327 = pneg %p264
        $region78: #{decoder_block_forward.6} parent=71 // pred_check_branch
          %1329 = sbr.rel (%p1327) target = $region80
        $region79: #{decoder_block_forward.6} parent=71 // pred_region
          %p1330 = scmp.lt.s32.totalorder %s29, 1
          %s1331 = scalar_select %p1330, %s29, 1
          %p1332 = scmp.lt.s32.totalorder %s30, 0
          %s1333 = scalar_select %p1332, %s30, 0
          %s1334 = smul.addr %s1331, 4
          %s1335 = sadd.s32 %s1333, %s1334
          %s1336 = smul.addr %s1335, 4
          %s1337 = scalar_lea.vmem %s9, %s1336
        $region80: #{decoder_block_forward.6} parent=71 // pred_fallthru
          _
        // Predicated region
        $region81: #{decoder_block_forward.6} parent=71 // pred_check
          %p1338 = pneg %p292
        $region82: #{decoder_block_forward.6} parent=71 // pred_check_branch
          %1340 = sbr.rel (%p1338) target = $region84
        $region83: #{decoder_block_forward.6} parent=71 // pred_region
          %p1341 = scmp.lt.s32.totalorder %s29, 1
          %s1342 = scalar_select %p1341, %s29, 1
          %p1343 = scmp.lt.s32.totalorder %s30, 0
          %s1344 = scalar_select %p1343, %s30, 0
          %s1345 = smul.addr %s1342, 4
          %s1346 = sadd.s32 %s1344, %s1345
          %s1347 = smul.addr %s1346, 4
          %s1348 = scalar_lea.vmem %s10, %s1347
        $region84: #{decoder_block_forward.6} parent=71 // pred_fallthru
          _
      $region72: #{decoder_block_forward.6} parent=5 // pred_fallthru
        _
    $region6: #{decoder_block_forward.6} parent=1 // loop_footer
      %s22 = sadd.s32 1, %s18
    $region7: #{decoder_block_forward.6} parent=1 // loop_footer_branch
      %17 = sbr.rel target = $region3
    $region8: #{decoder_block_forward.6} parent=1 // loop_exit
      _
    %1349 = vsyncpa [#allocation3], 1
    %s1350 = scalar_lea.sflag [#allocation3], 1
    %1351 = vsyncpa %s1350, 1

// kernel: decoder_block_forward.9
$region0: #{decoder_block_forward.9}
  #allocation0 [shape = 'u32[]', space=smem, size = 0x4, offset = 0x4, fixed_abs, tag = 'smem constant byte address 0x4 - core index']
  #allocation1 [shape = 'u32[144,128]{1,0:T(1,128)}', space=vmem, size = 0x12000, scoped, tag = 'internal scratch']
  %s0 = inlined_call_operand.vmem [shape: f32[2,8,32], index: 0, kind: input, shape index: {}]
  %s1 = inlined_call_operand.vmem [shape: bf16[4,32,8], index: 1, kind: input, shape index: {}]
  %s2 = inlined_call_operand.vmem [shape: f32[4,1,8], index: 2, kind: input, shape index: {}]
  %s3 = inlined_call_operand.vmem [shape: bf16[4,32,8], index: 3, kind: input, shape index: {}]
  %s4 = inlined_call_operand.vmem [shape: f32[4,1,8], index: 4, kind: input, shape index: {}]
  %s5 = inlined_call_operand.vmem [shape: bf16[2,4,8,8], index: 5, kind: output, shape index: {0}]
  %s6 = inlined_call_operand.vmem [shape: bf16[2,4,8,8], index: 6, kind: output, shape index: {1}]
  %7 = xla_tuple %s5, %s6
  %s8 = sld [smem:[#allocation0]]
  $region61: #{decoder_block_forward.9} parent=0
    _
  %s10 = ssub.s32 1, %s8
  %s11 = scalar_select 0, %s10, %s8
  loop: start=0, step=1, limit=4
  $region2: #{decoder_block_forward.9} parent=0 // loop_pre_header
    _
  $region3: #{decoder_block_forward.9} parent=0 // loop_header
    %s13 = sphi 0, %s17
    %p14 = scmp.ge.s32.totalorder %s13, 4
    %s20 = sphi 0, %s32
    %s21 = sphi 0, %s28
    %s22 = sphi 0, %s20
    %s23 = sphi 0, %s21
    %s24 = sphi 0, %s22
    %s25 = sphi 0, %s23
    %s37 = sphi 0, %s39
    %s40 = sphi 0, %s37
    %s41 = sphi 0, %s40
    %s57 = sphi 0, %s41
    %s61 = sphi 0, %s61
    %s63 = sphi 0, %s61
    %s64 = sphi 0, %s63
    %s78 = sphi 0, %s64
    %s82 = sphi 0, %s82
    %s84 = sphi 0, %s82
    %s85 = sphi 0, %s84
    %s99 = sphi 0, %s85
    %s103 = sphi 0, %s103
    %s105 = sphi 0, %s103
    %s106 = sphi 0, %s105
    %s120 = sphi 0, %s106
    %s124 = sphi 0, %s124
    %s126 = sphi 0, %s124
    %s127 = sphi 0, %s126
    %s141 = sphi 0, %s127
    %s149 = sphi 0, %s151
    %s152 = sphi 0, %s149
    %s153 = sphi 0, %s152
    %s169 = sphi 0, %s153
    %s177 = sphi 0, %s179
    %s180 = sphi 0, %s177
    %s181 = sphi 0, %s180
    %s197 = sphi 0, %s181
  $region4: #{decoder_block_forward.9} parent=0 // loop_header_branch
    %16 = sbr.rel (%p14) target = $region8
  $region5: #{decoder_block_forward.9} parent=0 // loop_body
    %s18 = ssub.s32 %s13, 1
    %s19 = ssub.s32 %s13, 2
    %s26 = sadd.s32 1, %s21
    %p27 = scmp.ge.s32.totalorder %s26, 1
    %s28 = scalar_select %p27, 0, %s26
    %s29 = sadd.s32 1, %s20
    %s30 = scalar_select %p27, %s29, %s20
    %p31 = scmp.ge.s32.totalorder %s30, 2
    %s32 = scalar_select %p31, 0, %s30
    %s33 = ssub.s32 %s20, %s32
    %s34 = ssub.s32 %s21, %s28
    %s35 = sor.u32 %s33, %s34
    %p36 = scmp.eq.s32.totalorder %s35, 0
    %s38 = sadd.s32 %s37, 1
    %s39 = scalar_select %p36, %s37, %s38
    %p42 = pneg %p36
    %p43 = scmp.eq.s32.totalorder %s13, 1
    %p44 = por %p42, %p43
    %p45 = scmp.ne.s32.totalorder %s37, %s40
    %p46 = scmp.eq.s32.totalorder %s13, 0
    %p47 = por %p45, %p46
    %p48 = scmp.ne.s32.totalorder %s37, %s40
    %p49 = scmp.eq.s32.totalorder %s18, 1
    %p50 = por %p48, %p49
    %p51 = scmp.ne.s32.totalorder %s40, %s41
    %p52 = scmp.eq.s32.totalorder %s18, 0
    %p53 = por %p51, %p52
    %p54 = scmp.ne.s32.totalorder %s40, %s41
    %p55 = scmp.eq.s32.totalorder %s19, 1
    %p56 = por %p54, %p55
    %p58 = scmp.ne.s32.totalorder %s41, %s57
    %p59 = scmp.eq.s32.totalorder %s19, 0
    %p60 = por %p58, %p59
    %s62 = sadd.s32 %s61, 1
    %p65 = scmp.eq.s32.totalorder %s13, 1
    %p66 = scmp.ne.s32.totalorder %s61, %s63
    %p67 = scmp.eq.s32.totalorder %s13, 0
    %p68 = por %p66, %p67
    %p69 = scmp.ne.s32.totalorder %s61, %s63
    %p70 = scmp.eq.s32.totalorder %s18, 1
    %p71 = por %p69, %p70
    %p72 = scmp.ne.s32.totalorder %s63, %s64
    %p73 = scmp.eq.s32.totalorder %s18, 0
    %p74 = por %p72, %p73
    %p75 = scmp.ne.s32.totalorder %s63, %s64
    %p76 = scmp.eq.s32.totalorder %s19, 1
    %p77 = por %p75, %p76
    %p79 = scmp.ne.s32.totalorder %s64, %s78
    %p80 = scmp.eq.s32.totalorder %s19, 0
    %p81 = por %p79, %p80
    %s83 = sadd.s32 %s82, 1
    %p86 = scmp.eq.s32.totalorder %s13, 1
    %p87 = scmp.ne.s32.totalorder %s82, %s84
    %p88 = scmp.eq.s32.totalorder %s13, 0
    %p89 = por %p87, %p88
    %p90 = scmp.ne.s32.totalorder %s82, %s84
    %p91 = scmp.eq.s32.totalorder %s18, 1
    %p92 = por %p90, %p91
    %p93 = scmp.ne.s32.totalorder %s84, %s85
    %p94 = scmp.eq.s32.totalorder %s18, 0
    %p95 = por %p93, %p94
    %p96 = scmp.ne.s32.totalorder %s84, %s85
    %p97 = scmp.eq.s32.totalorder %s19, 1
    %p98 = por %p96, %p97
    %p100 = scmp.ne.s32.totalorder %s85, %s99
    %p101 = scmp.eq.s32.totalorder %s19, 0
    %p102 = por %p100, %p101
    %s104 = sadd.s32 %s103, 1
    %p107 = scmp.eq.s32.totalorder %s13, 1
    %p108 = scmp.ne.s32.totalorder %s103, %s105
    %p109 = scmp.eq.s32.totalorder %s13, 0
    %p110 = por %p108, %p109
    %p111 = scmp.ne.s32.totalorder %s103, %s105
    %p112 = scmp.eq.s32.totalorder %s18, 1
    %p113 = por %p111, %p112
    %p114 = scmp.ne.s32.totalorder %s105, %s106
    %p115 = scmp.eq.s32.totalorder %s18, 0
    %p116 = por %p114, %p115
    %p117 = scmp.ne.s32.totalorder %s105, %s106
    %p118 = scmp.eq.s32.totalorder %s19, 1
    %p119 = por %p117, %p118
    %p121 = scmp.ne.s32.totalorder %s106, %s120
    %p122 = scmp.eq.s32.totalorder %s19, 0
    %p123 = por %p121, %p122
    %s125 = sadd.s32 %s124, 1
    %p128 = scmp.eq.s32.totalorder %s13, 1
    %p129 = scmp.ne.s32.totalorder %s124, %s126
    %p130 = scmp.eq.s32.totalorder %s13, 0
    %p131 = por %p129, %p130
    %p132 = scmp.ne.s32.totalorder %s124, %s126
    %p133 = scmp.eq.s32.totalorder %s18, 1
    %p134 = por %p132, %p133
    %p135 = scmp.ne.s32.totalorder %s126, %s127
    %p136 = scmp.eq.s32.totalorder %s18, 0
    %p137 = por %p135, %p136
    %p138 = scmp.ne.s32.totalorder %s126, %s127
    %p139 = scmp.eq.s32.totalorder %s19, 1
    %p140 = por %p138, %p139
    %p142 = scmp.ne.s32.totalorder %s127, %s141
    %p143 = scmp.eq.s32.totalorder %s19, 0
    %p144 = por %p142, %p143
    %s145 = ssub.s32 %s20, %s32
    %s146 = ssub.s32 %s21, %s28
    %s147 = sor.u32 %s145, %s146
    %p148 = scmp.eq.s32.totalorder %s147, 0
    %s150 = sadd.s32 %s149, 1
    %s151 = scalar_select %p148, %s149, %s150
    %p154 = pneg %p148
    %p155 = scmp.eq.s32.totalorder %s13, 1
    %p156 = por %p154, %p155
    %p157 = scmp.ne.s32.totalorder %s149, %s152
    %p158 = scmp.eq.s32.totalorder %s13, 0
    %p159 = por %p157, %p158
    %p160 = scmp.ne.s32.totalorder %s149, %s152
    %p161 = scmp.eq.s32.totalorder %s18, 1
    %p162 = por %p160, %p161
    %p163 = scmp.ne.s32.totalorder %s152, %s153
    %p164 = scmp.eq.s32.totalorder %s18, 0
    %p165 = por %p163, %p164
    %p166 = scmp.ne.s32.totalorder %s152, %s153
    %p167 = scmp.eq.s32.totalorder %s19, 1
    %p168 = por %p166, %p167
    %p170 = scmp.ne.s32.totalorder %s153, %s169
    %p171 = scmp.eq.s32.totalorder %s19, 0
    %p172 = por %p170, %p171
    %s173 = ssub.s32 %s20, %s32
    %s174 = ssub.s32 %s21, %s28
    %s175 = sor.u32 %s173, %s174
    %p176 = scmp.eq.s32.totalorder %s175, 0
    %s178 = sadd.s32 %s177, 1
    %s179 = scalar_select %p176, %s177, %s178
    %p182 = pneg %p176
    %p183 = scmp.eq.s32.totalorder %s13, 1
    %p184 = por %p182, %p183
    %p185 = scmp.ne.s32.totalorder %s177, %s180
    %p186 = scmp.eq.s32.totalorder %s13, 0
    %p187 = por %p185, %p186
    %p188 = scmp.ne.s32.totalorder %s177, %s180
    %p189 = scmp.eq.s32.totalorder %s18, 1
    %p190 = por %p188, %p189
    %p191 = scmp.ne.s32.totalorder %s180, %s181
    %p192 = scmp.eq.s32.totalorder %s18, 0
    %p193 = por %p191, %p192
    %p194 = scmp.ne.s32.totalorder %s180, %s181
    %p195 = scmp.eq.s32.totalorder %s19, 1
    %p196 = por %p194, %p195
    %p198 = scmp.ne.s32.totalorder %s181, %s197
    %p199 = scmp.eq.s32.totalorder %s19, 0
    %p200 = por %p198, %p199
    %p201 = scmp.le.s32.totalorder 1, %s13
    %p202 = scmp.lt.s32.totalorder %s13, 3
    %p203 = pnand %p201, %p202
    %p204 = pneg %p203
    // Predicated region
    $region9: #{decoder_block_forward.9} parent=5 // pred_check
      _
    $region10: #{decoder_block_forward.9} parent=5 // pred_check_branch
      %206 = sbr.rel (%p203) target = $region12
    $region11: #{decoder_block_forward.9} parent=5 // pred_region
      %s207 = ssub.s32 %s13, 1
      // Predicated region
      $region13: #{decoder_block_forward.9} parent=11 // pred_check
        %p208 = pneg %p74
      $region14: #{decoder_block_forward.9} parent=11 // pred_check_branch
        %210 = sbr.rel (%p208) target = $region16
      $region15: #{decoder_block_forward.9} parent=11 // pred_region
        _
      $region16: #{decoder_block_forward.9} parent=11 // pred_fallthru
        _
      // Predicated region
      $region17: #{decoder_block_forward.9} parent=11 // pred_check
        %p211 = pneg %p95
      $region18: #{decoder_block_forward.9} parent=11 // pred_check_branch
        %213 = sbr.rel (%p211) target = $region20
      $region19: #{decoder_block_forward.9} parent=11 // pred_region
        _
      $region20: #{decoder_block_forward.9} parent=11 // pred_fallthru
        _
      // Predicated region
      $region21: #{decoder_block_forward.9} parent=11 // pred_check
        %p214 = pneg %p116
      $region22: #{decoder_block_forward.9} parent=11 // pred_check_branch
        %216 = sbr.rel (%p214) target = $region24
      $region23: #{decoder_block_forward.9} parent=11 // pred_region
        _
      $region24: #{decoder_block_forward.9} parent=11 // pred_fallthru
        _
      // Predicated region
      $region25: #{decoder_block_forward.9} parent=11 // pred_check
        %p217 = pneg %p137
      $region26: #{decoder_block_forward.9} parent=11 // pred_check_branch
        %219 = sbr.rel (%p217) target = $region28
      $region27: #{decoder_block_forward.9} parent=11 // pred_region
        _
      $region28: #{decoder_block_forward.9} parent=11 // pred_fallthru
        _
    $region12: #{decoder_block_forward.9} parent=5 // pred_fallthru
      _
    %p220 = scmp.lt.s32.totalorder %s13, 2
    // Predicated region
    $region29: #{decoder_block_forward.9} parent=5 // pred_check
      %p221 = pneg %p220
    $region30: #{decoder_block_forward.9} parent=5 // pred_check_branch
      %223 = sbr.rel (%p221) target = $region32
    $region31: #{decoder_block_forward.9} parent=5 // pred_region
      // Predicated region
      $region33: #{decoder_block_forward.9} parent=31 // pred_check
        %p224 = pneg %p47
      $region34: #{decoder_block_forward.9} parent=31 // pred_check_branch
        %226 = sbr.rel (%p224) target = $region36
      $region35: #{decoder_block_forward.9} parent=31 // pred_region
        %p227 = scmp.lt.s32.totalorder %s20, 1
        %s228 = scalar_select %p227, %s20, 1
        %p229 = scmp.lt.s32.totalorder %s21, 0
        %s230 = scalar_select %p229, %s21, 0
        %s231 = sadd.s32 %s230, %s228
        %s232 = smul.addr %s231, 8
        %s233 = scalar_lea.vmem %s0, %s232
      $region36: #{decoder_block_forward.9} parent=31 // pred_fallthru
        _
    $region32: #{decoder_block_forward.9} parent=5 // pred_fallthru
      _
    %p234 = scmp.le.s32.totalorder 1, %s13
    %p235 = scmp.lt.s32.totalorder %s13, 3
    %p236 = pnand %p234, %p235
    %p237 = pneg %p236
    // Predicated region
    $region37: #{decoder_block_forward.9} parent=5 // pred_check
      _
    $region38: #{decoder_block_forward.9} parent=5 // pred_check_branch
      %239 = sbr.rel (%p236) target = $region40
    $region39: #{decoder_block_forward.9} parent=5 // pred_region
      %s240 = ssub.s32 %s13, 1
      %p241 = scmp.lt.s32.totalorder %s22, 1
      %s242 = scalar_select %p241, %s22, 1
      %p243 = scmp.lt.s32.totalorder %s23, 0
      %s244 = scalar_select %p243, %s23, 0
      %s245 = sadd.s32 %s244, %s242
      %s246 = smul.addr %s245, 8
      %s247 = scalar_lea.vmem %s0, %s246
      %p248 = pneg %p53
      %p249 = pneg %p50
      %p250 = pneg %p74
      %p251 = pneg %p71
      %p252 = pneg %p95
      %p253 = pneg %p92
      %p254 = pneg %p116
      %p255 = pneg %p113
      %p256 = pneg %p137
      %p257 = pneg %p134
      %p258 = pneg %p165
      %p259 = pneg %p162
      %p260 = scmp.lt.s32.totalorder %s22, 1
      %s261 = scalar_select %p260, %s22, 1
      %p262 = scmp.lt.s32.totalorder %s23, 0
      %s263 = scalar_select %p262, %s23, 0
      %s264 = smul.addr %s261, 4
      %s265 = sadd.s32 %s263, %s264
      %s266 = smul.addr %s265, 4
      %s267 = scalar_lea.vmem %s5, %s266
      %p268 = pneg %p193
      %p269 = pneg %p190
      %p270 = scmp.lt.s32.totalorder %s22, 1
      %s271 = scalar_select %p270, %s22, 1
      %p272 = scmp.lt.s32.totalorder %s23, 0
      %s273 = scalar_select %p272, %s23, 0
      %s274 = smul.addr %s271, 4
      %s275 = sadd.s32 %s273, %s274
      %s276 = smul.addr %s275, 4
      %s277 = scalar_lea.vmem %s6, %s276
      %p278 = scmp.lt.s32.totalorder %s22, 1
      %s279 = scalar_select %p278, %s22, 1
      %p280 = scmp.lt.s32.totalorder %s23, 0
      %s281 = scalar_select %p280, %s23, 0
      %s282 = sadd.s32 %s281, %s279
      %s283 = smul.addr %s282, 8
      %s284 = scalar_lea.vmem %s0, %s283
      %p285 = scmp.lt.s32.totalorder %s22, 1
      %s286 = scalar_select %p285, %s22, 1
      %p287 = scmp.lt.s32.totalorder %s23, 0
      %s288 = scalar_select %p287, %s23, 0
      %s289 = smul.addr %s286, 4
      %s290 = sadd.s32 %s288, %s289
      %s291 = smul.addr %s290, 4
      %s292 = scalar_lea.vmem %s5, %s291
      %p293 = scmp.lt.s32.totalorder %s22, 1
      %s294 = scalar_select %p293, %s22, 1
      %p295 = scmp.lt.s32.totalorder %s23, 0
      %s296 = scalar_select %p295, %s23, 0
      %s297 = smul.addr %s294, 4
      %s298 = sadd.s32 %s296, %s297
      %s299 = smul.addr %s298, 4
      %s300 = scalar_lea.vmem %s6, %s299
      %v302 = vld [vmem:[%s284] sm:$0xff]
      %v303 = vpack.c.bf16 %v302, %v302
      %v304 = vld [vmem:[%s1] sm:$0xf]
      %v305 = vld [vmem:[%s1 + $0x4] sm:$0xf]
      %v306 = vld [vmem:[%s1 + $0x8] sm:$0xf]
      %v307 = vld [vmem:[%s1 + $0xc] sm:$0xf]
      %v308 = vld [vmem:[%s2] sm:$0x1]
      %v310 = vlaneseq
      %v311 = vshrl.u32 %v310, 7
      %v312 = vsub.s32 0, %v311
      %v313 = vrot.slane %v308, %v312
      %v319 = vunpack.c.l.b16 %v304
      %v320 = vunpack.c.l.b16 %v305
      %v321 = vunpack.c.l.b16 %v306
      %v322 = vunpack.c.l.b16 %v307
      %v323 = vpack.c.b16 %v320, %v319
      %v324 = vpack.c.b16 %v322, %v321
      %vm327 = vcmask 261120
      %v329 = vsel %vm327, %v303, 0
      %331 = vmatprep.subr.bf16.mxu0 0
      %332 = vmatpush1.bf16.msra.mxu0 0
      %333 = vmatprep.subr.bf16.mxu0 0
      %334 = vmatpush1.bf16.msra.mxu0 0
      %335 = vmatprep.subr.bf16.mxu0 0
      %336 = vmatpush1.bf16.msra.mxu0 0
      %337 = vmatprep.subr.bf16.mxu0 0
      %338 = vmatpush1.bf16.msra.mxu0 0
      %339 = vmatprep.subr.bf16.mxu0 0
      %340 = vmatpush1.bf16.msra.mxu0 0
      %341 = vmatprep.subr.bf16.mxu0 0
      %342 = vmatpush1.bf16.msra.mxu0 0
      %343 = vmatprep.subr.bf16.mxu0 0
      %344 = vmatpush1.bf16.msra.mxu0 %v324
      %345 = vmatprep.subr.bf16.mxu0 0
      %346 = vmatpush1.bf16.msra.mxu0 %v323
      %347 = vmatprep.subr.bf16.mxu0 0
      %348 = vmatpush2.bf16.msra.mxu0 0
      %349 = vmatprep.subr.bf16.mxu0 0
      %350 = vmatpush2.bf16.msra.mxu0 0
      %351 = vmatprep.subr.bf16.mxu0 0
      %352 = vmatpush2.bf16.msra.mxu0 0
      %353 = vmatprep.subr.bf16.mxu0 0
      %354 = vmatpush2.bf16.msra.mxu0 0
      %355 = vmatprep.subr.bf16.mxu0 0
      %356 = vmatpush2.bf16.msra.mxu0 0
      %357 = vmatprep.subr.bf16.mxu0 0
      %358 = vmatpush2.bf16.msra.mxu0 0
      %359 = vmatprep.subr.bf16.mxu0 0
      %360 = vmatpush2.bf16.msra.mxu0 0
      %361 = vmatprep.subr.bf16.mxu0 0
      %362 = vmatpush2.bf16.msra.mxu0 0
      %363 = vmatprep.mubr.bf16.mxu0 0
      %364 = vmatmul.mubr.bf16.gmra.mxu0 %v329
      %v365 = vpop.f32.mrf.mxu0
      %v366 = vadd.f32 %v313, %v365
      %v367 = vpop.f32.mrf.mxu0
      %v368 = vpop.f32.mrf.mxu0
      %v369 = vpop.f32.mrf.mxu0
      %370 = vdwg.mxu0
      %v371 = vpack.c.bf16 %v366, %v366
      %vm372 = vcmask 60416
      %373 = vst.msk [vmem:[%s292] sm:$0xf] %vm372, %v371
      %v374 = vld [vmem:[%s3] sm:$0xf]
      %v375 = vld [vmem:[%s3 + $0x4] sm:$0xf]
      %v376 = vld [vmem:[%s3 + $0x8] sm:$0xf]
      %v377 = vld [vmem:[%s3 + $0xc] sm:$0xf]
      %v378 = vld [vmem:[%s4] sm:$0x1]
      %v380 = vlaneseq
      %v381 = vshrl.u32 %v380, 7
      %v382 = vsub.s32 0, %v381
      %v383 = vrot.slane %v378, %v382
      %v389 = vunpack.c.l.b16 %v374
      %v390 = vunpack.c.l.b16 %v375
      %v391 = vunpack.c.l.b16 %v376
      %v392 = vunpack.c.l.b16 %v377
      %v393 = vpack.c.b16 %v390, %v389
      %v394 = vpack.c.b16 %v392, %v391
      %397 = vmatprep.subr.bf16.mxu0 0
      %398 = vmatpush1.bf16.msra.mxu0 0
      %399 = vmatprep.subr.bf16.mxu0 0
      %400 = vmatpush1.bf16.msra.mxu0 0
      %401 = vmatprep.subr.bf16.mxu0 0
      %402 = vmatpush1.bf16.msra.mxu0 0
      %403 = vmatprep.subr.bf16.mxu0 0
      %404 = vmatpush1.bf16.msra.mxu0 0
      %405 = vmatprep.subr.bf16.mxu0 0
      %406 = vmatpush1.bf16.msra.mxu0 0
      %407 = vmatprep.subr.bf16.mxu0 0
      %408 = vmatpush1.bf16.msra.mxu0 0
      %409 = vmatprep.subr.bf16.mxu0 0
      %410 = vmatpush1.bf16.msra.mxu0 %v394
      %411 = vmatprep.subr.bf16.mxu0 0
      %412 = vmatpush1.bf16.msra.mxu0 %v393
      %413 = vmatprep.subr.bf16.mxu0 0
      %414 = vmatpush2.bf16.msra.mxu0 0
      %415 = vmatprep.subr.bf16.mxu0 0
      %416 = vmatpush2.bf16.msra.mxu0 0
      %417 = vmatprep.subr.bf16.mxu0 0
      %418 = vmatpush2.bf16.msra.mxu0 0
      %419 = vmatprep.subr.bf16.mxu0 0
      %420 = vmatpush2.bf16.msra.mxu0 0
      %421 = vmatprep.subr.bf16.mxu0 0
      %422 = vmatpush2.bf16.msra.mxu0 0
      %423 = vmatprep.subr.bf16.mxu0 0
      %424 = vmatpush2.bf16.msra.mxu0 0
      %425 = vmatprep.subr.bf16.mxu0 0
      %426 = vmatpush2.bf16.msra.mxu0 0
      %427 = vmatprep.subr.bf16.mxu0 0
      %428 = vmatpush2.bf16.msra.mxu0 0
      %429 = vmatprep.mubr.bf16.mxu0 0
      %430 = vmatmul.mubr.bf16.gmra.mxu0 %v329
      %v431 = vpop.f32.mrf.mxu0
      %v432 = vadd.f32 %v383, %v431
      %v433 = vpop.f32.mrf.mxu0
      %v434 = vpop.f32.mrf.mxu0
      %v435 = vpop.f32.mrf.mxu0
      %436 = vdwg.mxu0
      %v437 = vpack.c.bf16 %v432, %v432
      %438 = vst.msk [vmem:[%s300] sm:$0xf] %vm372, %v437
      %s439 = scalar_lea.vmem %s1, 16
      %v440 = vld [vmem:[%s439] sm:$0xf]
      %v441 = vld [vmem:[%s439 + $0x4] sm:$0xf]
      %v442 = vld [vmem:[%s439 + $0x8] sm:$0xf]
      %v443 = vld [vmem:[%s439 + $0xc] sm:$0xf]
      %s444 = scalar_lea.vmem %s2, 1
      %v445 = vld [vmem:[%s444] sm:$0x1]
      %v447 = vlaneseq
      %v448 = vshrl.u32 %v447, 7
      %v449 = vsub.s32 0, %v448
      %v450 = vrot.slane %v445, %v449
      %v456 = vunpack.c.l.b16 %v440
      %v457 = vunpack.c.l.b16 %v441
      %v458 = vunpack.c.l.b16 %v442
      %v459 = vunpack.c.l.b16 %v443
      %v460 = vpack.c.b16 %v457, %v456
      %v461 = vpack.c.b16 %v459, %v458
      %464 = vmatprep.subr.bf16.mxu0 0
      %465 = vmatpush1.bf16.msra.mxu0 0
      %466 = vmatprep.subr.bf16.mxu0 0
      %467 = vmatpush1.bf16.msra.mxu0 0
      %468 = vmatprep.subr.bf16.mxu0 0
      %469 = vmatpush1.bf16.msra.mxu0 0
      %470 = vmatprep.subr.bf16.mxu0 0
      %471 = vmatpush1.bf16.msra.mxu0 0
      %472 = vmatprep.subr.bf16.mxu0 0
      %473 = vmatpush1.bf16.msra.mxu0 0
      %474 = vmatprep.subr.bf16.mxu0 0
      %475 = vmatpush1.bf16.msra.mxu0 0
      %476 = vmatprep.subr.bf16.mxu0 0
      %477 = vmatpush1.bf16.msra.mxu0 %v461
      %478 = vmatprep.subr.bf16.mxu0 0
      %479 = vmatpush1.bf16.msra.mxu0 %v460
      %480 = vmatprep.subr.bf16.mxu0 0
      %481 = vmatpush2.bf16.msra.mxu0 0
      %482 = vmatprep.subr.bf16.mxu0 0
      %483 = vmatpush2.bf16.msra.mxu0 0
      %484 = vmatprep.subr.bf16.mxu0 0
      %485 = vmatpush2.bf16.msra.mxu0 0
      %486 = vmatprep.subr.bf16.mxu0 0
      %487 = vmatpush2.bf16.msra.mxu0 0
      %488 = vmatprep.subr.bf16.mxu0 0
      %489 = vmatpush2.bf16.msra.mxu0 0
      %490 = vmatprep.subr.bf16.mxu0 0
      %491 = vmatpush2.bf16.msra.mxu0 0
      %492 = vmatprep.subr.bf16.mxu0 0
      %493 = vmatpush2.bf16.msra.mxu0 0
      %494 = vmatprep.subr.bf16.mxu0 0
      %495 = vmatpush2.bf16.msra.mxu0 0
      %496 = vmatprep.mubr.bf16.mxu0 0
      %497 = vmatmul.mubr.bf16.gmra.mxu0 %v329
      %v498 = vpop.f32.mrf.mxu0
      %v499 = vadd.f32 %v450, %v498
      %v500 = vpop.f32.mrf.mxu0
      %v501 = vpop.f32.mrf.mxu0
      %v502 = vpop.f32.mrf.mxu0
      %503 = vdwg.mxu0
      %v504 = vpack.c.bf16 %v499, %v499
      %s505 = scalar_lea.vmem %s292, 4
      %506 = vst.msk [vmem:[%s505] sm:$0xf] %vm372, %v504
      %s507 = scalar_lea.vmem %s3, 16
      %v508 = vld [vmem:[%s507] sm:$0xf]
      %v509 = vld [vmem:[%s507 + $0x4] sm:$0xf]
      %v510 = vld [vmem:[%s507 + $0x8] sm:$0xf]
      %v511 = vld [vmem:[%s507 + $0xc] sm:$0xf]
      %s512 = scalar_lea.vmem %s4, 1
      %v513 = vld [vmem:[%s512] sm:$0x1]
      %v515 = vlaneseq
      %v516 = vshrl.u32 %v515, 7
      %v517 = vsub.s32 0, %v516
      %v518 = vrot.slane %v513, %v517
      %v524 = vunpack.c.l.b16 %v508
      %v525 = vunpack.c.l.b16 %v509
      %v526 = vunpack.c.l.b16 %v510
      %v527 = vunpack.c.l.b16 %v511
      %v528 = vpack.c.b16 %v525, %v524
      %v529 = vpack.c.b16 %v527, %v526
      %532 = vmatprep.subr.bf16.mxu0 0
      %533 = vmatpush1.bf16.msra.mxu0 0
      %534 = vmatprep.subr.bf16.mxu0 0
      %535 = vmatpush1.bf16.msra.mxu0 0
      %536 = vmatprep.subr.bf16.mxu0 0
      %537 = vmatpush1.bf16.msra.mxu0 0
      %538 = vmatprep.subr.bf16.mxu0 0
      %539 = vmatpush1.bf16.msra.mxu0 0
      %540 = vmatprep.subr.bf16.mxu0 0
      %541 = vmatpush1.bf16.msra.mxu0 0
      %542 = vmatprep.subr.bf16.mxu0 0
      %543 = vmatpush1.bf16.msra.mxu0 0
      %544 = vmatprep.subr.bf16.mxu0 0
      %545 = vmatpush1.bf16.msra.mxu0 %v529
      %546 = vmatprep.subr.bf16.mxu0 0
      %547 = vmatpush1.bf16.msra.mxu0 %v528
      %548 = vmatprep.subr.bf16.mxu0 0
      %549 = vmatpush2.bf16.msra.mxu0 0
      %550 = vmatprep.subr.bf16.mxu0 0
      %551 = vmatpush2.bf16.msra.mxu0 0
      %552 = vmatprep.subr.bf16.mxu0 0
      %553 = vmatpush2.bf16.msra.mxu0 0
      %554 = vmatprep.subr.bf16.mxu0 0
      %555 = vmatpush2.bf16.msra.mxu0 0
      %556 = vmatprep.subr.bf16.mxu0 0
      %557 = vmatpush2.bf16.msra.mxu0 0
      %558 = vmatprep.subr.bf16.mxu0 0
      %559 = vmatpush2.bf16.msra.mxu0 0
      %560 = vmatprep.subr.bf16.mxu0 0
      %561 = vmatpush2.bf16.msra.mxu0 0
      %562 = vmatprep.subr.bf16.mxu0 0
      %563 = vmatpush2.bf16.msra.mxu0 0
      %564 = vmatprep.mubr.bf16.mxu0 0
      %565 = vmatmul.mubr.bf16.gmra.mxu0 %v329
      %v566 = vpop.f32.mrf.mxu0
      %v567 = vadd.f32 %v518, %v566
      %v568 = vpop.f32.mrf.mxu0
      %v569 = vpop.f32.mrf.mxu0
      %v570 = vpop.f32.mrf.mxu0
      %571 = vdwg.mxu0
      %v572 = vpack.c.bf16 %v567, %v567
      %s573 = scalar_lea.vmem %s300, 4
      %574 = vst.msk [vmem:[%s573] sm:$0xf] %vm372, %v572
      %s575 = scalar_lea.vmem %s1, 32
      %v576 = vld [vmem:[%s575] sm:$0xf]
      %v577 = vld [vmem:[%s575 + $0x4] sm:$0xf]
      %v578 = vld [vmem:[%s575 + $0x8] sm:$0xf]
      %v579 = vld [vmem:[%s575 + $0xc] sm:$0xf]
      %s580 = scalar_lea.vmem %s2, 2
      %v581 = vld [vmem:[%s580] sm:$0x1]
      %v583 = vlaneseq
      %v584 = vshrl.u32 %v583, 7
      %v585 = vsub.s32 0, %v584
      %v586 = vrot.slane %v581, %v585
      %v592 = vunpack.c.l.b16 %v576
      %v593 = vunpack.c.l.b16 %v577
      %v594 = vunpack.c.l.b16 %v578
      %v595 = vunpack.c.l.b16 %v579
      %v596 = vpack.c.b16 %v593, %v592
      %v597 = vpack.c.b16 %v595, %v594
      %600 = vmatprep.subr.bf16.mxu0 0
      %601 = vmatpush1.bf16.msra.mxu0 0
      %602 = vmatprep.subr.bf16.mxu0 0
      %603 = vmatpush1.bf16.msra.mxu0 0
      %604 = vmatprep.subr.bf16.mxu0 0
      %605 = vmatpush1.bf16.msra.mxu0 0
      %606 = vmatprep.subr.bf16.mxu0 0
      %607 = vmatpush1.bf16.msra.mxu0 0
      %608 = vmatprep.subr.bf16.mxu0 0
      %609 = vmatpush1.bf16.msra.mxu0 0
      %610 = vmatprep.subr.bf16.mxu0 0
      %611 = vmatpush1.bf16.msra.mxu0 0
      %612 = vmatprep.subr.bf16.mxu0 0
      %613 = vmatpush1.bf16.msra.mxu0 %v597
      %614 = vmatprep.subr.bf16.mxu0 0
      %615 = vmatpush1.bf16.msra.mxu0 %v596
      %616 = vmatprep.subr.bf16.mxu0 0
      %617 = vmatpush2.bf16.msra.mxu0 0
      %618 = vmatprep.subr.bf16.mxu0 0
      %619 = vmatpush2.bf16.msra.mxu0 0
      %620 = vmatprep.subr.bf16.mxu0 0
      %621 = vmatpush2.bf16.msra.mxu0 0
      %622 = vmatprep.subr.bf16.mxu0 0
      %623 = vmatpush2.bf16.msra.mxu0 0
      %624 = vmatprep.subr.bf16.mxu0 0
      %625 = vmatpush2.bf16.msra.mxu0 0
      %626 = vmatprep.subr.bf16.mxu0 0
      %627 = vmatpush2.bf16.msra.mxu0 0
      %628 = vmatprep.subr.bf16.mxu0 0
      %629 = vmatpush2.bf16.msra.mxu0 0
      %630 = vmatprep.subr.bf16.mxu0 0
      %631 = vmatpush2.bf16.msra.mxu0 0
      %632 = vmatprep.mubr.bf16.mxu0 0
      %633 = vmatmul.mubr.bf16.gmra.mxu0 %v329
      %v634 = vpop.f32.mrf.mxu0
      %v635 = vadd.f32 %v586, %v634
      %v636 = vpop.f32.mrf.mxu0
      %v637 = vpop.f32.mrf.mxu0
      %v638 = vpop.f32.mrf.mxu0
      %639 = vdwg.mxu0
      %v640 = vpack.c.bf16 %v635, %v635
      %s641 = scalar_lea.vmem %s292, 8
      %642 = vst.msk [vmem:[%s641] sm:$0xf] %vm372, %v640
      %s643 = scalar_lea.vmem %s3, 32
      %v644 = vld [vmem:[%s643] sm:$0xf]
      %v645 = vld [vmem:[%s643 + $0x4] sm:$0xf]
      %v646 = vld [vmem:[%s643 + $0x8] sm:$0xf]
      %v647 = vld [vmem:[%s643 + $0xc] sm:$0xf]
      %s648 = scalar_lea.vmem %s4, 2
      %v649 = vld [vmem:[%s648] sm:$0x1]
      %v651 = vlaneseq
      %v652 = vshrl.u32 %v651, 7
      %v653 = vsub.s32 0, %v652
      %v654 = vrot.slane %v649, %v653
      %v660 = vunpack.c.l.b16 %v644
      %v661 = vunpack.c.l.b16 %v645
      %v662 = vunpack.c.l.b16 %v646
      %v663 = vunpack.c.l.b16 %v647
      %v664 = vpack.c.b16 %v661, %v660
      %v665 = vpack.c.b16 %v663, %v662
      %668 = vmatprep.subr.bf16.mxu0 0
      %669 = vmatpush1.bf16.msra.mxu0 0
      %670 = vmatprep.subr.bf16.mxu0 0
      %671 = vmatpush1.bf16.msra.mxu0 0
      %672 = vmatprep.subr.bf16.mxu0 0
      %673 = vmatpush1.bf16.msra.mxu0 0
      %674 = vmatprep.subr.bf16.mxu0 0
      %675 = vmatpush1.bf16.msra.mxu0 0
      %676 = vmatprep.subr.bf16.mxu0 0
      %677 = vmatpush1.bf16.msra.mxu0 0
      %678 = vmatprep.subr.bf16.mxu0 0
      %679 = vmatpush1.bf16.msra.mxu0 0
      %680 = vmatprep.subr.bf16.mxu0 0
      %681 = vmatpush1.bf16.msra.mxu0 %v665
      %682 = vmatprep.subr.bf16.mxu0 0
      %683 = vmatpush1.bf16.msra.mxu0 %v664
      %684 = vmatprep.subr.bf16.mxu0 0
      %685 = vmatpush2.bf16.msra.mxu0 0
      %686 = vmatprep.subr.bf16.mxu0 0
      %687 = vmatpush2.bf16.msra.mxu0 0
      %688 = vmatprep.subr.bf16.mxu0 0
      %689 = vmatpush2.bf16.msra.mxu0 0
      %690 = vmatprep.subr.bf16.mxu0 0
      %691 = vmatpush2.bf16.msra.mxu0 0
      %692 = vmatprep.subr.bf16.mxu0 0
      %693 = vmatpush2.bf16.msra.mxu0 0
      %694 = vmatprep.subr.bf16.mxu0 0
      %695 = vmatpush2.bf16.msra.mxu0 0
      %696 = vmatprep.subr.bf16.mxu0 0
      %697 = vmatpush2.bf16.msra.mxu0 0
      %698 = vmatprep.subr.bf16.mxu0 0
      %699 = vmatpush2.bf16.msra.mxu0 0
      %700 = vmatprep.mubr.bf16.mxu0 0
      %701 = vmatmul.mubr.bf16.gmra.mxu0 %v329
      %v702 = vpop.f32.mrf.mxu0
      %v703 = vadd.f32 %v654, %v702
      %v704 = vpop.f32.mrf.mxu0
      %v705 = vpop.f32.mrf.mxu0
      %v706 = vpop.f32.mrf.mxu0
      %707 = vdwg.mxu0
      %v708 = vpack.c.bf16 %v703, %v703
      %s709 = scalar_lea.vmem %s300, 8
      %710 = vst.msk [vmem:[%s709] sm:$0xf] %vm372, %v708
      %s711 = scalar_lea.vmem %s1, 48
      %v712 = vld [vmem:[%s711] sm:$0xf]
      %v713 = vld [vmem:[%s711 + $0x4] sm:$0xf]
      %v714 = vld [vmem:[%s711 + $0x8] sm:$0xf]
      %v715 = vld [vmem:[%s711 + $0xc] sm:$0xf]
      %s716 = scalar_lea.vmem %s2, 3
      %v717 = vld [vmem:[%s716] sm:$0x1]
      %v719 = vlaneseq
      %v720 = vshrl.u32 %v719, 7
      %v721 = vsub.s32 0, %v720
      %v722 = vrot.slane %v717, %v721
      %v728 = vunpack.c.l.b16 %v712
      %v729 = vunpack.c.l.b16 %v713
      %v730 = vunpack.c.l.b16 %v714
      %v731 = vunpack.c.l.b16 %v715
      %v732 = vpack.c.b16 %v729, %v728
      %v733 = vpack.c.b16 %v731, %v730
      %736 = vmatprep.subr.bf16.mxu0 0
      %737 = vmatpush1.bf16.msra.mxu0 0
      %738 = vmatprep.subr.bf16.mxu0 0
      %739 = vmatpush1.bf16.msra.mxu0 0
      %740 = vmatprep.subr.bf16.mxu0 0
      %741 = vmatpush1.bf16.msra.mxu0 0
      %742 = vmatprep.subr.bf16.mxu0 0
      %743 = vmatpush1.bf16.msra.mxu0 0
      %744 = vmatprep.subr.bf16.mxu0 0
      %745 = vmatpush1.bf16.msra.mxu0 0
      %746 = vmatprep.subr.bf16.mxu0 0
      %747 = vmatpush1.bf16.msra.mxu0 0
      %748 = vmatprep.subr.bf16.mxu0 0
      %749 = vmatpush1.bf16.msra.mxu0 %v733
      %750 = vmatprep.subr.bf16.mxu0 0
      %751 = vmatpush1.bf16.msra.mxu0 %v732
      %752 = vmatprep.subr.bf16.mxu0 0
      %753 = vmatpush2.bf16.msra.mxu0 0
      %754 = vmatprep.subr.bf16.mxu0 0
      %755 = vmatpush2.bf16.msra.mxu0 0
      %756 = vmatprep.subr.bf16.mxu0 0
      %757 = vmatpush2.bf16.msra.mxu0 0
      %758 = vmatprep.subr.bf16.mxu0 0
      %759 = vmatpush2.bf16.msra.mxu0 0
      %760 = vmatprep.subr.bf16.mxu0 0
      %761 = vmatpush2.bf16.msra.mxu0 0
      %762 = vmatprep.subr.bf16.mxu0 0
      %763 = vmatpush2.bf16.msra.mxu0 0
      %764 = vmatprep.subr.bf16.mxu0 0
      %765 = vmatpush2.bf16.msra.mxu0 0
      %766 = vmatprep.subr.bf16.mxu0 0
      %767 = vmatpush2.bf16.msra.mxu0 0
      %768 = vmatprep.mubr.bf16.mxu0 0
      %769 = vmatmul.mubr.bf16.gmra.mxu0 %v329
      %v770 = vpop.f32.mrf.mxu0
      %v771 = vadd.f32 %v722, %v770
      %v772 = vpop.f32.mrf.mxu0
      %v773 = vpop.f32.mrf.mxu0
      %v774 = vpop.f32.mrf.mxu0
      %775 = vdwg.mxu0
      %v776 = vpack.c.bf16 %v771, %v771
      %s777 = scalar_lea.vmem %s292, 12
      %778 = vst.msk [vmem:[%s777] sm:$0xf] %vm372, %v776
      %s779 = scalar_lea.vmem %s3, 48
      %v780 = vld [vmem:[%s779] sm:$0xf]
      %v781 = vld [vmem:[%s779 + $0x4] sm:$0xf]
      %v782 = vld [vmem:[%s779 + $0x8] sm:$0xf]
      %v783 = vld [vmem:[%s779 + $0xc] sm:$0xf]
      %s784 = scalar_lea.vmem %s4, 3
      %v785 = vld [vmem:[%s784] sm:$0x1]
      %v787 = vlaneseq
      %v788 = vshrl.u32 %v787, 7
      %v789 = vsub.s32 0, %v788
      %v790 = vrot.slane %v785, %v789
      %v796 = vunpack.c.l.b16 %v780
      %v797 = vunpack.c.l.b16 %v781
      %v798 = vunpack.c.l.b16 %v782
      %v799 = vunpack.c.l.b16 %v783
      %v800 = vpack.c.b16 %v797, %v796
      %v801 = vpack.c.b16 %v799, %v798
      %804 = vmatprep.subr.bf16.mxu0 0
      %805 = vmatpush1.bf16.msra.mxu0 0
      %806 = vmatprep.subr.bf16.mxu0 0
      %807 = vmatpush1.bf16.msra.mxu0 0
      %808 = vmatprep.subr.bf16.mxu0 0
      %809 = vmatpush1.bf16.msra.mxu0 0
      %810 = vmatprep.subr.bf16.mxu0 0
      %811 = vmatpush1.bf16.msra.mxu0 0
      %812 = vmatprep.subr.bf16.mxu0 0
      %813 = vmatpush1.bf16.msra.mxu0 0
      %814 = vmatprep.subr.bf16.mxu0 0
      %815 = vmatpush1.bf16.msra.mxu0 0
      %816 = vmatprep.subr.bf16.mxu0 0
      %817 = vmatpush1.bf16.msra.mxu0 %v801
      %818 = vmatprep.subr.bf16.mxu0 0
      %819 = vmatpush1.bf16.msra.mxu0 %v800
      %820 = vmatprep.subr.bf16.mxu0 0
      %821 = vmatpush2.bf16.msra.mxu0 0
      %822 = vmatprep.subr.bf16.mxu0 0
      %823 = vmatpush2.bf16.msra.mxu0 0
      %824 = vmatprep.subr.bf16.mxu0 0
      %825 = vmatpush2.bf16.msra.mxu0 0
      %826 = vmatprep.subr.bf16.mxu0 0
      %827 = vmatpush2.bf16.msra.mxu0 0
      %828 = vmatprep.subr.bf16.mxu0 0
      %829 = vmatpush2.bf16.msra.mxu0 0
      %830 = vmatprep.subr.bf16.mxu0 0
      %831 = vmatpush2.bf16.msra.mxu0 0
      %832 = vmatprep.subr.bf16.mxu0 0
      %833 = vmatpush2.bf16.msra.mxu0 0
      %834 = vmatprep.subr.bf16.mxu0 0
      %835 = vmatpush2.bf16.msra.mxu0 0
      %836 = vmatprep.mubr.bf16.mxu0 0
      %837 = vmatmul.mubr.bf16.gmra.mxu0 %v329
      %v838 = vpop.f32.mrf.mxu0
      %v839 = vadd.f32 %v790, %v838
      %v840 = vpop.f32.mrf.mxu0
      %v841 = vpop.f32.mrf.mxu0
      %v842 = vpop.f32.mrf.mxu0
      %843 = vdwg.mxu0
      %v844 = vpack.c.bf16 %v839, %v839
      %s845 = scalar_lea.vmem %s300, 12
      %846 = vst.msk [vmem:[%s845] sm:$0xf] %vm372, %v844
      %p847 = scmp.lt.s32.totalorder %s22, 1
      %s848 = scalar_select %p847, %s22, 1
      %p849 = scmp.lt.s32.totalorder %s23, 0
      %s850 = scalar_select %p849, %s23, 0
      %s851 = smul.addr %s848, 4
      %s852 = sadd.s32 %s850, %s851
      %s853 = smul.addr %s852, 4
      %s854 = scalar_lea.vmem %s5, %s853
      %p855 = scmp.lt.s32.totalorder %s22, 1
      %s856 = scalar_select %p855, %s22, 1
      %p857 = scmp.lt.s32.totalorder %s23, 0
      %s858 = scalar_select %p857, %s23, 0
      %s859 = smul.addr %s856, 4
      %s860 = sadd.s32 %s858, %s859
      %s861 = smul.addr %s860, 4
      %s862 = scalar_lea.vmem %s6, %s861
      // Predicated region
      $region41: #{decoder_block_forward.9} parent=39 // pred_check
        %p863 = pneg %p162
      $region42: #{decoder_block_forward.9} parent=39 // pred_check_branch
        %865 = sbr.rel (%p863) target = $region44
      $region43: #{decoder_block_forward.9} parent=39 // pred_region
        _
      $region44: #{decoder_block_forward.9} parent=39 // pred_fallthru
        _
      // Predicated region
      $region45: #{decoder_block_forward.9} parent=39 // pred_check
        %p866 = pneg %p190
      $region46: #{decoder_block_forward.9} parent=39 // pred_check_branch
        %868 = sbr.rel (%p866) target = $region48
      $region47: #{decoder_block_forward.9} parent=39 // pred_region
        _
      $region48: #{decoder_block_forward.9} parent=39 // pred_fallthru
        _
    $region40: #{decoder_block_forward.9} parent=5 // pred_fallthru
      _
    %p869 = scmp.le.s32.totalorder 2, %s13
    // Predicated region
    $region49: #{decoder_block_forward.9} parent=5 // pred_check
      %p870 = pneg %p869
    $region50: #{decoder_block_forward.9} parent=5 // pred_check_branch
      %872 = sbr.rel (%p870) target = $region52
    $region51: #{decoder_block_forward.9} parent=5 // pred_region
      %s873 = ssub.s32 %s13, 2
      // Predicated region
      $region53: #{decoder_block_forward.9} parent=51 // pred_check
        %p874 = pneg %p168
      $region54: #{decoder_block_forward.9} parent=51 // pred_check_branch
        %876 = sbr.rel (%p874) target = $region56
      $region55: #{decoder_block_forward.9} parent=51 // pred_region
        %p877 = scmp.lt.s32.totalorder %s24, 1
        %s878 = scalar_select %p877, %s24, 1
        %p879 = scmp.lt.s32.totalorder %s25, 0
        %s880 = scalar_select %p879, %s25, 0
        %s881 = smul.addr %s878, 4
        %s882 = sadd.s32 %s880, %s881
        %s883 = smul.addr %s882, 4
        %s884 = scalar_lea.vmem %s5, %s883
      $region56: #{decoder_block_forward.9} parent=51 // pred_fallthru
        _
      // Predicated region
      $region57: #{decoder_block_forward.9} parent=51 // pred_check
        %p885 = pneg %p196
      $region58: #{decoder_block_forward.9} parent=51 // pred_check_branch
        %887 = sbr.rel (%p885) target = $region60
      $region59: #{decoder_block_forward.9} parent=51 // pred_region
        %p888 = scmp.lt.s32.totalorder %s24, 1
        %s889 = scalar_select %p888, %s24, 1
        %p890 = scmp.lt.s32.totalorder %s25, 0
        %s891 = scalar_select %p890, %s25, 0
        %s892 = smul.addr %s889, 4
        %s893 = sadd.s32 %s891, %s892
        %s894 = smul.addr %s893, 4
        %s895 = scalar_lea.vmem %s6, %s894
      $region60: #{decoder_block_forward.9} parent=51 // pred_fallthru
        _
    $region52: #{decoder_block_forward.9} parent=5 // pred_fallthru
      _
  $region6: #{decoder_block_forward.9} parent=0 // loop_footer
    %s17 = sadd.s32 1, %s13
  $region7: #{decoder_block_forward.9} parent=0 // loop_footer_branch
    %12 = sbr.rel target = $region3
  $region8: #{decoder_block_forward.9} parent=0 // loop_exit
    _

// kernel: decoder_block_forward.11
$region0: #{decoder_block_forward.11}
  #allocation0 [shape = 'u32[]', space=smem, size = 0x4, offset = 0x4, fixed_abs, tag = 'smem constant byte address 0x4 - core index']
  #allocation1 [shape = 'u32[144,128]{1,0:T(1,128)}', space=vmem, size = 0x12000, scoped, tag = 'internal scratch']
  #allocation2 [shape = 'f32[16,32]{1,0:T(8,128)}', space=vmem, size = 0x2000, scoped, tag = 'scratch operand']
  %s0 = inlined_call_operand.vmem [shape: f32[2], index: 0, kind: input, shape index: {}]
  %s1 = inlined_call_operand.vmem [shape: f32[16,32], index: 1, kind: input, shape index: {}, may-alias: {1,6}]
  %s2 = inlined_call_operand.vmem [shape: bf16[32,64], index: 2, kind: input, shape index: {}]
  %s3 = inlined_call_operand.vmem [shape: f32[1,64], index: 3, kind: input, shape index: {}]
  %s4 = inlined_call_operand.vmem [shape: bf16[64,32], index: 4, kind: input, shape index: {}]
  %s5 = inlined_call_operand.vmem [shape: f32[1,32], index: 5, kind: input, shape index: {}]
  %s6 = inlined_call_operand.vmem [shape: f32[16,32], index: 6, kind: output, shape index: {}, may-alias: {1,6}]
  %s7 = sld [smem:[#allocation0]]
  $region46: #{decoder_block_forward.11} parent=0
    _
  %s9 = ssub.s32 1, %s7
  %s10 = scalar_select 0, %s9, %s7
  $region1: #{decoder_block_forward.11} parent=0
    #allocation3 [shape = 'u8[512]{0}', space=smem, size = 0x200, scoped, tag = 'input window, operand 0, single buffered']
    #allocation4 [shape = 's32[1]{0}', space=sflag, size = 0x4, scoped, tag = 'scoped memory for decoder_block_forward.11']
    %11 = vsyncpa [#allocation4], 0
    // Predicated region
    $region2: #{decoder_block_forward.11} parent=1 // pred_check
      _
    $region3: #{decoder_block_forward.11} parent=1 // pred_check_branch
      %13 = sbr.rel (0) target = $region5
    $region4: #{decoder_block_forward.11} parent=1 // pred_region
      %s15 = ssub.s32 16, 16
      %16 = vsyncadd [#allocation4], %s15
      %s18 = sshll.u32 %s0, 4
      %s19 = int_to_ptr.vmem [resolvable:$true] %s18
      %21 = dma.vmem_to_smem %s19, 16, [#allocation3], [#allocation4]
    $region5: #{decoder_block_forward.11} parent=1 // pred_fallthru
      _
    // Predicated region
    $region6: #{decoder_block_forward.11} parent=1 // pred_check
      _
    $region7: #{decoder_block_forward.11} parent=1 // pred_check_branch
      %23 = sbr.rel (0) target = $region9
    $region8: #{decoder_block_forward.11} parent=1 // pred_region
      _
    $region9: #{decoder_block_forward.11} parent=1 // pred_fallthru
      _
    // Predicated region
    $region10: #{decoder_block_forward.11} parent=1 // pred_check
      _
    $region11: #{decoder_block_forward.11} parent=1 // pred_check_branch
      %25 = sbr.rel (0) target = $region13
    $region12: #{decoder_block_forward.11} parent=1 // pred_region
      _
    $region13: #{decoder_block_forward.11} parent=1 // pred_fallthru
      _
    // Predicated region
    $region14: #{decoder_block_forward.11} parent=1 // pred_check
      _
    $region15: #{decoder_block_forward.11} parent=1 // pred_check_branch
      %27 = sbr.rel (0) target = $region17
    $region16: #{decoder_block_forward.11} parent=1 // pred_region
      _
    $region17: #{decoder_block_forward.11} parent=1 // pred_fallthru
      _
    // Predicated region
    $region18: #{decoder_block_forward.11} parent=1 // pred_check
      _
    $region19: #{decoder_block_forward.11} parent=1 // pred_check_branch
      %29 = sbr.rel (0) target = $region21
    $region20: #{decoder_block_forward.11} parent=1 // pred_region
      _
    $region21: #{decoder_block_forward.11} parent=1 // pred_fallthru
      _
    // Predicated region
    $region22: #{decoder_block_forward.11} parent=1 // pred_check
      _
    $region23: #{decoder_block_forward.11} parent=1 // pred_check_branch
      %31 = sbr.rel (0) target = $region25
    $region24: #{decoder_block_forward.11} parent=1 // pred_region
      _
    $region25: #{decoder_block_forward.11} parent=1 // pred_fallthru
      _
    // Predicated region
    $region26: #{decoder_block_forward.11} parent=1 // pred_check
      _
    $region27: #{decoder_block_forward.11} parent=1 // pred_check_branch
      %33 = sbr.rel (0) target = $region29
    $region28: #{decoder_block_forward.11} parent=1 // pred_region
      %34 = dma.done [#allocation4], 16
    $region29: #{decoder_block_forward.11} parent=1 // pred_fallthru
      _
    %35 = sfence
    %p37 = scmp.eq.s32.totalorder 0, 0
    // Predicated region
    $region30: #{decoder_block_forward.11} parent=1 // pred_check
      %p38 = pneg %p37
    $region31: #{decoder_block_forward.11} parent=1 // pred_check_branch
      %40 = sbr.rel (%p38) target = $region33
    $region32: #{decoder_block_forward.11} parent=1 // pred_region
      %vm41 = vcmask 261120
      %42 = vst.msk [vmem:[#allocation2] sm:$0xff] %vm41, 0.0
      %43 = vst.msk [vmem:[#allocation2 + $0x8] sm:$0xff] %vm41, 0.0
    $region33: #{decoder_block_forward.11} parent=1 // pred_fallthru
      _
    %v44 = vld [vmem:[%s1] sm:$0xff]
    %v45 = vld [vmem:[%s1 + $0x8] sm:$0xff]
    %s46 = sld [smem:[#allocation3]]
    %s47 = sld [smem:[#allocation3 + $0x1]]
    %vm48 = vcmask 261120
    %v49 = vsel %vm48, %v44, 0.0
    %50 = vadd.xlane.f32.xlu0 %v49
    %v51 = vpop.xlane.xlu0 %50
    %v52 = vsel %vm48, %v45, 0.0
    %53 = vadd.xlane.f32.xlu0 %v52
    %v54 = vpop.xlane.xlu0 %53
    %v55 = vrcp.pop 32.0
    %v56 = vmul.f32 %v51, %v55
    %v57 = vmul.f32 %v54, %v55
    %v58 = vsub.f32 %v44, %v56
    %v59 = vsub.f32 %v45, %v57
    %v60 = vmul.f32 %v58, %v58
    %v61 = vmul.f32 %v59, %v59
    %v62 = vsel %vm48, %v60, 0.0
    %63 = vadd.xlane.f32.xlu0 %v62
    %v64 = vpop.xlane.xlu0 %63
    %v65 = vsel %vm48, %v61, 0.0
    %66 = vadd.xlane.f32.xlu0 %v65
    %v67 = vpop.xlane.xlu0 %66
    %v68 = vmul.f32 %v64, %v55
    %v69 = vmul.f32 %v67, %v55
    %v70 = vstv %s46
    %v71 = vmul.f32 %v70, %v58
    %v72 = vmul.f32 %v70, %v59
    %v73 = vadd.f32 %v68, 1e-06
    %v74 = vadd.f32 %v69, 1e-06
    %v75 = vrsqrt.pop %v73
    %v76 = vrsqrt.pop %v74
    %v77 = vmul.f32 %v71, %v75
    %v78 = vmul.f32 %v72, %v76
    %v79 = vstv %s47
    %v80 = vadd.f32 %v77, %v79
    %v81 = vadd.f32 %v78, %v79
    %v82 = vpack.c.bf16 %v81, %v80
    %v83 = vld [vmem:[%s2] sm:$0xf]
    %v84 = vld [vmem:[%s2 + $0x4] sm:$0xf]
    %v85 = vld [vmem:[%s2 + $0x8] sm:$0xf]
    %v86 = vld [vmem:[%s2 + $0xc] sm:$0xf]
    %v87 = vld [vmem:[%s3] sm:$0x1]
    %v89 = vlaneseq
    %v90 = vshrl.u32 %v89, 7
    %v91 = vsub.s32 0, %v90
    %v92 = vrot.slane %v87, %v91
    %v98 = vunpack.c.l.b16 %v83
    %v99 = vunpack.c.l.b16 %v84
    %v100 = vunpack.c.l.b16 %v85
    %v101 = vunpack.c.l.b16 %v86
    %v102 = vpack.c.b16 %v99, %v98
    %v103 = vpack.c.b16 %v101, %v100
    %v107 = vsel %vm48, %v82, 0
    %109 = vmatprep.subr.bf16.mxu0 0
    %110 = vmatpush1.bf16.msra.mxu0 0
    %111 = vmatprep.subr.bf16.mxu0 0
    %112 = vmatpush1.bf16.msra.mxu0 0
    %113 = vmatprep.subr.bf16.mxu0 0
    %114 = vmatpush1.bf16.msra.mxu0 0
    %115 = vmatprep.subr.bf16.mxu0 0
    %116 = vmatpush1.bf16.msra.mxu0 0
    %117 = vmatprep.subr.bf16.mxu0 0
    %118 = vmatpush1.bf16.msra.mxu0 0
    %119 = vmatprep.subr.bf16.mxu0 0
    %120 = vmatpush1.bf16.msra.mxu0 0
    %121 = vmatprep.subr.bf16.mxu0 0
    %122 = vmatpush1.bf16.msra.mxu0 %v103
    %123 = vmatprep.subr.bf16.mxu0 0
    %124 = vmatpush1.bf16.msra.mxu0 %v102
    %125 = vmatprep.subr.bf16.mxu0 0
    %126 = vmatpush2.bf16.msra.mxu0 0
    %127 = vmatprep.subr.bf16.mxu0 0
    %128 = vmatpush2.bf16.msra.mxu0 0
    %129 = vmatprep.subr.bf16.mxu0 0
    %130 = vmatpush2.bf16.msra.mxu0 0
    %131 = vmatprep.subr.bf16.mxu0 0
    %132 = vmatpush2.bf16.msra.mxu0 0
    %133 = vmatprep.subr.bf16.mxu0 0
    %134 = vmatpush2.bf16.msra.mxu0 0
    %135 = vmatprep.subr.bf16.mxu0 0
    %136 = vmatpush2.bf16.msra.mxu0 0
    %137 = vmatprep.subr.bf16.mxu0 0
    %138 = vmatpush2.bf16.msra.mxu0 0
    %139 = vmatprep.subr.bf16.mxu0 0
    %140 = vmatpush2.bf16.msra.mxu0 0
    %141 = vmatprep.mubr.bf16.mxu0 0
    %142 = vmatmul.mubr.bf16.gmra.mxu0 %v107
    %v143 = vpop.f32.mrf.mxu0
    %v144 = vadd.f32 %v92, %v143
    %v145 = vpop.f32.mrf.mxu0
    %v146 = vpop.f32.mrf.mxu0
    %v147 = vadd.f32 %v92, %v146
    %v148 = vpop.f32.mrf.mxu0
    %149 = vdwg.mxu0
    %v150 = vmax.f32 %v144, 0.0
    %v151 = vmax.f32 %v147, 0.0
    %v152 = vld [vmem:[#allocation2] sm:$0xff]
    %v153 = vld [vmem:[#allocation2 + $0x8] sm:$0xff]
    %v154 = vpack.c.bf16 %v151, %v150
    %v155 = vld [vmem:[%s4] sm:$0xf]
    %v156 = vld [vmem:[%s4 + $0x4] sm:$0xf]
    %v157 = vld [vmem:[%s4 + $0x8] sm:$0xf]
    %v158 = vld [vmem:[%s4 + $0xc] sm:$0xf]
    %v159 = vld [vmem:[%s4 + $0x10] sm:$0xf]
    %v160 = vld [vmem:[%s4 + $0x14] sm:$0xf]
    %v161 = vld [vmem:[%s4 + $0x18] sm:$0xf]
    %v162 = vld [vmem:[%s4 + $0x1c] sm:$0xf]
    %v171 = vunpack.c.l.b16 %v155
    %v172 = vunpack.c.l.b16 %v156
    %v173 = vunpack.c.l.b16 %v157
    %v174 = vunpack.c.l.b16 %v158
    %v175 = vunpack.c.l.b16 %v159
    %v176 = vunpack.c.l.b16 %v160
    %v177 = vunpack.c.l.b16 %v161
    %v178 = vunpack.c.l.b16 %v162
    %v179 = vpack.c.b16 %v172, %v171
    %v180 = vpack.c.b16 %v174, %v173
    %v181 = vpack.c.b16 %v176, %v175
    %v182 = vpack.c.b16 %v178, %v177
    %vm187 = vcmask 523264
    %v189 = vsel %vm187, %v154, 0
    %191 = vmatprep.subr.bf16.mxu0 0
    %192 = vmatpush1.bf16.msra.mxu0 0
    %193 = vmatprep.subr.bf16.mxu0 0
    %194 = vmatpush1.bf16.msra.mxu0 0
    %195 = vmatprep.subr.bf16.mxu0 0
    %196 = vmatpush1.bf16.msra.mxu0 0
    %197 = vmatprep.subr.bf16.mxu0 0
    %198 = vmatpush1.bf16.msra.mxu0 0
    %199 = vmatprep.subr.bf16.mxu0 0
    %200 = vmatpush1.bf16.msra.mxu0 %v182
    %201 = vmatprep.subr.bf16.mxu0 0
    %202 = vmatpush1.bf16.msra.mxu0 %v181
    %203 = vmatprep.subr.bf16.mxu0 0
    %204 = vmatpush1.bf16.msra.mxu0 %v180
    %205 = vmatprep.subr.bf16.mxu0 0
    %206 = vmatpush1.bf16.msra.mxu0 %v179
    %207 = vmatprep.subr.bf16.mxu0 0
    %208 = vmatpush2.bf16.msra.mxu0 0
    %209 = vmatprep.subr.bf16.mxu0 0
    %210 = vmatpush2.bf16.msra.mxu0 0
    %211 = vmatprep.subr.bf16.mxu0 0
    %212 = vmatpush2.bf16.msra.mxu0 0
    %213 = vmatprep.subr.bf16.mxu0 0
    %214 = vmatpush2.bf16.msra.mxu0 0
    %215 = vmatprep.subr.bf16.mxu0 0
    %216 = vmatpush2.bf16.msra.mxu0 0
    %217 = vmatprep.subr.bf16.mxu0 0
    %218 = vmatpush2.bf16.msra.mxu0 0
    %219 = vmatprep.subr.bf16.mxu0 0
    %220 = vmatpush2.bf16.msra.mxu0 0
    %221 = vmatprep.subr.bf16.mxu0 0
    %222 = vmatpush2.bf16.msra.mxu0 0
    %223 = vmatprep.mubr.bf16.mxu0 0
    %224 = vmatmul.mubr.bf16.gmra.mxu0 %v189
    %v225 = vpop.f32.mrf.mxu0
    %v226 = vadd.f32 0.0, %v225
    %v227 = vpop.f32.mrf.mxu0
    %v228 = vpop.f32.mrf.mxu0
    %v229 = vadd.f32 0.0, %v228
    %v230 = vpop.f32.mrf.mxu0
    %231 = vdwg.mxu0
    %v232 = vadd.f32 %v152, %v226
    %v233 = vadd.f32 %v153, %v229
    %234 = vst.msk [vmem:[#allocation2] sm:$0xff] %vm48, %v232
    %235 = vst.msk [vmem:[#allocation2 + $0x8] sm:$0xff] %vm48, %v233
    // Predicated region
    $region34: #{decoder_block_forward.11} parent=1 // pred_check
      %p236 = pneg %p37
    $region35: #{decoder_block_forward.11} parent=1 // pred_check_branch
      %238 = sbr.rel (%p236) target = $region37
    $region36: #{decoder_block_forward.11} parent=1 // pred_region
      %v239 = vld [vmem:[%s1] sm:$0xff]
      %v240 = vld [vmem:[%s1 + $0x8] sm:$0xff]
      %v241 = vld [vmem:[#allocation2] sm:$0xff]
      %v242 = vld [vmem:[#allocation2 + $0x8] sm:$0xff]
      %v243 = vadd.f32 %v239, %v241
      %v244 = vadd.f32 %v240, %v242
      %v245 = vld [vmem:[%s5] sm:$0x1]
      %v247 = vlaneseq
      %v248 = vshrl.u32 %v247, 7
      %v249 = vsub.s32 0, %v248
      %v250 = vrot.slane %v245, %v249
      %v252 = vadd.f32 %v243, %v250
      %v253 = vadd.f32 %v244, %v250
      %254 = vst.msk [vmem:[%s6] sm:$0xff] %vm48, %v252
      %255 = vst.msk [vmem:[%s6 + $0x8] sm:$0xff] %vm48, %v253
    $region37: #{decoder_block_forward.11} parent=1 // pred_fallthru
      _
    // Predicated region
    $region38: #{decoder_block_forward.11} parent=1 // pred_check
      _
    $region39: #{decoder_block_forward.11} parent=1 // pred_check_branch
      %257 = sbr.rel (0) target = $region41
    $region40: #{decoder_block_forward.11} parent=1 // pred_region
      _
    $region41: #{decoder_block_forward.11} parent=1 // pred_fallthru
      _
    // Predicated region
    $region42: #{decoder_block_forward.11} parent=1 // pred_check
      _
    $region43: #{decoder_block_forward.11} parent=1 // pred_check_branch
      %259 = sbr.rel (0) target = $region45
    $region44: #{decoder_block_forward.11} parent=1 // pred_region
      _
    $region45: #{decoder_block_forward.11} parent=1 // pred_fallthru
      _
    %260 = vsyncpa [#allocation4], 1

</llo_original>
